<compile_context>
chip_gen: v7x
topology: tpu7x:2x2x1
jax: 0.10.0
libtpu: 0.0.40
codegen_flags: <defaults>
</compile_context>

<pallas_src>
import functools

import jax
import jax.numpy as jnp
from jax.experimental import pallas as pl
from jax.experimental.pallas import tpu as pltpu


def _downsample_fused_kernel(x_ref, w_ref, s_ref, b_ref, o_ref, *, th, W, w_out):
    """Fused pixel-unshuffle + 1x1 conv on one band of `th` output rows.

    x_ref : (1, C, 2*th*W)         f32   2*th input rows, row-major flattened
    w_ref : (2, 2, dim_out, C)     bf16  conv weight split per (p1, p2) tap
    s_ref : (2, W, w_out)          bf16  exact 0/1 column-selection matrices
    b_ref : (dim_out, 1)           f32   conv bias
    o_ref : (1, dim_out, th*w_out) bf16  th output rows, row-major flattened
    """
    for r in range(th):  # static unroll over the output rows of this band
        acc = None
        for p1 in range(2):
            # Input row 2*r + p1 of the band, all W columns (contiguous lanes).
            xrow = x_ref[0, :, pl.ds((2 * r + p1) * W, W)].astype(jnp.bfloat16)  # (C, W)
            for p2 in range(2):
                # Exact selection: yc[c, wi] = xrow[c, 2*wi + p2]  (0/1 matrix, MXU).
                yc = jnp.dot(xrow, s_ref[p2],
                             preferred_element_type=jnp.float32).astype(jnp.bfloat16)  # (C, w)
                part = jnp.dot(w_ref[p1, p2], yc,
                               preferred_element_type=jnp.float32)                     # (dim_out, w)
                acc = part if acc is None else acc + part
        o_ref[0, :, pl.ds(r * w_out, w_out)] = (acc + b_ref[...]).astype(o_ref.dtype)


def _vmem_capacity_bytes():
    try:
        info = pltpu.get_tpu_info()
        cap = getattr(info, "vmem_capacity_bytes", None)
        if cap:
            return int(cap)
    except Exception:
        pass
    return 64 * 1024 * 1024  # conservative default (v7x per-TC VMEM)


def _choose_row_band(h, w, W, c, dim_out, batch, budget_bytes):
    """Pick th (output rows per grid step) under a VMEM budget."""
    def step_bytes(th):
        x_blk = c * (2 * th * W) * 4          # f32 input band
        o_blk = dim_out * (th * w) * 2        # bf16 output band
        return 2 * x_blk + 2 * o_blk          # both double-buffered by the pipeline

    fixed = (2 * (4 * dim_out * c * 2)        # (2,2,dim_out,C) bf16 weight (x2 buffers)
             + 2 * (2 * W * w * 2)            # (2,W,w) bf16 selection    (x2 buffers)
             + 2 * (dim_out * 4))             # bias

    divs = [d for d in range(1, h + 1) if h % d == 0]
    # Lane-dense / layout-legal bands: full extent, or last block dim % 128 == 0.
    feasible = [d for d in divs if d == h or (d * w) % 128 == 0]
    if not feasible:
        feasible = [h]
    capped = [d for d in feasible if d <= 64]   # bound the static unroll
    if capped:
        feasible = capped

    fits = [d for d in feasible if fixed + step_bytes(d) <= budget_bytes]
    if fits:
        par = [d for d in fits if batch * (h // d) >= 8]  # enough steps for 2 TCs / pipeline
        th = max(par) if par else max(fits)
    else:
        th = min(feasible)
    return th, fixed + step_bytes(th)


def downsample_block_pallas(x, conv_weight, conv_bias, *,
                            out_dtype=jnp.bfloat16,
                            compute_dtype=jnp.bfloat16,
                            vmem_budget_bytes=None):
    """Forward pass of DownsampleBlock.

    x           : (B, C, H, W) float32, H and W even
    conv_weight : (dim_out, 4*C, 1, 1) or (dim_out, 4*C)
    conv_bias   : (dim_out,)
    returns     : (B, dim_out, H//2, W//2) in `out_dtype`
    """
    b, c, hh, ww = x.shape
    assert hh % 2 == 0 and ww % 2 == 0, "H and W must be even"
    h, w = hh // 2, ww // 2
    dim_out = conv_weight.shape[0]
    assert conv_weight.reshape(dim_out, -1).shape[1] == 4 * c

    # Metadata-only reshape; the pixel-unshuffle itself happens inside the
    # kernel, so the activations make exactly one HBM pass.
    x_flat = x.reshape(b, c, hh * ww)

    # Per-(p1, p2) tap weights: Wp[p1, p2, d, c] = conv_weight[d, 4*c + 2*p1 + p2].
    w4 = jnp.reshape(conv_weight, (dim_out, c, 2, 2))
    w_taps = jnp.transpose(w4, (2, 3, 0, 1)).astype(compute_dtype)       # (2, 2, dim_out, C)

    # Exact 0/1 selection matrices: S[p2, j, wi] = (j == 2*wi + p2).
    jj = jnp.arange(ww)[:, None]
    wi = jnp.arange(w)[None, :]
    sel = jnp.stack([(jj == 2 * wi).astype(compute_dtype),
                     (jj == 2 * wi + 1).astype(compute_dtype)], axis=0)  # (2, W, w)

    b_col = jnp.reshape(conv_bias, (dim_out, 1)).astype(jnp.float32)

    cap = _vmem_capacity_bytes()
    budget = (vmem_budget_bytes if vmem_budget_bytes is not None
              else min(cap // 2, 64 * 1024 * 1024))
    th, need = _choose_row_band(h, w, ww, c, dim_out, b, budget)
    n_row_tiles = h // th
    vmem_limit = int(min(cap, max(32 * 1024 * 1024, need + 4 * 1024 * 1024)))

    kern = functools.partial(_downsample_fused_kernel, th=th, W=ww, w_out=w)

    out = pl.pallas_call(
        kern,
        out_shape=jax.ShapeDtypeStruct((b, dim_out, h * w), out_dtype),
        grid=(b, n_row_tiles),
        in_specs=[
            pl.BlockSpec((1, c, 2 * th * ww), lambda bi, ti: (bi, 0, ti)),   # activations
            pl.BlockSpec((2, 2, dim_out, c), lambda bi, ti: (0, 0, 0, 0)),   # conv weight
            pl.BlockSpec((2, ww, w), lambda bi, ti: (0, 0, 0)),              # selection
            pl.BlockSpec((dim_out, 1), lambda bi, ti: (0, 0)),               # bias
        ],
        out_specs=pl.BlockSpec((1, dim_out, th * w), lambda bi, ti: (bi, 0, ti)),
        compiler_params=pltpu.CompilerParams(
            dimension_semantics=("parallel", "parallel"),
            vmem_limit_bytes=vmem_limit),
    )(x_flat, w_taps, sel, b_col)

    # (B, dim_out, h*w) -> NCHW with a pure (free) reshape.
    return out.reshape(b, dim_out, h, w)


def downsample_block_reference(x, conv_weight, conv_bias):
    """Pure-JAX f32 mirror of the PyTorch module (rearrange + 1x1 conv)."""
    b, c, hh, ww = x.shape
    h, w = hh // 2, ww // 2
    dim_out = conv_weight.shape[0]
    y = (x.reshape(b, c, h, 2, w, 2)
          .transpose(0, 1, 3, 5, 2, 4)
          .reshape(b, 4 * c, h, w)).astype(jnp.float32)
    w_mat = jnp.reshape(conv_weight, (dim_out, 4 * c)).astype(jnp.float32)
    out = jnp.einsum('dk,bkhw->bdhw', w_mat, y)
    return out + conv_bias.reshape(1, dim_out, 1, 1)


if __name__ == "__main__":
    B, dim, H, W = 2, 4, 16, 16
    dim_out = dim

    key = jax.random.PRNGKey(0)
    kx, kw, kb = jax.random.split(key, 3)
    x = jax.random.normal(kx, (B, dim, H, W), jnp.float32)
    conv_weight = 0.1 * jax.random.normal(kw, (dim_out, dim * 4, 1, 1), jnp.float32)
    conv_bias = 0.1 * jax.random.normal(kb, (dim_out,), jnp.float32)

    out = downsample_block_pallas(x, conv_weight, conv_bias)
    out = jax.block_until_ready(out)

    ref = downsample_block_reference(x, conv_weight, conv_bias)
    assert out.shape == (B, dim_out, H // 2, W // 2)
    # bf16 MXU operands / bf16 output with f32 accumulation -> loosened tolerance.
    assert jnp.allclose(out.astype(jnp.float32), ref, atol=2e-2, rtol=2e-2), (
        f"mismatch vs reference, max abs diff = "
        f"{jnp.max(jnp.abs(out.astype(jnp.float32) - ref))}")
    print("KERNEL_OK")
</pallas_src>

<mosaic_0001>
module attributes {stable_mosaic.version = 11 : i64} {
  func.func @_downsample_fused_kernel(%arg0: i32, %arg1: i32, %arg2: memref<1x4x256xf32, #tpu.memory_space<vmem>>, %arg3: memref<2x2x4x4xbf16, #tpu.memory_space<vmem>>, %arg4: memref<2x16x8xbf16, #tpu.memory_space<vmem>>, %arg5: memref<4x1xf32, #tpu.memory_space<vmem>>, %arg6: memref<1x4x64xbf16, #tpu.memory_space<vmem>>) attributes {dimension_semantics = [#tpu.dimension_semantics<parallel>, #tpu.dimension_semantics<parallel>], iteration_bounds = array<i64: 2, 1>, scalar_prefetch = 0 : i64, scratch_operands = 0 : i64, tpu.core_type = #tpu.core_type<tc>, window_params = [{transform_indices = @transform_0, window_bounds = array<i64: 1, 4, 256>}, {pipeline_mode = #tpu.pipeline_mode<synchronous>, transform_indices = @transform_1, window_bounds = array<i64: 2, 2, 4, 4>}, {pipeline_mode = #tpu.pipeline_mode<synchronous>, transform_indices = @transform_2, window_bounds = array<i64: 2, 16, 8>}, {pipeline_mode = #tpu.pipeline_mode<synchronous>, transform_indices = @transform_3, window_bounds = array<i64: 4, 1>}, {transform_indices = @transform_4, window_bounds = array<i64: 1, 4, 64>}]} {
    %c0 = arith.constant 0 : index
    %c0_0 = arith.constant 0 : index
    %c0_1 = arith.constant 0 : index
    %0 = vector.load %arg2[%c0, %c0_0, %c0_1] : memref<1x4x256xf32, #tpu.memory_space<vmem>>, vector<1x4x16xf32>
    %1 = vector.shape_cast %0 : vector<1x4x16xf32> to vector<4x16xf32>
    %2 = arith.truncf %1 : vector<4x16xf32> to vector<4x16xbf16>
    %c0_2 = arith.constant 0 : index
    %c0_3 = arith.constant 0 : index
    %c0_4 = arith.constant 0 : index
    %3 = vector.load %arg4[%c0_2, %c0_3, %c0_4] : memref<2x16x8xbf16, #tpu.memory_space<vmem>>, vector<1x16x8xbf16>
    %4 = vector.shape_cast %3 : vector<1x16x8xbf16> to vector<16x8xbf16>
    %cst = arith.constant dense<0.000000e+00> : vector<4x8xf32>
    %5 = tpu.matmul %2, %4, %cst {dimension_numbers = #tpu.dot_dimension_numbers<[1], [0], [0], [1], [0, 0, 1, 1], [], []>} : vector<4x16xbf16>, vector<16x8xbf16>, vector<4x8xf32> -> vector<4x8xf32>
    %6 = arith.truncf %5 : vector<4x8xf32> to vector<4x8xbf16>
    %c0_5 = arith.constant 0 : index
    %c0_6 = arith.constant 0 : index
    %c0_7 = arith.constant 0 : index
    %c0_8 = arith.constant 0 : index
    %7 = vector.load %arg3[%c0_5, %c0_6, %c0_7, %c0_8] : memref<2x2x4x4xbf16, #tpu.memory_space<vmem>>, vector<1x1x4x4xbf16>
    %8 = vector.shape_cast %7 : vector<1x1x4x4xbf16> to vector<4x4xbf16>
    %cst_9 = arith.constant dense<0.000000e+00> : vector<4x8xf32>
    %9 = tpu.matmul %8, %6, %cst_9 {dimension_numbers = #tpu.dot_dimension_numbers<[1], [0], [0], [1], [0, 0, 1, 1], [], []>} : vector<4x4xbf16>, vector<4x8xbf16>, vector<4x8xf32> -> vector<4x8xf32>
    %c1 = arith.constant 1 : index
    %c0_10 = arith.constant 0 : index
    %c0_11 = arith.constant 0 : index
    %10 = vector.load %arg4[%c1, %c0_10, %c0_11] : memref<2x16x8xbf16, #tpu.memory_space<vmem>>, vector<1x16x8xbf16>
    %11 = vector.shape_cast %10 : vector<1x16x8xbf16> to vector<16x8xbf16>
    %cst_12 = arith.constant dense<0.000000e+00> : vector<4x8xf32>
    %12 = tpu.matmul %2, %11, %cst_12 {dimension_numbers = #tpu.dot_dimension_numbers<[1], [0], [0], [1], [0, 0, 1, 1], [], []>} : vector<4x16xbf16>, vector<16x8xbf16>, vector<4x8xf32> -> vector<4x8xf32>
    %13 = arith.truncf %12 : vector<4x8xf32> to vector<4x8xbf16>
    %c0_13 = arith.constant 0 : index
    %c1_14 = arith.constant 1 : index
    %c0_15 = arith.constant 0 : index
    %c0_16 = arith.constant 0 : index
    %14 = vector.load %arg3[%c0_13, %c1_14, %c0_15, %c0_16] : memref<2x2x4x4xbf16, #tpu.memory_space<vmem>>, vector<1x1x4x4xbf16>
    %15 = vector.shape_cast %14 : vector<1x1x4x4xbf16> to vector<4x4xbf16>
    %cst_17 = arith.constant dense<0.000000e+00> : vector<4x8xf32>
    %16 = tpu.matmul %15, %13, %cst_17 {dimension_numbers = #tpu.dot_dimension_numbers<[1], [0], [0], [1], [0, 0, 1, 1], [], []>} : vector<4x4xbf16>, vector<4x8xbf16>, vector<4x8xf32> -> vector<4x8xf32>
    %17 = arith.addf %9, %16 : vector<4x8xf32>
    %c0_18 = arith.constant 0 : index
    %c0_19 = arith.constant 0 : index
    %c16 = arith.constant 16 : index
    %18 = vector.load %arg2[%c0_18, %c0_19, %c16] : memref<1x4x256xf32, #tpu.memory_space<vmem>>, vector<1x4x16xf32>
    %19 = vector.shape_cast %18 : vector<1x4x16xf32> to vector<4x16xf32>
    %20 = arith.truncf %19 : vector<4x16xf32> to vector<4x16xbf16>
    %c0_20 = arith.constant 0 : index
    %c0_21 = arith.constant 0 : index
    %c0_22 = arith.constant 0 : index
    %21 = vector.load %arg4[%c0_20, %c0_21, %c0_22] : memref<2x16x8xbf16, #tpu.memory_space<vmem>>, vector<1x16x8xbf16>
    %22 = vector.shape_cast %21 : vector<1x16x8xbf16> to vector<16x8xbf16>
    %cst_23 = arith.constant dense<0.000000e+00> : vector<4x8xf32>
    %23 = tpu.matmul %20, %22, %cst_23 {dimension_numbers = #tpu.dot_dimension_numbers<[1], [0], [0], [1], [0, 0, 1, 1], [], []>} : vector<4x16xbf16>, vector<16x8xbf16>, vector<4x8xf32> -> vector<4x8xf32>
    %24 = arith.truncf %23 : vector<4x8xf32> to vector<4x8xbf16>
    %c1_24 = arith.constant 1 : index
    %c0_25 = arith.constant 0 : index
    %c0_26 = arith.constant 0 : index
    %c0_27 = arith.constant 0 : index
    %25 = vector.load %arg3[%c1_24, %c0_25, %c0_26, %c0_27] : memref<2x2x4x4xbf16, #tpu.memory_space<vmem>>, vector<1x1x4x4xbf16>
    %26 = vector.shape_cast %25 : vector<1x1x4x4xbf16> to vector<4x4xbf16>
    %cst_28 = arith.constant dense<0.000000e+00> : vector<4x8xf32>
    %27 = tpu.matmul %26, %24, %cst_28 {dimension_numbers = #tpu.dot_dimension_numbers<[1], [0], [0], [1], [0, 0, 1, 1], [], []>} : vector<4x4xbf16>, vector<4x8xbf16>, vector<4x8xf32> -> vector<4x8xf32>
    %28 = arith.addf %17, %27 : vector<4x8xf32>
    %c1_29 = arith.constant 1 : index
    %c0_30 = arith.constant 0 : index
    %c0_31 = arith.constant 0 : index
    %29 = vector.load %arg4[%c1_29, %c0_30, %c0_31] : memref<2x16x8xbf16, #tpu.memory_space<vmem>>, vector<1x16x8xbf16>
    %30 = vector.shape_cast %29 : vector<1x16x8xbf16> to vector<16x8xbf16>
    %cst_32 = arith.constant dense<0.000000e+00> : vector<4x8xf32>
    %31 = tpu.matmul %20, %30, %cst_32 {dimension_numbers = #tpu.dot_dimension_numbers<[1], [0], [0], [1], [0, 0, 1, 1], [], []>} : vector<4x16xbf16>, vector<16x8xbf16>, vector<4x8xf32> -> vector<4x8xf32>
    %32 = arith.truncf %31 : vector<4x8xf32> to vector<4x8xbf16>
    %c1_33 = arith.constant 1 : index
    %c1_34 = arith.constant 1 : index
    %c0_35 = arith.constant 0 : index
    %c0_36 = arith.constant 0 : index
    %33 = vector.load %arg3[%c1_33, %c1_34, %c0_35, %c0_36] : memref<2x2x4x4xbf16, #tpu.memory_space<vmem>>, vector<1x1x4x4xbf16>
    %34 = vector.shape_cast %33 : vector<1x1x4x4xbf16> to vector<4x4xbf16>
    %cst_37 = arith.constant dense<0.000000e+00> : vector<4x8xf32>
    %35 = tpu.matmul %34, %32, %cst_37 {dimension_numbers = #tpu.dot_dimension_numbers<[1], [0], [0], [1], [0, 0, 1, 1], [], []>} : vector<4x4xbf16>, vector<4x8xbf16>, vector<4x8xf32> -> vector<4x8xf32>
    %36 = arith.addf %28, %35 : vector<4x8xf32>
    %c0_38 = arith.constant 0 : index
    %c0_39 = arith.constant 0 : index
    %37 = vector.load %arg5[%c0_38, %c0_39] : memref<4x1xf32, #tpu.memory_space<vmem>>, vector<4x1xf32>
    %38 = vector.broadcast %37 : vector<4x1xf32> to vector<4x8xf32>
    %39 = arith.addf %36, %38 : vector<4x8xf32>
    %40 = arith.truncf %39 : vector<4x8xf32> to vector<4x8xbf16>
    %c0_40 = arith.constant 0 : index
    %c0_41 = arith.constant 0 : index
    %c0_42 = arith.constant 0 : index
    %41 = vector.load %arg6[%c0_40, %c0_41, %c0_42] : memref<1x4x64xbf16, #tpu.memory_space<vmem>>, vector<1x4x8xbf16>
    %42 = vector.shape_cast %41 : vector<1x4x8xbf16> to vector<4x8xbf16>
    %43 = vector.shape_cast %40 : vector<4x8xbf16> to vector<1x4x8xbf16>
    tpu.vector_store %arg6[%c0_40, %c0_41, %c0_42], %43 {strides = array<i32>} : memref<1x4x64xbf16, #tpu.memory_space<vmem>>, vector<1x4x8xbf16>,
    %c0_43 = arith.constant 0 : index
    %c0_44 = arith.constant 0 : index
    %c32 = arith.constant 32 : index
    %44 = vector.load %arg2[%c0_43, %c0_44, %c32] : memref<1x4x256xf32, #tpu.memory_space<vmem>>, vector<1x4x16xf32>
    %45 = vector.shape_cast %44 : vector<1x4x16xf32> to vector<4x16xf32>
    %46 = arith.truncf %45 : vector<4x16xf32> to vector<4x16xbf16>
    %c0_45 = arith.constant 0 : index
    %c0_46 = arith.constant 0 : index
    %c0_47 = arith.constant 0 : index
    %47 = vector.load %arg4[%c0_45, %c0_46, %c0_47] : memref<2x16x8xbf16, #tpu.memory_space<vmem>>, vector<1x16x8xbf16>
    %48 = vector.shape_cast %47 : vector<1x16x8xbf16> to vector<16x8xbf16>
    %cst_48 = arith.constant dense<0.000000e+00> : vector<4x8xf32>
    %49 = tpu.matmul %46, %48, %cst_48 {dimension_numbers = #tpu.dot_dimension_numbers<[1], [0], [0], [1], [0, 0, 1, 1], [], []>} : vector<4x16xbf16>, vector<16x8xbf16>, vector<4x8xf32> -> vector<4x8xf32>
    %50 = arith.truncf %49 : vector<4x8xf32> to vector<4x8xbf16>
    %c0_49 = arith.constant 0 : index
    %c0_50 = arith.constant 0 : index
    %c0_51 = arith.constant 0 : index
    %c0_52 = arith.constant 0 : index
    %51 = vector.load %arg3[%c0_49, %c0_50, %c0_51, %c0_52] : memref<2x2x4x4xbf16, #tpu.memory_space<vmem>>, vector<1x1x4x4xbf16>
    %52 = vector.shape_cast %51 : vector<1x1x4x4xbf16> to vector<4x4xbf16>
    %cst_53 = arith.constant dense<0.000000e+00> : vector<4x8xf32>
    %53 = tpu.matmul %52, %50, %cst_53 {dimension_numbers = #tpu.dot_dimension_numbers<[1], [0], [0], [1], [0, 0, 1, 1], [], []>} : vector<4x4xbf16>, vector<4x8xbf16>, vector<4x8xf32> -> vector<4x8xf32>
    %c1_54 = arith.constant 1 : index
    %c0_55 = arith.constant 0 : index
    %c0_56 = arith.constant 0 : index
    %54 = vector.load %arg4[%c1_54, %c0_55, %c0_56] : memref<2x16x8xbf16, #tpu.memory_space<vmem>>, vector<1x16x8xbf16>
    %55 = vector.shape_cast %54 : vector<1x16x8xbf16> to vector<16x8xbf16>
    %cst_57 = arith.constant dense<0.000000e+00> : vector<4x8xf32>
    %56 = tpu.matmul %46, %55, %cst_57 {dimension_numbers = #tpu.dot_dimension_numbers<[1], [0], [0], [1], [0, 0, 1, 1], [], []>} : vector<4x16xbf16>, vector<16x8xbf16>, vector<4x8xf32> -> vector<4x8xf32>
    %57 = arith.truncf %56 : vector<4x8xf32> to vector<4x8xbf16>
    %c0_58 = arith.constant 0 : index
    %c1_59 = arith.constant 1 : index
    %c0_60 = arith.constant 0 : index
    %c0_61 = arith.constant 0 : index
    %58 = vector.load %arg3[%c0_58, %c1_59, %c0_60, %c0_61] : memref<2x2x4x4xbf16, #tpu.memory_space<vmem>>, vector<1x1x4x4xbf16>
    %59 = vector.shape_cast %58 : vector<1x1x4x4xbf16> to vector<4x4xbf16>
    %cst_62 = arith.constant dense<0.000000e+00> : vector<4x8xf32>
    %60 = tpu.matmul %59, %57, %cst_62 {dimension_numbers = #tpu.dot_dimension_numbers<[1], [0], [0], [1], [0, 0, 1, 1], [], []>} : vector<4x4xbf16>, vector<4x8xbf16>, vector<4x8xf32> -> vector<4x8xf32>
    %61 = arith.addf %53, %60 : vector<4x8xf32>
    %c0_63 = arith.constant 0 : index
    %c0_64 = arith.constant 0 : index
    %c48 = arith.constant 48 : index
    %62 = vector.load %arg2[%c0_63, %c0_64, %c48] : memref<1x4x256xf32, #tpu.memory_space<vmem>>, vector<1x4x16xf32>
    %63 = vector.shape_cast %62 : vector<1x4x16xf32> to vector<4x16xf32>
    %64 = arith.truncf %63 : vector<4x16xf32> to vector<4x16xbf16>
    %c0_65 = arith.constant 0 : index
    %c0_66 = arith.constant 0 : index
    %c0_67 = arith.constant 0 : index
    %65 = vector.load %arg4[%c0_65, %c0_66, %c0_67] : memref<2x16x8xbf16, #tpu.memory_space<vmem>>, vector<1x16x8xbf16>
    %66 = vector.shape_cast %65 : vector<1x16x8xbf16> to vector<16x8xbf16>
    %cst_68 = arith.constant dense<0.000000e+00> : vector<4x8xf32>
    %67 = tpu.matmul %64, %66, %cst_68 {dimension_numbers = #tpu.dot_dimension_numbers<[1], [0], [0], [1], [0, 0, 1, 1], [], []>} : vector<4x16xbf16>, vector<16x8xbf16>, vector<4x8xf32> -> vector<4x8xf32>
    %68 = arith.truncf %67 : vector<4x8xf32> to vector<4x8xbf16>
    %c1_69 = arith.constant 1 : index
    %c0_70 = arith.constant 0 : index
    %c0_71 = arith.constant 0 : index
    %c0_72 = arith.constant 0 : index
    %69 = vector.load %arg3[%c1_69, %c0_70, %c0_71, %c0_72] : memref<2x2x4x4xbf16, #tpu.memory_space<vmem>>, vector<1x1x4x4xbf16>
    %70 = vector.shape_cast %69 : vector<1x1x4x4xbf16> to vector<4x4xbf16>
    %cst_73 = arith.constant dense<0.000000e+00> : vector<4x8xf32>
    %71 = tpu.matmul %70, %68, %cst_73 {dimension_numbers = #tpu.dot_dimension_numbers<[1], [0], [0], [1], [0, 0, 1, 1], [], []>} : vector<4x4xbf16>, vector<4x8xbf16>, vector<4x8xf32> -> vector<4x8xf32>
    %72 = arith.addf %61, %71 : vector<4x8xf32>
    %c1_74 = arith.constant 1 : index
    %c0_75 = arith.constant 0 : index
    %c0_76 = arith.constant 0 : index
    %73 = vector.load %arg4[%c1_74, %c0_75, %c0_76] : memref<2x16x8xbf16, #tpu.memory_space<vmem>>, vector<1x16x8xbf16>
    %74 = vector.shape_cast %73 : vector<1x16x8xbf16> to vector<16x8xbf16>
    %cst_77 = arith.constant dense<0.000000e+00> : vector<4x8xf32>
    %75 = tpu.matmul %64, %74, %cst_77 {dimension_numbers = #tpu.dot_dimension_numbers<[1], [0], [0], [1], [0, 0, 1, 1], [], []>} : vector<4x16xbf16>, vector<16x8xbf16>, vector<4x8xf32> -> vector<4x8xf32>
    %76 = arith.truncf %75 : vector<4x8xf32> to vector<4x8xbf16>
    %c1_78 = arith.constant 1 : index
    %c1_79 = arith.constant 1 : index
    %c0_80 = arith.constant 0 : index
    %c0_81 = arith.constant 0 : index
    %77 = vector.load %arg3[%c1_78, %c1_79, %c0_80, %c0_81] : memref<2x2x4x4xbf16, #tpu.memory_space<vmem>>, vector<1x1x4x4xbf16>
    %78 = vector.shape_cast %77 : vector<1x1x4x4xbf16> to vector<4x4xbf16>
    %cst_82 = arith.constant dense<0.000000e+00> : vector<4x8xf32>
    %79 = tpu.matmul %78, %76, %cst_82 {dimension_numbers = #tpu.dot_dimension_numbers<[1], [0], [0], [1], [0, 0, 1, 1], [], []>} : vector<4x4xbf16>, vector<4x8xbf16>, vector<4x8xf32> -> vector<4x8xf32>
    %80 = arith.addf %72, %79 : vector<4x8xf32>
    %c0_83 = arith.constant 0 : index
    %c0_84 = arith.constant 0 : index
    %81 = vector.load %arg5[%c0_83, %c0_84] : memref<4x1xf32, #tpu.memory_space<vmem>>, vector<4x1xf32>
    %82 = vector.broadcast %81 : vector<4x1xf32> to vector<4x8xf32>
    %83 = arith.addf %80, %82 : vector<4x8xf32>
    %84 = arith.truncf %83 : vector<4x8xf32> to vector<4x8xbf16>
    %c0_85 = arith.constant 0 : index
    %c0_86 = arith.constant 0 : index
    %c8 = arith.constant 8 : index
    %85 = vector.load %arg6[%c0_85, %c0_86, %c8] : memref<1x4x64xbf16, #tpu.memory_space<vmem>>, vector<1x4x8xbf16>
    %86 = vector.shape_cast %85 : vector<1x4x8xbf16> to vector<4x8xbf16>
    %87 = vector.shape_cast %84 : vector<4x8xbf16> to vector<1x4x8xbf16>
    tpu.vector_store %arg6[%c0_85, %c0_86, %c8], %87 {strides = array<i32>} : memref<1x4x64xbf16, #tpu.memory_space<vmem>>, vector<1x4x8xbf16>,
    %c0_87 = arith.constant 0 : index
    %c0_88 = arith.constant 0 : index
    %c64 = arith.constant 64 : index
    %88 = vector.load %arg2[%c0_87, %c0_88, %c64] : memref<1x4x256xf32, #tpu.memory_space<vmem>>, vector<1x4x16xf32>
    %89 = vector.shape_cast %88 : vector<1x4x16xf32> to vector<4x16xf32>
    %90 = arith.truncf %89 : vector<4x16xf32> to vector<4x16xbf16>
    %c0_89 = arith.constant 0 : index
    %c0_90 = arith.constant 0 : index
    %c0_91 = arith.constant 0 : index
    %91 = vector.load %arg4[%c0_89, %c0_90, %c0_91] : memref<2x16x8xbf16, #tpu.memory_space<vmem>>, vector<1x16x8xbf16>
    %92 = vector.shape_cast %91 : vector<1x16x8xbf16> to vector<16x8xbf16>
    %cst_92 = arith.constant dense<0.000000e+00> : vector<4x8xf32>
    %93 = tpu.matmul %90, %92, %cst_92 {dimension_numbers = #tpu.dot_dimension_numbers<[1], [0], [0], [1], [0, 0, 1, 1], [], []>} : vector<4x16xbf16>, vector<16x8xbf16>, vector<4x8xf32> -> vector<4x8xf32>
    %94 = arith.truncf %93 : vector<4x8xf32> to vector<4x8xbf16>
    %c0_93 = arith.constant 0 : index
    %c0_94 = arith.constant 0 : index
    %c0_95 = arith.constant 0 : index
    %c0_96 = arith.constant 0 : index
    %95 = vector.load %arg3[%c0_93, %c0_94, %c0_95, %c0_96] : memref<2x2x4x4xbf16, #tpu.memory_space<vmem>>, vector<1x1x4x4xbf16>
    %96 = vector.shape_cast %95 : vector<1x1x4x4xbf16> to vector<4x4xbf16>
    %cst_97 = arith.constant dense<0.000000e+00> : vector<4x8xf32>
    %97 = tpu.matmul %96, %94, %cst_97 {dimension_numbers = #tpu.dot_dimension_numbers<[1], [0], [0], [1], [0, 0, 1, 1], [], []>} : vector<4x4xbf16>, vector<4x8xbf16>, vector<4x8xf32> -> vector<4x8xf32>
    %c1_98 = arith.constant 1 : index
    %c0_99 = arith.constant 0 : index
    %c0_100 = arith.constant 0 : index
    %98 = vector.load %arg4[%c1_98, %c0_99, %c0_100] : memref<2x16x8xbf16, #tpu.memory_space<vmem>>, vector<1x16x8xbf16>
    %99 = vector.shape_cast %98 : vector<1x16x8xbf16> to vector<16x8xbf16>
    %cst_101 = arith.constant dense<0.000000e+00> : vector<4x8xf32>
    %100 = tpu.matmul %90, %99, %cst_101 {dimension_numbers = #tpu.dot_dimension_numbers<[1], [0], [0], [1], [0, 0, 1, 1], [], []>} : vector<4x16xbf16>, vector<16x8xbf16>, vector<4x8xf32> -> vector<4x8xf32>
    %101 = arith.truncf %100 : vector<4x8xf32> to vector<4x8xbf16>
    %c0_102 = arith.constant 0 : index
    %c1_103 = arith.constant 1 : index
    %c0_104 = arith.constant 0 : index
    %c0_105 = arith.constant 0 : index
    %102 = vector.load %arg3[%c0_102, %c1_103, %c0_104, %c0_105] : memref<2x2x4x4xbf16, #tpu.memory_space<vmem>>, vector<1x1x4x4xbf16>
    %103 = vector.shape_cast %102 : vector<1x1x4x4xbf16> to vector<4x4xbf16>
    %cst_106 = arith.constant dense<0.000000e+00> : vector<4x8xf32>
    %104 = tpu.matmul %103, %101, %cst_106 {dimension_numbers = #tpu.dot_dimension_numbers<[1], [0], [0], [1], [0, 0, 1, 1], [], []>} : vector<4x4xbf16>, vector<4x8xbf16>, vector<4x8xf32> -> vector<4x8xf32>
    %105 = arith.addf %97, %104 : vector<4x8xf32>
    %c0_107 = arith.constant 0 : index
    %c0_108 = arith.constant 0 : index
    %c80 = arith.constant 80 : index
    %106 = vector.load %arg2[%c0_107, %c0_108, %c80] : memref<1x4x256xf32, #tpu.memory_space<vmem>>, vector<1x4x16xf32>
    %107 = vector.shape_cast %106 : vector<1x4x16xf32> to vector<4x16xf32>
    %108 = arith.truncf %107 : vector<4x16xf32> to vector<4x16xbf16>
    %c0_109 = arith.constant 0 : index
    %c0_110 = arith.constant 0 : index
    %c0_111 = arith.constant 0 : index
    %109 = vector.load %arg4[%c0_109, %c0_110, %c0_111] : memref<2x16x8xbf16, #tpu.memory_space<vmem>>, vector<1x16x8xbf16>
    %110 = vector.shape_cast %109 : vector<1x16x8xbf16> to vector<16x8xbf16>
    %cst_112 = arith.constant dense<0.000000e+00> : vector<4x8xf32>
    %111 = tpu.matmul %108, %110, %cst_112 {dimension_numbers = #tpu.dot_dimension_numbers<[1], [0], [0], [1], [0, 0, 1, 1], [], []>} : vector<4x16xbf16>, vector<16x8xbf16>, vector<4x8xf32> -> vector<4x8xf32>
    %112 = arith.truncf %111 : vector<4x8xf32> to vector<4x8xbf16>
    %c1_113 = arith.constant 1 : index
    %c0_114 = arith.constant 0 : index
    %c0_115 = arith.constant 0 : index
    %c0_116 = arith.constant 0 : index
    %113 = vector.load %arg3[%c1_113, %c0_114, %c0_115, %c0_116] : memref<2x2x4x4xbf16, #tpu.memory_space<vmem>>, vector<1x1x4x4xbf16>
    %114 = vector.shape_cast %113 : vector<1x1x4x4xbf16> to vector<4x4xbf16>
    %cst_117 = arith.constant dense<0.000000e+00> : vector<4x8xf32>
    %115 = tpu.matmul %114, %112, %cst_117 {dimension_numbers = #tpu.dot_dimension_numbers<[1], [0], [0], [1], [0, 0, 1, 1], [], []>} : vector<4x4xbf16>, vector<4x8xbf16>, vector<4x8xf32> -> vector<4x8xf32>
    %116 = arith.addf %105, %115 : vector<4x8xf32>
    %c1_118 = arith.constant 1 : index
    %c0_119 = arith.constant 0 : index
    %c0_120 = arith.constant 0 : index
    %117 = vector.load %arg4[%c1_118, %c0_119, %c0_120] : memref<2x16x8xbf16, #tpu.memory_space<vmem>>, vector<1x16x8xbf16>
    %118 = vector.shape_cast %117 : vector<1x16x8xbf16> to vector<16x8xbf16>
    %cst_121 = arith.constant dense<0.000000e+00> : vector<4x8xf32>
    %119 = tpu.matmul %108, %118, %cst_121 {dimension_numbers = #tpu.dot_dimension_numbers<[1], [0], [0], [1], [0, 0, 1, 1], [], []>} : vector<4x16xbf16>, vector<16x8xbf16>, vector<4x8xf32> -> vector<4x8xf32>
    %120 = arith.truncf %119 : vector<4x8xf32> to vector<4x8xbf16>
    %c1_122 = arith.constant 1 : index
    %c1_123 = arith.constant 1 : index
    %c0_124 = arith.constant 0 : index
    %c0_125 = arith.constant 0 : index
    %121 = vector.load %arg3[%c1_122, %c1_123, %c0_124, %c0_125] : memref<2x2x4x4xbf16, #tpu.memory_space<vmem>>, vector<1x1x4x4xbf16>
    %122 = vector.shape_cast %121 : vector<1x1x4x4xbf16> to vector<4x4xbf16>
    %cst_126 = arith.constant dense<0.000000e+00> : vector<4x8xf32>
    %123 = tpu.matmul %122, %120, %cst_126 {dimension_numbers = #tpu.dot_dimension_numbers<[1], [0], [0], [1], [0, 0, 1, 1], [], []>} : vector<4x4xbf16>, vector<4x8xbf16>, vector<4x8xf32> -> vector<4x8xf32>
    %124 = arith.addf %116, %123 : vector<4x8xf32>
    %c0_127 = arith.constant 0 : index
    %c0_128 = arith.constant 0 : index
    %125 = vector.load %arg5[%c0_127, %c0_128] : memref<4x1xf32, #tpu.memory_space<vmem>>, vector<4x1xf32>
    %126 = vector.broadcast %125 : vector<4x1xf32> to vector<4x8xf32>
    %127 = arith.addf %124, %126 : vector<4x8xf32>
    %128 = arith.truncf %127 : vector<4x8xf32> to vector<4x8xbf16>
    %c0_129 = arith.constant 0 : index
    %c0_130 = arith.constant 0 : index
    %c16_131 = arith.constant 16 : index
    %129 = vector.load %arg6[%c0_129, %c0_130, %c16_131] : memref<1x4x64xbf16, #tpu.memory_space<vmem>>, vector<1x4x8xbf16>
    %130 = vector.shape_cast %129 : vector<1x4x8xbf16> to vector<4x8xbf16>
    %131 = vector.shape_cast %128 : vector<4x8xbf16> to vector<1x4x8xbf16>
    tpu.vector_store %arg6[%c0_129, %c0_130, %c16_131], %131 {strides = array<i32>} : memref<1x4x64xbf16, #tpu.memory_space<vmem>>, vector<1x4x8xbf16>,
    %c0_132 = arith.constant 0 : index
    %c0_133 = arith.constant 0 : index
    %c96 = arith.constant 96 : index
    %132 = vector.load %arg2[%c0_132, %c0_133, %c96] : memref<1x4x256xf32, #tpu.memory_space<vmem>>, vector<1x4x16xf32>
    %133 = vector.shape_cast %132 : vector<1x4x16xf32> to vector<4x16xf32>
    %134 = arith.truncf %133 : vector<4x16xf32> to vector<4x16xbf16>
    %c0_134 = arith.constant 0 : index
    %c0_135 = arith.constant 0 : index
    %c0_136 = arith.constant 0 : index
    %135 = vector.load %arg4[%c0_134, %c0_135, %c0_136] : memref<2x16x8xbf16, #tpu.memory_space<vmem>>, vector<1x16x8xbf16>
    %136 = vector.shape_cast %135 : vector<1x16x8xbf16> to vector<16x8xbf16>
    %cst_137 = arith.constant dense<0.000000e+00> : vector<4x8xf32>
    %137 = tpu.matmul %134, %136, %cst_137 {dimension_numbers = #tpu.dot_dimension_numbers<[1], [0], [0], [1], [0, 0, 1, 1], [], []>} : vector<4x16xbf16>, vector<16x8xbf16>, vector<4x8xf32> -> vector<4x8xf32>
    %138 = arith.truncf %137 : vector<4x8xf32> to vector<4x8xbf16>
    %c0_138 = arith.constant 0 : index
    %c0_139 = arith.constant 0 : index
    %c0_140 = arith.constant 0 : index
    %c0_141 = arith.constant 0 : index
    %139 = vector.load %arg3[%c0_138, %c0_139, %c0_140, %c0_141] : memref<2x2x4x4xbf16, #tpu.memory_space<vmem>>, vector<1x1x4x4xbf16>
    %140 = vector.shape_cast %139 : vector<1x1x4x4xbf16> to vector<4x4xbf16>
    %cst_142 = arith.constant dense<0.000000e+00> : vector<4x8xf32>
    %141 = tpu.matmul %140, %138, %cst_142 {dimension_numbers = #tpu.dot_dimension_numbers<[1], [0], [0], [1], [0, 0, 1, 1], [], []>} : vector<4x4xbf16>, vector<4x8xbf16>, vector<4x8xf32> -> vector<4x8xf32>
    %c1_143 = arith.constant 1 : index
    %c0_144 = arith.constant 0 : index
    %c0_145 = arith.constant 0 : index
    %142 = vector.load %arg4[%c1_143, %c0_144, %c0_145] : memref<2x16x8xbf16, #tpu.memory_space<vmem>>, vector<1x16x8xbf16>
    %143 = vector.shape_cast %142 : vector<1x16x8xbf16> to vector<16x8xbf16>
    %cst_146 = arith.constant dense<0.000000e+00> : vector<4x8xf32>
    %144 = tpu.matmul %134, %143, %cst_146 {dimension_numbers = #tpu.dot_dimension_numbers<[1], [0], [0], [1], [0, 0, 1, 1], [], []>} : vector<4x16xbf16>, vector<16x8xbf16>, vector<4x8xf32> -> vector<4x8xf32>
    %145 = arith.truncf %144 : vector<4x8xf32> to vector<4x8xbf16>
    %c0_147 = arith.constant 0 : index
    %c1_148 = arith.constant 1 : index
    %c0_149 = arith.constant 0 : index
    %c0_150 = arith.constant 0 : index
    %146 = vector.load %arg3[%c0_147, %c1_148, %c0_149, %c0_150] : memref<2x2x4x4xbf16, #tpu.memory_space<vmem>>, vector<1x1x4x4xbf16>
    %147 = vector.shape_cast %146 : vector<1x1x4x4xbf16> to vector<4x4xbf16>
    %cst_151 = arith.constant dense<0.000000e+00> : vector<4x8xf32>
    %148 = tpu.matmul %147, %145, %cst_151 {dimension_numbers = #tpu.dot_dimension_numbers<[1], [0], [0], [1], [0, 0, 1, 1], [], []>} : vector<4x4xbf16>, vector<4x8xbf16>, vector<4x8xf32> -> vector<4x8xf32>
    %149 = arith.addf %141, %148 : vector<4x8xf32>
    %c0_152 = arith.constant 0 : index
    %c0_153 = arith.constant 0 : index
    %c112 = arith.constant 112 : index
    %150 = vector.load %arg2[%c0_152, %c0_153, %c112] : memref<1x4x256xf32, #tpu.memory_space<vmem>>, vector<1x4x16xf32>
    %151 = vector.shape_cast %150 : vector<1x4x16xf32> to vector<4x16xf32>
    %152 = arith.truncf %151 : vector<4x16xf32> to vector<4x16xbf16>
    %c0_154 = arith.constant 0 : index
    %c0_155 = arith.constant 0 : index
    %c0_156 = arith.constant 0 : index
    %153 = vector.load %arg4[%c0_154, %c0_155, %c0_156] : memref<2x16x8xbf16, #tpu.memory_space<vmem>>, vector<1x16x8xbf16>
    %154 = vector.shape_cast %153 : vector<1x16x8xbf16> to vector<16x8xbf16>
    %cst_157 = arith.constant dense<0.000000e+00> : vector<4x8xf32>
    %155 = tpu.matmul %152, %154, %cst_157 {dimension_numbers = #tpu.dot_dimension_numbers<[1], [0], [0], [1], [0, 0, 1, 1], [], []>} : vector<4x16xbf16>, vector<16x8xbf16>, vector<4x8xf32> -> vector<4x8xf32>
    %156 = arith.truncf %155 : vector<4x8xf32> to vector<4x8xbf16>
    %c1_158 = arith.constant 1 : index
    %c0_159 = arith.constant 0 : index
    %c0_160 = arith.constant 0 : index
    %c0_161 = arith.constant 0 : index
    %157 = vector.load %arg3[%c1_158, %c0_159, %c0_160, %c0_161] : memref<2x2x4x4xbf16, #tpu.memory_space<vmem>>, vector<1x1x4x4xbf16>
    %158 = vector.shape_cast %157 : vector<1x1x4x4xbf16> to vector<4x4xbf16>
    %cst_162 = arith.constant dense<0.000000e+00> : vector<4x8xf32>
    %159 = tpu.matmul %158, %156, %cst_162 {dimension_numbers = #tpu.dot_dimension_numbers<[1], [0], [0], [1], [0, 0, 1, 1], [], []>} : vector<4x4xbf16>, vector<4x8xbf16>, vector<4x8xf32> -> vector<4x8xf32>
    %160 = arith.addf %149, %159 : vector<4x8xf32>
    %c1_163 = arith.constant 1 : index
    %c0_164 = arith.constant 0 : index
    %c0_165 = arith.constant 0 : index
    %161 = vector.load %arg4[%c1_163, %c0_164, %c0_165] : memref<2x16x8xbf16, #tpu.memory_space<vmem>>, vector<1x16x8xbf16>
    %162 = vector.shape_cast %161 : vector<1x16x8xbf16> to vector<16x8xbf16>
    %cst_166 = arith.constant dense<0.000000e+00> : vector<4x8xf32>
    %163 = tpu.matmul %152, %162, %cst_166 {dimension_numbers = #tpu.dot_dimension_numbers<[1], [0], [0], [1], [0, 0, 1, 1], [], []>} : vector<4x16xbf16>, vector<16x8xbf16>, vector<4x8xf32> -> vector<4x8xf32>
    %164 = arith.truncf %163 : vector<4x8xf32> to vector<4x8xbf16>
    %c1_167 = arith.constant 1 : index
    %c1_168 = arith.constant 1 : index
    %c0_169 = arith.constant 0 : index
    %c0_170 = arith.constant 0 : index
    %165 = vector.load %arg3[%c1_167, %c1_168, %c0_169, %c0_170] : memref<2x2x4x4xbf16, #tpu.memory_space<vmem>>, vector<1x1x4x4xbf16>
    %166 = vector.shape_cast %165 : vector<1x1x4x4xbf16> to vector<4x4xbf16>
    %cst_171 = arith.constant dense<0.000000e+00> : vector<4x8xf32>
    %167 = tpu.matmul %166, %164, %cst_171 {dimension_numbers = #tpu.dot_dimension_numbers<[1], [0], [0], [1], [0, 0, 1, 1], [], []>} : vector<4x4xbf16>, vector<4x8xbf16>, vector<4x8xf32> -> vector<4x8xf32>
    %168 = arith.addf %160, %167 : vector<4x8xf32>
    %c0_172 = arith.constant 0 : index
    %c0_173 = arith.constant 0 : index
    %169 = vector.load %arg5[%c0_172, %c0_173] : memref<4x1xf32, #tpu.memory_space<vmem>>, vector<4x1xf32>
    %170 = vector.broadcast %169 : vector<4x1xf32> to vector<4x8xf32>
    %171 = arith.addf %168, %170 : vector<4x8xf32>
    %172 = arith.truncf %171 : vector<4x8xf32> to vector<4x8xbf16>
    %c0_174 = arith.constant 0 : index
    %c0_175 = arith.constant 0 : index
    %c24 = arith.constant 24 : index
    %173 = vector.load %arg6[%c0_174, %c0_175, %c24] : memref<1x4x64xbf16, #tpu.memory_space<vmem>>, vector<1x4x8xbf16>
    %174 = vector.shape_cast %173 : vector<1x4x8xbf16> to vector<4x8xbf16>
    %175 = vector.shape_cast %172 : vector<4x8xbf16> to vector<1x4x8xbf16>
    tpu.vector_store %arg6[%c0_174, %c0_175, %c24], %175 {strides = array<i32>} : memref<1x4x64xbf16, #tpu.memory_space<vmem>>, vector<1x4x8xbf16>,
    %c0_176 = arith.constant 0 : index
    %c0_177 = arith.constant 0 : index
    %c128 = arith.constant 128 : index
    %176 = vector.load %arg2[%c0_176, %c0_177, %c128] : memref<1x4x256xf32, #tpu.memory_space<vmem>>, vector<1x4x16xf32>
    %177 = vector.shape_cast %176 : vector<1x4x16xf32> to vector<4x16xf32>
    %178 = arith.truncf %177 : vector<4x16xf32> to vector<4x16xbf16>
    %c0_178 = arith.constant 0 : index
    %c0_179 = arith.constant 0 : index
    %c0_180 = arith.constant 0 : index
    %179 = vector.load %arg4[%c0_178, %c0_179, %c0_180] : memref<2x16x8xbf16, #tpu.memory_space<vmem>>, vector<1x16x8xbf16>
    %180 = vector.shape_cast %179 : vector<1x16x8xbf16> to vector<16x8xbf16>
    %cst_181 = arith.constant dense<0.000000e+00> : vector<4x8xf32>
    %181 = tpu.matmul %178, %180, %cst_181 {dimension_numbers = #tpu.dot_dimension_numbers<[1], [0], [0], [1], [0, 0, 1, 1], [], []>} : vector<4x16xbf16>, vector<16x8xbf16>, vector<4x8xf32> -> vector<4x8xf32>
    %182 = arith.truncf %181 : vector<4x8xf32> to vector<4x8xbf16>
    %c0_182 = arith.constant 0 : index
    %c0_183 = arith.constant 0 : index
    %c0_184 = arith.constant 0 : index
    %c0_185 = arith.constant 0 : index
    %183 = vector.load %arg3[%c0_182, %c0_183, %c0_184, %c0_185] : memref<2x2x4x4xbf16, #tpu.memory_space<vmem>>, vector<1x1x4x4xbf16>
    %184 = vector.shape_cast %183 : vector<1x1x4x4xbf16> to vector<4x4xbf16>
    %cst_186 = arith.constant dense<0.000000e+00> : vector<4x8xf32>
    %185 = tpu.matmul %184, %182, %cst_186 {dimension_numbers = #tpu.dot_dimension_numbers<[1], [0], [0], [1], [0, 0, 1, 1], [], []>} : vector<4x4xbf16>, vector<4x8xbf16>, vector<4x8xf32> -> vector<4x8xf32>
    %c1_187 = arith.constant 1 : index
    %c0_188 = arith.constant 0 : index
    %c0_189 = arith.constant 0 : index
    %186 = vector.load %arg4[%c1_187, %c0_188, %c0_189] : memref<2x16x8xbf16, #tpu.memory_space<vmem>>, vector<1x16x8xbf16>
    %187 = vector.shape_cast %186 : vector<1x16x8xbf16> to vector<16x8xbf16>
    %cst_190 = arith.constant dense<0.000000e+00> : vector<4x8xf32>
    %188 = tpu.matmul %178, %187, %cst_190 {dimension_numbers = #tpu.dot_dimension_numbers<[1], [0], [0], [1], [0, 0, 1, 1], [], []>} : vector<4x16xbf16>, vector<16x8xbf16>, vector<4x8xf32> -> vector<4x8xf32>
    %189 = arith.truncf %188 : vector<4x8xf32> to vector<4x8xbf16>
    %c0_191 = arith.constant 0 : index
    %c1_192 = arith.constant 1 : index
    %c0_193 = arith.constant 0 : index
    %c0_194 = arith.constant 0 : index
    %190 = vector.load %arg3[%c0_191, %c1_192, %c0_193, %c0_194] : memref<2x2x4x4xbf16, #tpu.memory_space<vmem>>, vector<1x1x4x4xbf16>
    %191 = vector.shape_cast %190 : vector<1x1x4x4xbf16> to vector<4x4xbf16>
    %cst_195 = arith.constant dense<0.000000e+00> : vector<4x8xf32>
    %192 = tpu.matmul %191, %189, %cst_195 {dimension_numbers = #tpu.dot_dimension_numbers<[1], [0], [0], [1], [0, 0, 1, 1], [], []>} : vector<4x4xbf16>, vector<4x8xbf16>, vector<4x8xf32> -> vector<4x8xf32>
    %193 = arith.addf %185, %192 : vector<4x8xf32>
    %c0_196 = arith.constant 0 : index
    %c0_197 = arith.constant 0 : index
    %c144 = arith.constant 144 : index
    %194 = vector.load %arg2[%c0_196, %c0_197, %c144] : memref<1x4x256xf32, #tpu.memory_space<vmem>>, vector<1x4x16xf32>
    %195 = vector.shape_cast %194 : vector<1x4x16xf32> to vector<4x16xf32>
    %196 = arith.truncf %195 : vector<4x16xf32> to vector<4x16xbf16>
    %c0_198 = arith.constant 0 : index
    %c0_199 = arith.constant 0 : index
    %c0_200 = arith.constant 0 : index
    %197 = vector.load %arg4[%c0_198, %c0_199, %c0_200] : memref<2x16x8xbf16, #tpu.memory_space<vmem>>, vector<1x16x8xbf16>
    %198 = vector.shape_cast %197 : vector<1x16x8xbf16> to vector<16x8xbf16>
    %cst_201 = arith.constant dense<0.000000e+00> : vector<4x8xf32>
    %199 = tpu.matmul %196, %198, %cst_201 {dimension_numbers = #tpu.dot_dimension_numbers<[1], [0], [0], [1], [0, 0, 1, 1], [], []>} : vector<4x16xbf16>, vector<16x8xbf16>, vector<4x8xf32> -> vector<4x8xf32>
    %200 = arith.truncf %199 : vector<4x8xf32> to vector<4x8xbf16>
    %c1_202 = arith.constant 1 : index
    %c0_203 = arith.constant 0 : index
    %c0_204 = arith.constant 0 : index
    %c0_205 = arith.constant 0 : index
    %201 = vector.load %arg3[%c1_202, %c0_203, %c0_204, %c0_205] : memref<2x2x4x4xbf16, #tpu.memory_space<vmem>>, vector<1x1x4x4xbf16>
    %202 = vector.shape_cast %201 : vector<1x1x4x4xbf16> to vector<4x4xbf16>
    %cst_206 = arith.constant dense<0.000000e+00> : vector<4x8xf32>
    %203 = tpu.matmul %202, %200, %cst_206 {dimension_numbers = #tpu.dot_dimension_numbers<[1], [0], [0], [1], [0, 0, 1, 1], [], []>} : vector<4x4xbf16>, vector<4x8xbf16>, vector<4x8xf32> -> vector<4x8xf32>
    %204 = arith.addf %193, %203 : vector<4x8xf32>
    %c1_207 = arith.constant 1 : index
    %c0_208 = arith.constant 0 : index
    %c0_209 = arith.constant 0 : index
    %205 = vector.load %arg4[%c1_207, %c0_208, %c0_209] : memref<2x16x8xbf16, #tpu.memory_space<vmem>>, vector<1x16x8xbf16>
    %206 = vector.shape_cast %205 : vector<1x16x8xbf16> to vector<16x8xbf16>
    %cst_210 = arith.constant dense<0.000000e+00> : vector<4x8xf32>
    %207 = tpu.matmul %196, %206, %cst_210 {dimension_numbers = #tpu.dot_dimension_numbers<[1], [0], [0], [1], [0, 0, 1, 1], [], []>} : vector<4x16xbf16>, vector<16x8xbf16>, vector<4x8xf32> -> vector<4x8xf32>
    %208 = arith.truncf %207 : vector<4x8xf32> to vector<4x8xbf16>
    %c1_211 = arith.constant 1 : index
    %c1_212 = arith.constant 1 : index
    %c0_213 = arith.constant 0 : index
    %c0_214 = arith.constant 0 : index
    %209 = vector.load %arg3[%c1_211, %c1_212, %c0_213, %c0_214] : memref<2x2x4x4xbf16, #tpu.memory_space<vmem>>, vector<1x1x4x4xbf16>
    %210 = vector.shape_cast %209 : vector<1x1x4x4xbf16> to vector<4x4xbf16>
    %cst_215 = arith.constant dense<0.000000e+00> : vector<4x8xf32>
    %211 = tpu.matmul %210, %208, %cst_215 {dimension_numbers = #tpu.dot_dimension_numbers<[1], [0], [0], [1], [0, 0, 1, 1], [], []>} : vector<4x4xbf16>, vector<4x8xbf16>, vector<4x8xf32> -> vector<4x8xf32>
    %212 = arith.addf %204, %211 : vector<4x8xf32>
    %c0_216 = arith.constant 0 : index
    %c0_217 = arith.constant 0 : index
    %213 = vector.load %arg5[%c0_216, %c0_217] : memref<4x1xf32, #tpu.memory_space<vmem>>, vector<4x1xf32>
    %214 = vector.broadcast %213 : vector<4x1xf32> to vector<4x8xf32>
    %215 = arith.addf %212, %214 : vector<4x8xf32>
    %216 = arith.truncf %215 : vector<4x8xf32> to vector<4x8xbf16>
    %c0_218 = arith.constant 0 : index
    %c0_219 = arith.constant 0 : index
    %c32_220 = arith.constant 32 : index
    %217 = vector.load %arg6[%c0_218, %c0_219, %c32_220] : memref<1x4x64xbf16, #tpu.memory_space<vmem>>, vector<1x4x8xbf16>
    %218 = vector.shape_cast %217 : vector<1x4x8xbf16> to vector<4x8xbf16>
    %219 = vector.shape_cast %216 : vector<4x8xbf16> to vector<1x4x8xbf16>
    tpu.vector_store %arg6[%c0_218, %c0_219, %c32_220], %219 {strides = array<i32>} : memref<1x4x64xbf16, #tpu.memory_space<vmem>>, vector<1x4x8xbf16>,
    %c0_221 = arith.constant 0 : index
    %c0_222 = arith.constant 0 : index
    %c160 = arith.constant 160 : index
    %220 = vector.load %arg2[%c0_221, %c0_222, %c160] : memref<1x4x256xf32, #tpu.memory_space<vmem>>, vector<1x4x16xf32>
    %221 = vector.shape_cast %220 : vector<1x4x16xf32> to vector<4x16xf32>
    %222 = arith.truncf %221 : vector<4x16xf32> to vector<4x16xbf16>
    %c0_223 = arith.constant 0 : index
    %c0_224 = arith.constant 0 : index
    %c0_225 = arith.constant 0 : index
    %223 = vector.load %arg4[%c0_223, %c0_224, %c0_225] : memref<2x16x8xbf16, #tpu.memory_space<vmem>>, vector<1x16x8xbf16>
    %224 = vector.shape_cast %223 : vector<1x16x8xbf16> to vector<16x8xbf16>
    %cst_226 = arith.constant dense<0.000000e+00> : vector<4x8xf32>
    %225 = tpu.matmul %222, %224, %cst_226 {dimension_numbers = #tpu.dot_dimension_numbers<[1], [0], [0], [1], [0, 0, 1, 1], [], []>} : vector<4x16xbf16>, vector<16x8xbf16>, vector<4x8xf32> -> vector<4x8xf32>
    %226 = arith.truncf %225 : vector<4x8xf32> to vector<4x8xbf16>
    %c0_227 = arith.constant 0 : index
    %c0_228 = arith.constant 0 : index
    %c0_229 = arith.constant 0 : index
    %c0_230 = arith.constant 0 : index
    %227 = vector.load %arg3[%c0_227, %c0_228, %c0_229, %c0_230] : memref<2x2x4x4xbf16, #tpu.memory_space<vmem>>, vector<1x1x4x4xbf16>
    %228 = vector.shape_cast %227 : vector<1x1x4x4xbf16> to vector<4x4xbf16>
    %cst_231 = arith.constant dense<0.000000e+00> : vector<4x8xf32>
    %229 = tpu.matmul %228, %226, %cst_231 {dimension_numbers = #tpu.dot_dimension_numbers<[1], [0], [0], [1], [0, 0, 1, 1], [], []>} : vector<4x4xbf16>, vector<4x8xbf16>, vector<4x8xf32> -> vector<4x8xf32>
    %c1_232 = arith.constant 1 : index
    %c0_233 = arith.constant 0 : index
    %c0_234 = arith.constant 0 : index
    %230 = vector.load %arg4[%c1_232, %c0_233, %c0_234] : memref<2x16x8xbf16, #tpu.memory_space<vmem>>, vector<1x16x8xbf16>
    %231 = vector.shape_cast %230 : vector<1x16x8xbf16> to vector<16x8xbf16>
    %cst_235 = arith.constant dense<0.000000e+00> : vector<4x8xf32>
    %232 = tpu.matmul %222, %231, %cst_235 {dimension_numbers = #tpu.dot_dimension_numbers<[1], [0], [0], [1], [0, 0, 1, 1], [], []>} : vector<4x16xbf16>, vector<16x8xbf16>, vector<4x8xf32> -> vector<4x8xf32>
    %233 = arith.truncf %232 : vector<4x8xf32> to vector<4x8xbf16>
    %c0_236 = arith.constant 0 : index
    %c1_237 = arith.constant 1 : index
    %c0_238 = arith.constant 0 : index
    %c0_239 = arith.constant 0 : index
    %234 = vector.load %arg3[%c0_236, %c1_237, %c0_238, %c0_239] : memref<2x2x4x4xbf16, #tpu.memory_space<vmem>>, vector<1x1x4x4xbf16>
    %235 = vector.shape_cast %234 : vector<1x1x4x4xbf16> to vector<4x4xbf16>
    %cst_240 = arith.constant dense<0.000000e+00> : vector<4x8xf32>
    %236 = tpu.matmul %235, %233, %cst_240 {dimension_numbers = #tpu.dot_dimension_numbers<[1], [0], [0], [1], [0, 0, 1, 1], [], []>} : vector<4x4xbf16>, vector<4x8xbf16>, vector<4x8xf32> -> vector<4x8xf32>
    %237 = arith.addf %229, %236 : vector<4x8xf32>
    %c0_241 = arith.constant 0 : index
    %c0_242 = arith.constant 0 : index
    %c176 = arith.constant 176 : index
    %238 = vector.load %arg2[%c0_241, %c0_242, %c176] : memref<1x4x256xf32, #tpu.memory_space<vmem>>, vector<1x4x16xf32>
    %239 = vector.shape_cast %238 : vector<1x4x16xf32> to vector<4x16xf32>
    %240 = arith.truncf %239 : vector<4x16xf32> to vector<4x16xbf16>
    %c0_243 = arith.constant 0 : index
    %c0_244 = arith.constant 0 : index
    %c0_245 = arith.constant 0 : index
    %241 = vector.load %arg4[%c0_243, %c0_244, %c0_245] : memref<2x16x8xbf16, #tpu.memory_space<vmem>>, vector<1x16x8xbf16>
    %242 = vector.shape_cast %241 : vector<1x16x8xbf16> to vector<16x8xbf16>
    %cst_246 = arith.constant dense<0.000000e+00> : vector<4x8xf32>
    %243 = tpu.matmul %240, %242, %cst_246 {dimension_numbers = #tpu.dot_dimension_numbers<[1], [0], [0], [1], [0, 0, 1, 1], [], []>} : vector<4x16xbf16>, vector<16x8xbf16>, vector<4x8xf32> -> vector<4x8xf32>
    %244 = arith.truncf %243 : vector<4x8xf32> to vector<4x8xbf16>
    %c1_247 = arith.constant 1 : index
    %c0_248 = arith.constant 0 : index
    %c0_249 = arith.constant 0 : index
    %c0_250 = arith.constant 0 : index
    %245 = vector.load %arg3[%c1_247, %c0_248, %c0_249, %c0_250] : memref<2x2x4x4xbf16, #tpu.memory_space<vmem>>, vector<1x1x4x4xbf16>
    %246 = vector.shape_cast %245 : vector<1x1x4x4xbf16> to vector<4x4xbf16>
    %cst_251 = arith.constant dense<0.000000e+00> : vector<4x8xf32>
    %247 = tpu.matmul %246, %244, %cst_251 {dimension_numbers = #tpu.dot_dimension_numbers<[1], [0], [0], [1], [0, 0, 1, 1], [], []>} : vector<4x4xbf16>, vector<4x8xbf16>, vector<4x8xf32> -> vector<4x8xf32>
    %248 = arith.addf %237, %247 : vector<4x8xf32>
    %c1_252 = arith.constant 1 : index
    %c0_253 = arith.constant 0 : index
    %c0_254 = arith.constant 0 : index
    %249 = vector.load %arg4[%c1_252, %c0_253, %c0_254] : memref<2x16x8xbf16, #tpu.memory_space<vmem>>, vector<1x16x8xbf16>
    %250 = vector.shape_cast %249 : vector<1x16x8xbf16> to vector<16x8xbf16>
    %cst_255 = arith.constant dense<0.000000e+00> : vector<4x8xf32>
    %251 = tpu.matmul %240, %250, %cst_255 {dimension_numbers = #tpu.dot_dimension_numbers<[1], [0], [0], [1], [0, 0, 1, 1], [], []>} : vector<4x16xbf16>, vector<16x8xbf16>, vector<4x8xf32> -> vector<4x8xf32>
    %252 = arith.truncf %251 : vector<4x8xf32> to vector<4x8xbf16>
    %c1_256 = arith.constant 1 : index
    %c1_257 = arith.constant 1 : index
    %c0_258 = arith.constant 0 : index
    %c0_259 = arith.constant 0 : index
    %253 = vector.load %arg3[%c1_256, %c1_257, %c0_258, %c0_259] : memref<2x2x4x4xbf16, #tpu.memory_space<vmem>>, vector<1x1x4x4xbf16>
    %254 = vector.shape_cast %253 : vector<1x1x4x4xbf16> to vector<4x4xbf16>
    %cst_260 = arith.constant dense<0.000000e+00> : vector<4x8xf32>
    %255 = tpu.matmul %254, %252, %cst_260 {dimension_numbers = #tpu.dot_dimension_numbers<[1], [0], [0], [1], [0, 0, 1, 1], [], []>} : vector<4x4xbf16>, vector<4x8xbf16>, vector<4x8xf32> -> vector<4x8xf32>
    %256 = arith.addf %248, %255 : vector<4x8xf32>
    %c0_261 = arith.constant 0 : index
    %c0_262 = arith.constant 0 : index
    %257 = vector.load %arg5[%c0_261, %c0_262] : memref<4x1xf32, #tpu.memory_space<vmem>>, vector<4x1xf32>
    %258 = vector.broadcast %257 : vector<4x1xf32> to vector<4x8xf32>
    %259 = arith.addf %256, %258 : vector<4x8xf32>
    %260 = arith.truncf %259 : vector<4x8xf32> to vector<4x8xbf16>
    %c0_263 = arith.constant 0 : index
    %c0_264 = arith.constant 0 : index
    %c40 = arith.constant 40 : index
    %261 = vector.load %arg6[%c0_263, %c0_264, %c40] : memref<1x4x64xbf16, #tpu.memory_space<vmem>>, vector<1x4x8xbf16>
    %262 = vector.shape_cast %261 : vector<1x4x8xbf16> to vector<4x8xbf16>
    %263 = vector.shape_cast %260 : vector<4x8xbf16> to vector<1x4x8xbf16>
    tpu.vector_store %arg6[%c0_263, %c0_264, %c40], %263 {strides = array<i32>} : memref<1x4x64xbf16, #tpu.memory_space<vmem>>, vector<1x4x8xbf16>,
    %c0_265 = arith.constant 0 : index
    %c0_266 = arith.constant 0 : index
    %c192 = arith.constant 192 : index
    %264 = vector.load %arg2[%c0_265, %c0_266, %c192] : memref<1x4x256xf32, #tpu.memory_space<vmem>>, vector<1x4x16xf32>
    %265 = vector.shape_cast %264 : vector<1x4x16xf32> to vector<4x16xf32>
    %266 = arith.truncf %265 : vector<4x16xf32> to vector<4x16xbf16>
    %c0_267 = arith.constant 0 : index
    %c0_268 = arith.constant 0 : index
    %c0_269 = arith.constant 0 : index
    %267 = vector.load %arg4[%c0_267, %c0_268, %c0_269] : memref<2x16x8xbf16, #tpu.memory_space<vmem>>, vector<1x16x8xbf16>
    %268 = vector.shape_cast %267 : vector<1x16x8xbf16> to vector<16x8xbf16>
    %cst_270 = arith.constant dense<0.000000e+00> : vector<4x8xf32>
    %269 = tpu.matmul %266, %268, %cst_270 {dimension_numbers = #tpu.dot_dimension_numbers<[1], [0], [0], [1], [0, 0, 1, 1], [], []>} : vector<4x16xbf16>, vector<16x8xbf16>, vector<4x8xf32> -> vector<4x8xf32>
    %270 = arith.truncf %269 : vector<4x8xf32> to vector<4x8xbf16>
    %c0_271 = arith.constant 0 : index
    %c0_272 = arith.constant 0 : index
    %c0_273 = arith.constant 0 : index
    %c0_274 = arith.constant 0 : index
    %271 = vector.load %arg3[%c0_271, %c0_272, %c0_273, %c0_274] : memref<2x2x4x4xbf16, #tpu.memory_space<vmem>>, vector<1x1x4x4xbf16>
    %272 = vector.shape_cast %271 : vector<1x1x4x4xbf16> to vector<4x4xbf16>
    %cst_275 = arith.constant dense<0.000000e+00> : vector<4x8xf32>
    %273 = tpu.matmul %272, %270, %cst_275 {dimension_numbers = #tpu.dot_dimension_numbers<[1], [0], [0], [1], [0, 0, 1, 1], [], []>} : vector<4x4xbf16>, vector<4x8xbf16>, vector<4x8xf32> -> vector<4x8xf32>
    %c1_276 = arith.constant 1 : index
    %c0_277 = arith.constant 0 : index
    %c0_278 = arith.constant 0 : index
    %274 = vector.load %arg4[%c1_276, %c0_277, %c0_278] : memref<2x16x8xbf16, #tpu.memory_space<vmem>>, vector<1x16x8xbf16>
    %275 = vector.shape_cast %274 : vector<1x16x8xbf16> to vector<16x8xbf16>
    %cst_279 = arith.constant dense<0.000000e+00> : vector<4x8xf32>
    %276 = tpu.matmul %266, %275, %cst_279 {dimension_numbers = #tpu.dot_dimension_numbers<[1], [0], [0], [1], [0, 0, 1, 1], [], []>} : vector<4x16xbf16>, vector<16x8xbf16>, vector<4x8xf32> -> vector<4x8xf32>
    %277 = arith.truncf %276 : vector<4x8xf32> to vector<4x8xbf16>
    %c0_280 = arith.constant 0 : index
    %c1_281 = arith.constant 1 : index
    %c0_282 = arith.constant 0 : index
    %c0_283 = arith.constant 0 : index
    %278 = vector.load %arg3[%c0_280, %c1_281, %c0_282, %c0_283] : memref<2x2x4x4xbf16, #tpu.memory_space<vmem>>, vector<1x1x4x4xbf16>
    %279 = vector.shape_cast %278 : vector<1x1x4x4xbf16> to vector<4x4xbf16>
    %cst_284 = arith.constant dense<0.000000e+00> : vector<4x8xf32>
    %280 = tpu.matmul %279, %277, %cst_284 {dimension_numbers = #tpu.dot_dimension_numbers<[1], [0], [0], [1], [0, 0, 1, 1], [], []>} : vector<4x4xbf16>, vector<4x8xbf16>, vector<4x8xf32> -> vector<4x8xf32>
    %281 = arith.addf %273, %280 : vector<4x8xf32>
    %c0_285 = arith.constant 0 : index
    %c0_286 = arith.constant 0 : index
    %c208 = arith.constant 208 : index
    %282 = vector.load %arg2[%c0_285, %c0_286, %c208] : memref<1x4x256xf32, #tpu.memory_space<vmem>>, vector<1x4x16xf32>
    %283 = vector.shape_cast %282 : vector<1x4x16xf32> to vector<4x16xf32>
    %284 = arith.truncf %283 : vector<4x16xf32> to vector<4x16xbf16>
    %c0_287 = arith.constant 0 : index
    %c0_288 = arith.constant 0 : index
    %c0_289 = arith.constant 0 : index
    %285 = vector.load %arg4[%c0_287, %c0_288, %c0_289] : memref<2x16x8xbf16, #tpu.memory_space<vmem>>, vector<1x16x8xbf16>
    %286 = vector.shape_cast %285 : vector<1x16x8xbf16> to vector<16x8xbf16>
    %cst_290 = arith.constant dense<0.000000e+00> : vector<4x8xf32>
    %287 = tpu.matmul %284, %286, %cst_290 {dimension_numbers = #tpu.dot_dimension_numbers<[1], [0], [0], [1], [0, 0, 1, 1], [], []>} : vector<4x16xbf16>, vector<16x8xbf16>, vector<4x8xf32> -> vector<4x8xf32>
    %288 = arith.truncf %287 : vector<4x8xf32> to vector<4x8xbf16>
    %c1_291 = arith.constant 1 : index
    %c0_292 = arith.constant 0 : index
    %c0_293 = arith.constant 0 : index
    %c0_294 = arith.constant 0 : index
    %289 = vector.load %arg3[%c1_291, %c0_292, %c0_293, %c0_294] : memref<2x2x4x4xbf16, #tpu.memory_space<vmem>>, vector<1x1x4x4xbf16>
    %290 = vector.shape_cast %289 : vector<1x1x4x4xbf16> to vector<4x4xbf16>
    %cst_295 = arith.constant dense<0.000000e+00> : vector<4x8xf32>
    %291 = tpu.matmul %290, %288, %cst_295 {dimension_numbers = #tpu.dot_dimension_numbers<[1], [0], [0], [1], [0, 0, 1, 1], [], []>} : vector<4x4xbf16>, vector<4x8xbf16>, vector<4x8xf32> -> vector<4x8xf32>
    %292 = arith.addf %281, %291 : vector<4x8xf32>
    %c1_296 = arith.constant 1 : index
    %c0_297 = arith.constant 0 : index
    %c0_298 = arith.constant 0 : index
    %293 = vector.load %arg4[%c1_296, %c0_297, %c0_298] : memref<2x16x8xbf16, #tpu.memory_space<vmem>>, vector<1x16x8xbf16>
    %294 = vector.shape_cast %293 : vector<1x16x8xbf16> to vector<16x8xbf16>
    %cst_299 = arith.constant dense<0.000000e+00> : vector<4x8xf32>
    %295 = tpu.matmul %284, %294, %cst_299 {dimension_numbers = #tpu.dot_dimension_numbers<[1], [0], [0], [1], [0, 0, 1, 1], [], []>} : vector<4x16xbf16>, vector<16x8xbf16>, vector<4x8xf32> -> vector<4x8xf32>
    %296 = arith.truncf %295 : vector<4x8xf32> to vector<4x8xbf16>
    %c1_300 = arith.constant 1 : index
    %c1_301 = arith.constant 1 : index
    %c0_302 = arith.constant 0 : index
    %c0_303 = arith.constant 0 : index
    %297 = vector.load %arg3[%c1_300, %c1_301, %c0_302, %c0_303] : memref<2x2x4x4xbf16, #tpu.memory_space<vmem>>, vector<1x1x4x4xbf16>
    %298 = vector.shape_cast %297 : vector<1x1x4x4xbf16> to vector<4x4xbf16>
    %cst_304 = arith.constant dense<0.000000e+00> : vector<4x8xf32>
    %299 = tpu.matmul %298, %296, %cst_304 {dimension_numbers = #tpu.dot_dimension_numbers<[1], [0], [0], [1], [0, 0, 1, 1], [], []>} : vector<4x4xbf16>, vector<4x8xbf16>, vector<4x8xf32> -> vector<4x8xf32>
    %300 = arith.addf %292, %299 : vector<4x8xf32>
    %c0_305 = arith.constant 0 : index
    %c0_306 = arith.constant 0 : index
    %301 = vector.load %arg5[%c0_305, %c0_306] : memref<4x1xf32, #tpu.memory_space<vmem>>, vector<4x1xf32>
    %302 = vector.broadcast %301 : vector<4x1xf32> to vector<4x8xf32>
    %303 = arith.addf %300, %302 : vector<4x8xf32>
    %304 = arith.truncf %303 : vector<4x8xf32> to vector<4x8xbf16>
    %c0_307 = arith.constant 0 : index
    %c0_308 = arith.constant 0 : index
    %c48_309 = arith.constant 48 : index
    %305 = vector.load %arg6[%c0_307, %c0_308, %c48_309] : memref<1x4x64xbf16, #tpu.memory_space<vmem>>, vector<1x4x8xbf16>
    %306 = vector.shape_cast %305 : vector<1x4x8xbf16> to vector<4x8xbf16>
    %307 = vector.shape_cast %304 : vector<4x8xbf16> to vector<1x4x8xbf16>
    tpu.vector_store %arg6[%c0_307, %c0_308, %c48_309], %307 {strides = array<i32>} : memref<1x4x64xbf16, #tpu.memory_space<vmem>>, vector<1x4x8xbf16>,
    %c0_310 = arith.constant 0 : index
    %c0_311 = arith.constant 0 : index
    %c224 = arith.constant 224 : index
    %308 = vector.load %arg2[%c0_310, %c0_311, %c224] : memref<1x4x256xf32, #tpu.memory_space<vmem>>, vector<1x4x16xf32>
    %309 = vector.shape_cast %308 : vector<1x4x16xf32> to vector<4x16xf32>
    %310 = arith.truncf %309 : vector<4x16xf32> to vector<4x16xbf16>
    %c0_312 = arith.constant 0 : index
    %c0_313 = arith.constant 0 : index
    %c0_314 = arith.constant 0 : index
    %311 = vector.load %arg4[%c0_312, %c0_313, %c0_314] : memref<2x16x8xbf16, #tpu.memory_space<vmem>>, vector<1x16x8xbf16>
    %312 = vector.shape_cast %311 : vector<1x16x8xbf16> to vector<16x8xbf16>
    %cst_315 = arith.constant dense<0.000000e+00> : vector<4x8xf32>
    %313 = tpu.matmul %310, %312, %cst_315 {dimension_numbers = #tpu.dot_dimension_numbers<[1], [0], [0], [1], [0, 0, 1, 1], [], []>} : vector<4x16xbf16>, vector<16x8xbf16>, vector<4x8xf32> -> vector<4x8xf32>
    %314 = arith.truncf %313 : vector<4x8xf32> to vector<4x8xbf16>
    %c0_316 = arith.constant 0 : index
    %c0_317 = arith.constant 0 : index
    %c0_318 = arith.constant 0 : index
    %c0_319 = arith.constant 0 : index
    %315 = vector.load %arg3[%c0_316, %c0_317, %c0_318, %c0_319] : memref<2x2x4x4xbf16, #tpu.memory_space<vmem>>, vector<1x1x4x4xbf16>
    %316 = vector.shape_cast %315 : vector<1x1x4x4xbf16> to vector<4x4xbf16>
    %cst_320 = arith.constant dense<0.000000e+00> : vector<4x8xf32>
    %317 = tpu.matmul %316, %314, %cst_320 {dimension_numbers = #tpu.dot_dimension_numbers<[1], [0], [0], [1], [0, 0, 1, 1], [], []>} : vector<4x4xbf16>, vector<4x8xbf16>, vector<4x8xf32> -> vector<4x8xf32>
    %c1_321 = arith.constant 1 : index
    %c0_322 = arith.constant 0 : index
    %c0_323 = arith.constant 0 : index
    %318 = vector.load %arg4[%c1_321, %c0_322, %c0_323] : memref<2x16x8xbf16, #tpu.memory_space<vmem>>, vector<1x16x8xbf16>
    %319 = vector.shape_cast %318 : vector<1x16x8xbf16> to vector<16x8xbf16>
    %cst_324 = arith.constant dense<0.000000e+00> : vector<4x8xf32>
    %320 = tpu.matmul %310, %319, %cst_324 {dimension_numbers = #tpu.dot_dimension_numbers<[1], [0], [0], [1], [0, 0, 1, 1], [], []>} : vector<4x16xbf16>, vector<16x8xbf16>, vector<4x8xf32> -> vector<4x8xf32>
    %321 = arith.truncf %320 : vector<4x8xf32> to vector<4x8xbf16>
    %c0_325 = arith.constant 0 : index
    %c1_326 = arith.constant 1 : index
    %c0_327 = arith.constant 0 : index
    %c0_328 = arith.constant 0 : index
    %322 = vector.load %arg3[%c0_325, %c1_326, %c0_327, %c0_328] : memref<2x2x4x4xbf16, #tpu.memory_space<vmem>>, vector<1x1x4x4xbf16>
    %323 = vector.shape_cast %322 : vector<1x1x4x4xbf16> to vector<4x4xbf16>
    %cst_329 = arith.constant dense<0.000000e+00> : vector<4x8xf32>
    %324 = tpu.matmul %323, %321, %cst_329 {dimension_numbers = #tpu.dot_dimension_numbers<[1], [0], [0], [1], [0, 0, 1, 1], [], []>} : vector<4x4xbf16>, vector<4x8xbf16>, vector<4x8xf32> -> vector<4x8xf32>
    %325 = arith.addf %317, %324 : vector<4x8xf32>
    %c0_330 = arith.constant 0 : index
    %c0_331 = arith.constant 0 : index
    %c240 = arith.constant 240 : index
    %326 = vector.load %arg2[%c0_330, %c0_331, %c240] : memref<1x4x256xf32, #tpu.memory_space<vmem>>, vector<1x4x16xf32>
    %327 = vector.shape_cast %326 : vector<1x4x16xf32> to vector<4x16xf32>
    %328 = arith.truncf %327 : vector<4x16xf32> to vector<4x16xbf16>
    %c0_332 = arith.constant 0 : index
    %c0_333 = arith.constant 0 : index
    %c0_334 = arith.constant 0 : index
    %329 = vector.load %arg4[%c0_332, %c0_333, %c0_334] : memref<2x16x8xbf16, #tpu.memory_space<vmem>>, vector<1x16x8xbf16>
    %330 = vector.shape_cast %329 : vector<1x16x8xbf16> to vector<16x8xbf16>
    %cst_335 = arith.constant dense<0.000000e+00> : vector<4x8xf32>
    %331 = tpu.matmul %328, %330, %cst_335 {dimension_numbers = #tpu.dot_dimension_numbers<[1], [0], [0], [1], [0, 0, 1, 1], [], []>} : vector<4x16xbf16>, vector<16x8xbf16>, vector<4x8xf32> -> vector<4x8xf32>
    %332 = arith.truncf %331 : vector<4x8xf32> to vector<4x8xbf16>
    %c1_336 = arith.constant 1 : index
    %c0_337 = arith.constant 0 : index
    %c0_338 = arith.constant 0 : index
    %c0_339 = arith.constant 0 : index
    %333 = vector.load %arg3[%c1_336, %c0_337, %c0_338, %c0_339] : memref<2x2x4x4xbf16, #tpu.memory_space<vmem>>, vector<1x1x4x4xbf16>
    %334 = vector.shape_cast %333 : vector<1x1x4x4xbf16> to vector<4x4xbf16>
    %cst_340 = arith.constant dense<0.000000e+00> : vector<4x8xf32>
    %335 = tpu.matmul %334, %332, %cst_340 {dimension_numbers = #tpu.dot_dimension_numbers<[1], [0], [0], [1], [0, 0, 1, 1], [], []>} : vector<4x4xbf16>, vector<4x8xbf16>, vector<4x8xf32> -> vector<4x8xf32>
    %336 = arith.addf %325, %335 : vector<4x8xf32>
    %c1_341 = arith.constant 1 : index
    %c0_342 = arith.constant 0 : index
    %c0_343 = arith.constant 0 : index
    %337 = vector.load %arg4[%c1_341, %c0_342, %c0_343] : memref<2x16x8xbf16, #tpu.memory_space<vmem>>, vector<1x16x8xbf16>
    %338 = vector.shape_cast %337 : vector<1x16x8xbf16> to vector<16x8xbf16>
    %cst_344 = arith.constant dense<0.000000e+00> : vector<4x8xf32>
    %339 = tpu.matmul %328, %338, %cst_344 {dimension_numbers = #tpu.dot_dimension_numbers<[1], [0], [0], [1], [0, 0, 1, 1], [], []>} : vector<4x16xbf16>, vector<16x8xbf16>, vector<4x8xf32> -> vector<4x8xf32>
    %340 = arith.truncf %339 : vector<4x8xf32> to vector<4x8xbf16>
    %c1_345 = arith.constant 1 : index
    %c1_346 = arith.constant 1 : index
    %c0_347 = arith.constant 0 : index
    %c0_348 = arith.constant 0 : index
    %341 = vector.load %arg3[%c1_345, %c1_346, %c0_347, %c0_348] : memref<2x2x4x4xbf16, #tpu.memory_space<vmem>>, vector<1x1x4x4xbf16>
    %342 = vector.shape_cast %341 : vector<1x1x4x4xbf16> to vector<4x4xbf16>
    %cst_349 = arith.constant dense<0.000000e+00> : vector<4x8xf32>
    %343 = tpu.matmul %342, %340, %cst_349 {dimension_numbers = #tpu.dot_dimension_numbers<[1], [0], [0], [1], [0, 0, 1, 1], [], []>} : vector<4x4xbf16>, vector<4x8xbf16>, vector<4x8xf32> -> vector<4x8xf32>
    %344 = arith.addf %336, %343 : vector<4x8xf32>
    %c0_350 = arith.constant 0 : index
    %c0_351 = arith.constant 0 : index
    %345 = vector.load %arg5[%c0_350, %c0_351] : memref<4x1xf32, #tpu.memory_space<vmem>>, vector<4x1xf32>
    %346 = vector.broadcast %345 : vector<4x1xf32> to vector<4x8xf32>
    %347 = arith.addf %344, %346 : vector<4x8xf32>
    %348 = arith.truncf %347 : vector<4x8xf32> to vector<4x8xbf16>
    %c0_352 = arith.constant 0 : index
    %c0_353 = arith.constant 0 : index
    %c56 = arith.constant 56 : index
    %349 = vector.load %arg6[%c0_352, %c0_353, %c56] : memref<1x4x64xbf16, #tpu.memory_space<vmem>>, vector<1x4x8xbf16>
    %350 = vector.shape_cast %349 : vector<1x4x8xbf16> to vector<4x8xbf16>
    %351 = vector.shape_cast %348 : vector<4x8xbf16> to vector<1x4x8xbf16>
    tpu.vector_store %arg6[%c0_352, %c0_353, %c56], %351 {strides = array<i32>} : memref<1x4x64xbf16, #tpu.memory_space<vmem>>, vector<1x4x8xbf16>,
    return
  }
  func.func @transform_0(%arg0: i32, %arg1: i32) -> (i32, i32, i32) {
    %c0_i32 = arith.constant 0 : i32
    %c0_i32_0 = arith.constant 0 : i32
    return %arg0, %c0_i32, %arg1 : i32, i32, i32
  }
  func.func @transform_1(%arg0: i32, %arg1: i32) -> (i32, i32, i32, i32) {
    %c0_i32 = arith.constant 0 : i32
    %c0_i32_0 = arith.constant 0 : i32
    %c0_i32_1 = arith.constant 0 : i32
    %c0_i32_2 = arith.constant 0 : i32
    %c0_i32_3 = arith.constant 0 : i32
    return %c0_i32, %c0_i32_0, %c0_i32_1, %c0_i32_2 : i32, i32, i32, i32
  }
  func.func @transform_2(%arg0: i32, %arg1: i32) -> (i32, i32, i32) {
    %c0_i32 = arith.constant 0 : i32
    %c0_i32_0 = arith.constant 0 : i32
    %c0_i32_1 = arith.constant 0 : i32
    %c0_i32_2 = arith.constant 0 : i32
    return %c0_i32, %c0_i32_0, %c0_i32_1 : i32, i32, i32
  }
  func.func @transform_3(%arg0: i32, %arg1: i32) -> (i32, i32) {
    %c0_i32 = arith.constant 0 : i32
    %c0_i32_0 = arith.constant 0 : i32
    %c0_i32_1 = arith.constant 0 : i32
    return %c0_i32, %c0_i32_0 : i32, i32
  }
  func.func @transform_4(%arg0: i32, %arg1: i32) -> (i32, i32, i32) {
    %c0_i32 = arith.constant 0 : i32
    %c0_i32_0 = arith.constant 0 : i32
    return %arg0, %c0_i32, %arg1 : i32, i32, i32
  }
}

</mosaic_0001>

<llo_original>
// kernel: tpu_custom_call.1
$region0: #{tpu_custom_call.1}
  #allocation0 [shape = 'u32[]', space=smem, size = 0x4, offset = 0x4, fixed_abs, tag = 'smem constant byte address 0x4 - core index']
  #allocation1 [shape = 'u32[144,128]{1,0:T(1,128)}', space=vmem, size = 0x12000, scoped, tag = 'internal scratch']
  %s0 = inlined_call_operand.vmem [shape: f32[2,4,256], index: 0, kind: input, shape index: {}]
  %s1 = inlined_call_operand.vmem [shape: bf16[2,2,4,4], index: 1, kind: input, shape index: {}]
  %s2 = inlined_call_operand.vmem [shape: bf16[2,16,8], index: 2, kind: input, shape index: {}]
  %s3 = inlined_call_operand.vmem [shape: f32[4,1], index: 3, kind: input, shape index: {}]
  %s4 = inlined_call_operand.hbm [shape: bf16[2,4,64], index: 4, kind: output, shape index: {}]
  %s5 = sld [smem:[#allocation0]]
  $region49: #{tpu_custom_call.1} parent=0
    _
  %s7 = ssub.s32 1, %s5
  %s8 = scalar_select 0, %s7, %s5
  $region1: #{tpu_custom_call.1} parent=0
    #allocation2 [shape = 'u8[2048]{0}', space=vmem, size = 0x800, scoped, tag = 'output window, operand 0']
    #allocation3 [shape = 's32[2]{0}', space=sflag, size = 0x8, scoped, tag = 'scoped memory for tpu_custom_call.1']
    %9 = vsyncpa [#allocation3], 0
    %s10 = scalar_lea.sflag [#allocation3], 1
    %11 = vsyncpa %s10, 0
    loop: start=0, step=1, limit=4
    $region2: #{tpu_custom_call.1} parent=1 // loop_pre_header
      _
    $region3: #{tpu_custom_call.1} parent=1 // loop_header
      %s13 = sphi 0, %s17
      %p14 = scmp.ge.s32.totalorder %s13, 4
      %s20 = sphi 0, %s32
      %s21 = sphi 0, %s28
      %s22 = sphi 0, %s20
      %s23 = sphi 0, %s21
      %s24 = sphi 0, %s22
      %s25 = sphi 0, %s23
      %s37 = sphi 0, %s39
      %s40 = sphi 0, %s37
      %s41 = sphi 0, %s40
      %s57 = sphi 0, %s41
      %s61 = sphi 0, %s61
      %s63 = sphi 0, %s61
      %s64 = sphi 0, %s63
      %s78 = sphi 0, %s64
      %s82 = sphi 0, %s82
      %s84 = sphi 0, %s82
      %s85 = sphi 0, %s84
      %s99 = sphi 0, %s85
      %s103 = sphi 0, %s103
      %s105 = sphi 0, %s103
      %s106 = sphi 0, %s105
      %s120 = sphi 0, %s106
      %s128 = sphi 0, %s130
      %s131 = sphi 0, %s128
      %s132 = sphi 0, %s131
      %s148 = sphi 0, %s132
    $region4: #{tpu_custom_call.1} parent=1 // loop_header_branch
      %16 = sbr.rel (%p14) target = $region8
    $region5: #{tpu_custom_call.1} parent=1 // loop_body
      %s18 = ssub.s32 %s13, 1
      %s19 = ssub.s32 %s13, 2
      %s26 = sadd.s32 1, %s21
      %p27 = scmp.ge.s32.totalorder %s26, 1
      %s28 = scalar_select %p27, 0, %s26
      %s29 = sadd.s32 1, %s20
      %s30 = scalar_select %p27, %s29, %s20
      %p31 = scmp.ge.s32.totalorder %s30, 2
      %s32 = scalar_select %p31, 0, %s30
      %s33 = ssub.s32 %s20, %s32
      %s34 = ssub.s32 %s21, %s28
      %s35 = sor.u32 %s33, %s34
      %p36 = scmp.eq.s32.totalorder %s35, 0
      %s38 = sadd.s32 %s37, 1
      %s39 = scalar_select %p36, %s37, %s38
      %p42 = pneg %p36
      %p43 = scmp.eq.s32.totalorder %s13, 1
      %p44 = por %p42, %p43
      %p45 = scmp.ne.s32.totalorder %s37, %s40
      %p46 = scmp.eq.s32.totalorder %s13, 0
      %p47 = por %p45, %p46
      %p48 = scmp.ne.s32.totalorder %s37, %s40
      %p49 = scmp.eq.s32.totalorder %s18, 1
      %p50 = por %p48, %p49
      %p51 = scmp.ne.s32.totalorder %s40, %s41
      %p52 = scmp.eq.s32.totalorder %s18, 0
      %p53 = por %p51, %p52
      %p54 = scmp.ne.s32.totalorder %s40, %s41
      %p55 = scmp.eq.s32.totalorder %s19, 1
      %p56 = por %p54, %p55
      %p58 = scmp.ne.s32.totalorder %s41, %s57
      %p59 = scmp.eq.s32.totalorder %s19, 0
      %p60 = por %p58, %p59
      %s62 = sadd.s32 %s61, 1
      %p65 = scmp.eq.s32.totalorder %s13, 1
      %p66 = scmp.ne.s32.totalorder %s61, %s63
      %p67 = scmp.eq.s32.totalorder %s13, 0
      %p68 = por %p66, %p67
      %p69 = scmp.ne.s32.totalorder %s61, %s63
      %p70 = scmp.eq.s32.totalorder %s18, 1
      %p71 = por %p69, %p70
      %p72 = scmp.ne.s32.totalorder %s63, %s64
      %p73 = scmp.eq.s32.totalorder %s18, 0
      %p74 = por %p72, %p73
      %p75 = scmp.ne.s32.totalorder %s63, %s64
      %p76 = scmp.eq.s32.totalorder %s19, 1
      %p77 = por %p75, %p76
      %p79 = scmp.ne.s32.totalorder %s64, %s78
      %p80 = scmp.eq.s32.totalorder %s19, 0
      %p81 = por %p79, %p80
      %s83 = sadd.s32 %s82, 1
      %p86 = scmp.eq.s32.totalorder %s13, 1
      %p87 = scmp.ne.s32.totalorder %s82, %s84
      %p88 = scmp.eq.s32.totalorder %s13, 0
      %p89 = por %p87, %p88
      %p90 = scmp.ne.s32.totalorder %s82, %s84
      %p91 = scmp.eq.s32.totalorder %s18, 1
      %p92 = por %p90, %p91
      %p93 = scmp.ne.s32.totalorder %s84, %s85
      %p94 = scmp.eq.s32.totalorder %s18, 0
      %p95 = por %p93, %p94
      %p96 = scmp.ne.s32.totalorder %s84, %s85
      %p97 = scmp.eq.s32.totalorder %s19, 1
      %p98 = por %p96, %p97
      %p100 = scmp.ne.s32.totalorder %s85, %s99
      %p101 = scmp.eq.s32.totalorder %s19, 0
      %p102 = por %p100, %p101
      %s104 = sadd.s32 %s103, 1
      %p107 = scmp.eq.s32.totalorder %s13, 1
      %p108 = scmp.ne.s32.totalorder %s103, %s105
      %p109 = scmp.eq.s32.totalorder %s13, 0
      %p110 = por %p108, %p109
      %p111 = scmp.ne.s32.totalorder %s103, %s105
      %p112 = scmp.eq.s32.totalorder %s18, 1
      %p113 = por %p111, %p112
      %p114 = scmp.ne.s32.totalorder %s105, %s106
      %p115 = scmp.eq.s32.totalorder %s18, 0
      %p116 = por %p114, %p115
      %p117 = scmp.ne.s32.totalorder %s105, %s106
      %p118 = scmp.eq.s32.totalorder %s19, 1
      %p119 = por %p117, %p118
      %p121 = scmp.ne.s32.totalorder %s106, %s120
      %p122 = scmp.eq.s32.totalorder %s19, 0
      %p123 = por %p121, %p122
      %s124 = ssub.s32 %s20, %s32
      %s125 = ssub.s32 %s21, %s28
      %s126 = sor.u32 %s124, %s125
      %p127 = scmp.eq.s32.totalorder %s126, 0
      %s129 = sadd.s32 %s128, 1
      %s130 = scalar_select %p127, %s128, %s129
      %p133 = pneg %p127
      %p134 = scmp.eq.s32.totalorder %s13, 1
      %p135 = por %p133, %p134
      %p136 = scmp.ne.s32.totalorder %s128, %s131
      %p137 = scmp.eq.s32.totalorder %s13, 0
      %p138 = por %p136, %p137
      %p139 = scmp.ne.s32.totalorder %s128, %s131
      %p140 = scmp.eq.s32.totalorder %s18, 1
      %p141 = por %p139, %p140
      %p142 = scmp.ne.s32.totalorder %s131, %s132
      %p143 = scmp.eq.s32.totalorder %s18, 0
      %p144 = por %p142, %p143
      %p145 = scmp.ne.s32.totalorder %s131, %s132
      %p146 = scmp.eq.s32.totalorder %s19, 1
      %p147 = por %p145, %p146
      %p149 = scmp.ne.s32.totalorder %s132, %s148
      %p150 = scmp.eq.s32.totalorder %s19, 0
      %p151 = por %p149, %p150
      %p152 = scmp.le.s32.totalorder 1, %s13
      %p153 = scmp.lt.s32.totalorder %s13, 3
      %p154 = pnand %p152, %p153
      %p155 = pneg %p154
      // Predicated region
      $region9: #{tpu_custom_call.1} parent=5 // pred_check
        _
      $region10: #{tpu_custom_call.1} parent=5 // pred_check_branch
        %157 = sbr.rel (%p154) target = $region12
      $region11: #{tpu_custom_call.1} parent=5 // pred_region
        %s158 = ssub.s32 %s13, 1
        // Predicated region
        $region13: #{tpu_custom_call.1} parent=11 // pred_check
          %p159 = pneg %p74
        $region14: #{tpu_custom_call.1} parent=11 // pred_check_branch
          %161 = sbr.rel (%p159) target = $region16
        $region15: #{tpu_custom_call.1} parent=11 // pred_region
          _
        $region16: #{tpu_custom_call.1} parent=11 // pred_fallthru
          _
        // Predicated region
        $region17: #{tpu_custom_call.1} parent=11 // pred_check
          %p162 = pneg %p95
        $region18: #{tpu_custom_call.1} parent=11 // pred_check_branch
          %164 = sbr.rel (%p162) target = $region20
        $region19: #{tpu_custom_call.1} parent=11 // pred_region
          _
        $region20: #{tpu_custom_call.1} parent=11 // pred_fallthru
          _
        // Predicated region
        $region21: #{tpu_custom_call.1} parent=11 // pred_check
          %p165 = pneg %p116
        $region22: #{tpu_custom_call.1} parent=11 // pred_check_branch
          %167 = sbr.rel (%p165) target = $region24
        $region23: #{tpu_custom_call.1} parent=11 // pred_region
          _
        $region24: #{tpu_custom_call.1} parent=11 // pred_fallthru
          _
      $region12: #{tpu_custom_call.1} parent=5 // pred_fallthru
        _
      %p168 = scmp.lt.s32.totalorder %s13, 2
      // Predicated region
      $region25: #{tpu_custom_call.1} parent=5 // pred_check
        %p169 = pneg %p168
      $region26: #{tpu_custom_call.1} parent=5 // pred_check_branch
        %171 = sbr.rel (%p169) target = $region28
      $region27: #{tpu_custom_call.1} parent=5 // pred_region
        // Predicated region
        $region29: #{tpu_custom_call.1} parent=27 // pred_check
          %p172 = pneg %p47
        $region30: #{tpu_custom_call.1} parent=27 // pred_check_branch
          %174 = sbr.rel (%p172) target = $region32
        $region31: #{tpu_custom_call.1} parent=27 // pred_region
          %s175 = smul.u32 2, %s21
          %p176 = scmp.lt.s32.totalorder %s20, 1
          %s177 = scalar_select %p176, %s20, 1
          %p178 = scmp.lt.s32.totalorder %s175, 1
          %s179 = scalar_select %p178, %s175, 1
          %s180 = smul.addr %s177, 2
          %s181 = sadd.s32 %s179, %s180
          %s182 = smul.addr %s181, 4
          %s183 = scalar_lea.vmem %s0, %s182
          %s184 = smul.u32 2, %s21
        $region32: #{tpu_custom_call.1} parent=27 // pred_fallthru
          _
      $region28: #{tpu_custom_call.1} parent=5 // pred_fallthru
        _
      %p185 = scmp.le.s32.totalorder 1, %s13
      %p186 = scmp.lt.s32.totalorder %s13, 3
      %p187 = pnand %p185, %p186
      %p188 = pneg %p187
      // Predicated region
      $region33: #{tpu_custom_call.1} parent=5 // pred_check
        _
      $region34: #{tpu_custom_call.1} parent=5 // pred_check_branch
        %190 = sbr.rel (%p187) target = $region36
      $region35: #{tpu_custom_call.1} parent=5 // pred_region
        %s191 = ssub.s32 %s13, 1
        %s192 = smul.u32 2, %s23
        %p193 = scmp.lt.s32.totalorder %s22, 1
        %s194 = scalar_select %p193, %s22, 1
        %p195 = scmp.lt.s32.totalorder %s192, 1
        %s196 = scalar_select %p195, %s192, 1
        %s197 = smul.addr %s194, 2
        %s198 = sadd.s32 %s196, %s197
        %s199 = smul.addr %s198, 4
        %s200 = scalar_lea.vmem %s0, %s199
        %p201 = pneg %p53
        %p202 = pneg %p50
        %p203 = pneg %p74
        %p204 = pneg %p71
        %p205 = pneg %p95
        %p206 = pneg %p92
        %p207 = pneg %p116
        %p208 = pneg %p113
        %p209 = pneg %p144
        %p210 = pneg %p141
        %s211 = sand.u32 %s131, 1
        %s212 = scalar_lea.sflag [#allocation3], %s211
        %s213 = sand.u32 %s131, 1
        %s214 = smul.addr %s213, 2
        %s215 = scalar_lea.vmem [#allocation2], %s214
        %s216 = smul.u32 2, %s23
        %p217 = scmp.lt.s32.totalorder %s22, 1
        %s218 = scalar_select %p217, %s22, 1
        %p219 = scmp.lt.s32.totalorder %s216, 1
        %s220 = scalar_select %p219, %s216, 1
        %s221 = smul.addr %s218, 2
        %s222 = sadd.s32 %s220, %s221
        %s223 = smul.addr %s222, 4
        %s224 = scalar_lea.vmem %s0, %s223
        %s225 = smul.u32 2, %s23
        %v227 = vld [vmem:[%s224] sm:$0xf]
        %v228 = vpack.c.bf16 %v227, %v227
        %v229 = vld [vmem:[%s2] sm:$0xf]
        %v230 = vld [vmem:[%s2 + $0x4] sm:$0xf]
        %v233 = vunpack.c.l.b16 %v229
        %v234 = vunpack.c.l.b16 %v230
        %v235 = vpack.c.b16 %v234, %v233
        %vm237 = vcmask 130048
        %v239 = vsel %vm237, %v228, 0
        %241 = vmatprep.subr.bf16.mxu0 0
        %242 = vmatpush1.bf16.msra.mxu0 %v235
        %243 = vmatprep.subr.bf16.mxu0 0
        %244 = vmatpush1.bf16.msra.mxu0 0
        %245 = vmatprep.subr.bf16.mxu0 0
        %246 = vmatpush1.bf16.msra.mxu0 0
        %247 = vmatprep.subr.bf16.mxu0 0
        %248 = vmatpush1.bf16.msra.mxu0 0
        %249 = vmatprep.subr.bf16.mxu0 0
        %250 = vmatpush1.bf16.msra.mxu0 0
        %251 = vmatprep.subr.bf16.mxu0 0
        %252 = vmatpush1.bf16.msra.mxu0 0
        %253 = vmatprep.subr.bf16.mxu0 0
        %254 = vmatpush1.bf16.msra.mxu0 0
        %255 = vmatprep.subr.bf16.mxu0 0
        %256 = vmatpush1.bf16.msra.mxu0 0
        %257 = vmatprep.subr.bf16.mxu0 0
        %258 = vmatpush1.bf16.msra.mxu0 0
        %259 = vmatprep.subr.bf16.mxu0 0
        %260 = vmatpush1.bf16.msra.mxu0 0
        %261 = vmatprep.subr.bf16.mxu0 0
        %262 = vmatpush1.bf16.msra.mxu0 0
        %263 = vmatprep.subr.bf16.mxu0 0
        %264 = vmatpush1.bf16.msra.mxu0 0
        %265 = vmatprep.subr.bf16.mxu0 0
        %266 = vmatpush1.bf16.msra.mxu0 0
        %267 = vmatprep.subr.bf16.mxu0 0
        %268 = vmatpush1.bf16.msra.mxu0 0
        %269 = vmatprep.subr.bf16.mxu0 0
        %270 = vmatpush1.bf16.msra.mxu0 0
        %271 = vmatprep.subr.bf16.mxu0 0
        %272 = vmatpush1.bf16.msra.mxu0 0
        %273 = vmatprep.mubr.bf16.mxu0 0
        %274 = vmatmul.mubr.bf16.gmra.mrb[0].mxu0 %v239
        %v275 = vpop.f32.mrb[0].mxu0
        %v276 = vadd.f32 0.0, %v275
        %v277 = vpop.f32.mrb[0].mxu0
        %v278 = vpop.f32.mrb[0].mxu0
        %v279 = vpop.f32.mrb[0].mxu0
        %280 = vdwg.mxu0
        %v281 = vpack.c.bf16 %v276, %v276
        %v282 = vld [vmem:[%s1] sm:$0x3]
        %s283 = scalar_lea.vmem %s2, 8
        %v284 = vld [vmem:[%s283] sm:$0xf]
        %v285 = vld [vmem:[%s283 + $0x4] sm:$0xf]
        %v288 = vunpack.c.l.b16 %v284
        %v289 = vunpack.c.l.b16 %v285
        %v290 = vpack.c.b16 %v289, %v288
        %292 = vmatprep.subr.bf16.mxu0 0
        %293 = vmatpush1.bf16.msra.mxu0 %v290
        %294 = vmatprep.subr.bf16.mxu0 0
        %295 = vmatpush1.bf16.msra.mxu0 0
        %296 = vmatprep.subr.bf16.mxu0 0
        %297 = vmatpush1.bf16.msra.mxu0 0
        %298 = vmatprep.subr.bf16.mxu0 0
        %299 = vmatpush1.bf16.msra.mxu0 0
        %300 = vmatprep.subr.bf16.mxu0 0
        %301 = vmatpush1.bf16.msra.mxu0 0
        %302 = vmatprep.subr.bf16.mxu0 0
        %303 = vmatpush1.bf16.msra.mxu0 0
        %304 = vmatprep.subr.bf16.mxu0 0
        %305 = vmatpush1.bf16.msra.mxu0 0
        %306 = vmatprep.subr.bf16.mxu0 0
        %307 = vmatpush1.bf16.msra.mxu0 0
        %308 = vmatprep.subr.bf16.mxu0 0
        %309 = vmatpush1.bf16.msra.mxu0 0
        %310 = vmatprep.subr.bf16.mxu0 0
        %311 = vmatpush1.bf16.msra.mxu0 0
        %312 = vmatprep.subr.bf16.mxu0 0
        %313 = vmatpush1.bf16.msra.mxu0 0
        %314 = vmatprep.subr.bf16.mxu0 0
        %315 = vmatpush1.bf16.msra.mxu0 0
        %316 = vmatprep.subr.bf16.mxu0 0
        %317 = vmatpush1.bf16.msra.mxu0 0
        %318 = vmatprep.subr.bf16.mxu0 0
        %319 = vmatpush1.bf16.msra.mxu0 0
        %320 = vmatprep.subr.bf16.mxu0 0
        %321 = vmatpush1.bf16.msra.mxu0 0
        %322 = vmatprep.subr.bf16.mxu0 0
        %323 = vmatpush1.bf16.msra.mxu0 0
        %324 = vmatprep.mubr.bf16.mxu0 0
        %325 = vmatmul.mubr.bf16.gmra.mrb[0].mxu0 %v239
        %v326 = vpop.f32.mrb[0].mxu0
        %v327 = vadd.f32 0.0, %v326
        %v328 = vpop.f32.mrb[0].mxu0
        %v329 = vpop.f32.mrb[0].mxu0
        %v330 = vpop.f32.mrb[0].mxu0
        %331 = vdwg.mxu0
        %v332 = vpack.c.bf16 %v327, %v327
        %s333 = scalar_lea.vmem %s1, 2
        %v334 = vld [vmem:[%s333] sm:$0x3]
        %vm335 = vcmask 31744
        %v337 = vsel %vm335, %v334, 0
        %vm339 = vcmask 1041408
        %v341 = vsel %vm339, %v332, 0
        %343 = vmatprep.subr.bf16.mxu0 0
        %344 = vmatpush1.bf16.msra.mxu0 %v341
        %345 = vmatprep.subr.bf16.mxu0 0
        %346 = vmatpush1.bf16.msra.mxu0 0
        %347 = vmatprep.subr.bf16.mxu0 0
        %348 = vmatpush1.bf16.msra.mxu0 0
        %349 = vmatprep.subr.bf16.mxu0 0
        %350 = vmatpush1.bf16.msra.mxu0 0
        %351 = vmatprep.subr.bf16.mxu0 0
        %352 = vmatpush1.bf16.msra.mxu0 0
        %353 = vmatprep.subr.bf16.mxu0 0
        %354 = vmatpush1.bf16.msra.mxu0 0
        %355 = vmatprep.subr.bf16.mxu0 0
        %356 = vmatpush1.bf16.msra.mxu0 0
        %357 = vmatprep.subr.bf16.mxu0 0
        %358 = vmatpush1.bf16.msra.mxu0 0
        %359 = vmatprep.subr.bf16.mxu0 0
        %360 = vmatpush1.bf16.msra.mxu0 0
        %361 = vmatprep.subr.bf16.mxu0 0
        %362 = vmatpush1.bf16.msra.mxu0 0
        %363 = vmatprep.subr.bf16.mxu0 0
        %364 = vmatpush1.bf16.msra.mxu0 0
        %365 = vmatprep.subr.bf16.mxu0 0
        %366 = vmatpush1.bf16.msra.mxu0 0
        %367 = vmatprep.subr.bf16.mxu0 0
        %368 = vmatpush1.bf16.msra.mxu0 0
        %369 = vmatprep.subr.bf16.mxu0 0
        %370 = vmatpush1.bf16.msra.mxu0 0
        %371 = vmatprep.subr.bf16.mxu0 0
        %372 = vmatpush1.bf16.msra.mxu0 0
        %373 = vmatprep.subr.bf16.mxu0 0
        %374 = vmatpush1.bf16.msra.mxu0 0
        %375 = vmatprep.mubr.bf16.mxu0 0
        %376 = vmatmul.mubr.bf16.gmra.mrb[0].mxu0 %v337
        %v377 = vpop.f32.mrb[0].mxu0
        %v378 = vadd.f32 0.0, %v377
        %v379 = vpop.f32.mrb[0].mxu0
        %v380 = vpop.f32.mrb[0].mxu0
        %v381 = vpop.f32.mrb[0].mxu0
        %382 = vdwg.mxu0
        %v384 = vsel %vm335, %v282, 0
        %v387 = vsel %vm339, %v281, 0
        %389 = vmatprep.subr.bf16.mxu0 0
        %390 = vmatpush1.bf16.msra.mxu0 %v387
        %391 = vmatprep.subr.bf16.mxu0 0
        %392 = vmatpush1.bf16.msra.mxu0 0
        %393 = vmatprep.subr.bf16.mxu0 0
        %394 = vmatpush1.bf16.msra.mxu0 0
        %395 = vmatprep.subr.bf16.mxu0 0
        %396 = vmatpush1.bf16.msra.mxu0 0
        %397 = vmatprep.subr.bf16.mxu0 0
        %398 = vmatpush1.bf16.msra.mxu0 0
        %399 = vmatprep.subr.bf16.mxu0 0
        %400 = vmatpush1.bf16.msra.mxu0 0
        %401 = vmatprep.subr.bf16.mxu0 0
        %402 = vmatpush1.bf16.msra.mxu0 0
        %403 = vmatprep.subr.bf16.mxu0 0
        %404 = vmatpush1.bf16.msra.mxu0 0
        %405 = vmatprep.subr.bf16.mxu0 0
        %406 = vmatpush1.bf16.msra.mxu0 0
        %407 = vmatprep.subr.bf16.mxu0 0
        %408 = vmatpush1.bf16.msra.mxu0 0
        %409 = vmatprep.subr.bf16.mxu0 0
        %410 = vmatpush1.bf16.msra.mxu0 0
        %411 = vmatprep.subr.bf16.mxu0 0
        %412 = vmatpush1.bf16.msra.mxu0 0
        %413 = vmatprep.subr.bf16.mxu0 0
        %414 = vmatpush1.bf16.msra.mxu0 0
        %415 = vmatprep.subr.bf16.mxu0 0
        %416 = vmatpush1.bf16.msra.mxu0 0
        %417 = vmatprep.subr.bf16.mxu0 0
        %418 = vmatpush1.bf16.msra.mxu0 0
        %419 = vmatprep.subr.bf16.mxu0 0
        %420 = vmatpush1.bf16.msra.mxu0 0
        %421 = vmatprep.mubr.bf16.mxu0 0
        %422 = vmatmul.mubr.bf16.gmra.mrb[0].mxu0 %v384
        %v423 = vpop.f32.mrb[0].mxu0
        %v424 = vadd.f32 %v378, %v423
        %v425 = vpop.f32.mrb[0].mxu0
        %v426 = vpop.f32.mrb[0].mxu0
        %v427 = vpop.f32.mrb[0].mxu0
        %428 = vdwg.mxu0
        %430 = vrot.lane.b32.xlu0 %v228, 112
        %v431 = vpop.permute.xlu0 %430
        %v433 = vsel %vm237, %v431, 0
        %435 = vmatprep.subr.bf16.mxu0 0
        %436 = vmatpush1.bf16.msra.mxu0 %v235
        %437 = vmatprep.subr.bf16.mxu0 0
        %438 = vmatpush1.bf16.msra.mxu0 0
        %439 = vmatprep.subr.bf16.mxu0 0
        %440 = vmatpush1.bf16.msra.mxu0 0
        %441 = vmatprep.subr.bf16.mxu0 0
        %442 = vmatpush1.bf16.msra.mxu0 0
        %443 = vmatprep.subr.bf16.mxu0 0
        %444 = vmatpush1.bf16.msra.mxu0 0
        %445 = vmatprep.subr.bf16.mxu0 0
        %446 = vmatpush1.bf16.msra.mxu0 0
        %447 = vmatprep.subr.bf16.mxu0 0
        %448 = vmatpush1.bf16.msra.mxu0 0
        %449 = vmatprep.subr.bf16.mxu0 0
        %450 = vmatpush1.bf16.msra.mxu0 0
        %451 = vmatprep.subr.bf16.mxu0 0
        %452 = vmatpush1.bf16.msra.mxu0 0
        %453 = vmatprep.subr.bf16.mxu0 0
        %454 = vmatpush1.bf16.msra.mxu0 0
        %455 = vmatprep.subr.bf16.mxu0 0
        %456 = vmatpush1.bf16.msra.mxu0 0
        %457 = vmatprep.subr.bf16.mxu0 0
        %458 = vmatpush1.bf16.msra.mxu0 0
        %459 = vmatprep.subr.bf16.mxu0 0
        %460 = vmatpush1.bf16.msra.mxu0 0
        %461 = vmatprep.subr.bf16.mxu0 0
        %462 = vmatpush1.bf16.msra.mxu0 0
        %463 = vmatprep.subr.bf16.mxu0 0
        %464 = vmatpush1.bf16.msra.mxu0 0
        %465 = vmatprep.subr.bf16.mxu0 0
        %466 = vmatpush1.bf16.msra.mxu0 0
        %467 = vmatprep.mubr.bf16.mxu0 0
        %468 = vmatmul.mubr.bf16.gmra.mrb[0].mxu0 %v433
        %v469 = vpop.f32.mrb[0].mxu0
        %v470 = vadd.f32 0.0, %v469
        %v471 = vpop.f32.mrb[0].mxu0
        %v472 = vpop.f32.mrb[0].mxu0
        %v473 = vpop.f32.mrb[0].mxu0
        %474 = vdwg.mxu0
        %v475 = vpack.c.bf16 %v470, %v470
        %s476 = scalar_lea.vmem %s1, 4
        %v477 = vld [vmem:[%s476] sm:$0x3]
        %v479 = vsel %vm335, %v477, 0
        %v482 = vsel %vm339, %v475, 0
        %484 = vmatprep.subr.bf16.mxu0 0
        %485 = vmatpush1.bf16.msra.mxu0 %v482
        %486 = vmatprep.subr.bf16.mxu0 0
        %487 = vmatpush1.bf16.msra.mxu0 0
        %488 = vmatprep.subr.bf16.mxu0 0
        %489 = vmatpush1.bf16.msra.mxu0 0
        %490 = vmatprep.subr.bf16.mxu0 0
        %491 = vmatpush1.bf16.msra.mxu0 0
        %492 = vmatprep.subr.bf16.mxu0 0
        %493 = vmatpush1.bf16.msra.mxu0 0
        %494 = vmatprep.subr.bf16.mxu0 0
        %495 = vmatpush1.bf16.msra.mxu0 0
        %496 = vmatprep.subr.bf16.mxu0 0
        %497 = vmatpush1.bf16.msra.mxu0 0
        %498 = vmatprep.subr.bf16.mxu0 0
        %499 = vmatpush1.bf16.msra.mxu0 0
        %500 = vmatprep.subr.bf16.mxu0 0
        %501 = vmatpush1.bf16.msra.mxu0 0
        %502 = vmatprep.subr.bf16.mxu0 0
        %503 = vmatpush1.bf16.msra.mxu0 0
        %504 = vmatprep.subr.bf16.mxu0 0
        %505 = vmatpush1.bf16.msra.mxu0 0
        %506 = vmatprep.subr.bf16.mxu0 0
        %507 = vmatpush1.bf16.msra.mxu0 0
        %508 = vmatprep.subr.bf16.mxu0 0
        %509 = vmatpush1.bf16.msra.mxu0 0
        %510 = vmatprep.subr.bf16.mxu0 0
        %511 = vmatpush1.bf16.msra.mxu0 0
        %512 = vmatprep.subr.bf16.mxu0 0
        %513 = vmatpush1.bf16.msra.mxu0 0
        %514 = vmatprep.subr.bf16.mxu0 0
        %515 = vmatpush1.bf16.msra.mxu0 0
        %516 = vmatprep.mubr.bf16.mxu0 0
        %517 = vmatmul.mubr.bf16.gmra.mrb[0].mxu0 %v479
        %v518 = vpop.f32.mrb[0].mxu0
        %v519 = vadd.f32 0.0, %v518
        %v520 = vpop.f32.mrb[0].mxu0
        %v521 = vpop.f32.mrb[0].mxu0
        %v522 = vpop.f32.mrb[0].mxu0
        %523 = vdwg.mxu0
        %v524 = vadd.f32 %v424, %v519
        %525 = vmatprep.subr.bf16.mxu0 0
        %526 = vmatpush1.bf16.msra.mxu0 %v290
        %527 = vmatprep.subr.bf16.mxu0 0
        %528 = vmatpush1.bf16.msra.mxu0 0
        %529 = vmatprep.subr.bf16.mxu0 0
        %530 = vmatpush1.bf16.msra.mxu0 0
        %531 = vmatprep.subr.bf16.mxu0 0
        %532 = vmatpush1.bf16.msra.mxu0 0
        %533 = vmatprep.subr.bf16.mxu0 0
        %534 = vmatpush1.bf16.msra.mxu0 0
        %535 = vmatprep.subr.bf16.mxu0 0
        %536 = vmatpush1.bf16.msra.mxu0 0
        %537 = vmatprep.subr.bf16.mxu0 0
        %538 = vmatpush1.bf16.msra.mxu0 0
        %539 = vmatprep.subr.bf16.mxu0 0
        %540 = vmatpush1.bf16.msra.mxu0 0
        %541 = vmatprep.subr.bf16.mxu0 0
        %542 = vmatpush1.bf16.msra.mxu0 0
        %543 = vmatprep.subr.bf16.mxu0 0
        %544 = vmatpush1.bf16.msra.mxu0 0
        %545 = vmatprep.subr.bf16.mxu0 0
        %546 = vmatpush1.bf16.msra.mxu0 0
        %547 = vmatprep.subr.bf16.mxu0 0
        %548 = vmatpush1.bf16.msra.mxu0 0
        %549 = vmatprep.subr.bf16.mxu0 0
        %550 = vmatpush1.bf16.msra.mxu0 0
        %551 = vmatprep.subr.bf16.mxu0 0
        %552 = vmatpush1.bf16.msra.mxu0 0
        %553 = vmatprep.subr.bf16.mxu0 0
        %554 = vmatpush1.bf16.msra.mxu0 0
        %555 = vmatprep.subr.bf16.mxu0 0
        %556 = vmatpush1.bf16.msra.mxu0 0
        %557 = vmatprep.mubr.bf16.mxu0 0
        %558 = vmatmul.mubr.bf16.gmra.mrb[0].mxu0 %v433
        %v559 = vpop.f32.mrb[0].mxu0
        %v560 = vadd.f32 0.0, %v559
        %v561 = vpop.f32.mrb[0].mxu0
        %v562 = vpop.f32.mrb[0].mxu0
        %v563 = vpop.f32.mrb[0].mxu0
        %564 = vdwg.mxu0
        %v565 = vpack.c.bf16 %v560, %v560
        %s566 = scalar_lea.vmem %s1, 6
        %v567 = vld [vmem:[%s566] sm:$0x3]
        %v569 = vsel %vm335, %v567, 0
        %v572 = vsel %vm339, %v565, 0
        %574 = vmatprep.subr.bf16.mxu0 0
        %575 = vmatpush1.bf16.msra.mxu0 %v572
        %576 = vmatprep.subr.bf16.mxu0 0
        %577 = vmatpush1.bf16.msra.mxu0 0
        %578 = vmatprep.subr.bf16.mxu0 0
        %579 = vmatpush1.bf16.msra.mxu0 0
        %580 = vmatprep.subr.bf16.mxu0 0
        %581 = vmatpush1.bf16.msra.mxu0 0
        %582 = vmatprep.subr.bf16.mxu0 0
        %583 = vmatpush1.bf16.msra.mxu0 0
        %584 = vmatprep.subr.bf16.mxu0 0
        %585 = vmatpush1.bf16.msra.mxu0 0
        %586 = vmatprep.subr.bf16.mxu0 0
        %587 = vmatpush1.bf16.msra.mxu0 0
        %588 = vmatprep.subr.bf16.mxu0 0
        %589 = vmatpush1.bf16.msra.mxu0 0
        %590 = vmatprep.subr.bf16.mxu0 0
        %591 = vmatpush1.bf16.msra.mxu0 0
        %592 = vmatprep.subr.bf16.mxu0 0
        %593 = vmatpush1.bf16.msra.mxu0 0
        %594 = vmatprep.subr.bf16.mxu0 0
        %595 = vmatpush1.bf16.msra.mxu0 0
        %596 = vmatprep.subr.bf16.mxu0 0
        %597 = vmatpush1.bf16.msra.mxu0 0
        %598 = vmatprep.subr.bf16.mxu0 0
        %599 = vmatpush1.bf16.msra.mxu0 0
        %600 = vmatprep.subr.bf16.mxu0 0
        %601 = vmatpush1.bf16.msra.mxu0 0
        %602 = vmatprep.subr.bf16.mxu0 0
        %603 = vmatpush1.bf16.msra.mxu0 0
        %604 = vmatprep.subr.bf16.mxu0 0
        %605 = vmatpush1.bf16.msra.mxu0 0
        %606 = vmatprep.mubr.bf16.mxu0 0
        %607 = vmatmul.mubr.bf16.gmra.mrb[0].mxu0 %v569
        %v608 = vpop.f32.mrb[0].mxu0
        %v609 = vadd.f32 0.0, %v608
        %v610 = vpop.f32.mrb[0].mxu0
        %v611 = vpop.f32.mrb[0].mxu0
        %v612 = vpop.f32.mrb[0].mxu0
        %613 = vdwg.mxu0
        %v614 = vadd.f32 %v524, %v609
        %v615 = vld [vmem:[%s3] sm:$0xf]
        %617 = vset.pattern.permute.xlu0 0
        %618 = vperm.xlu0 %617, %v615
        %v619 = vpop.permute.xlu0 %618
        %v621 = vadd.f32 %v614, %v619
        %v622 = vpack.c.bf16 %v621, %v621
        %vm623 = vcmask 58368
        %624 = vst.msk [vmem:[%s215] sm:$0x3] %vm623, %v622
        %v625 = vld [vmem:[%s224] sm:$0xf]
        %v626 = vpack.c.bf16 %v625, %v625
        %v627 = vld [vmem:[%s2] sm:$0xf]
        %v628 = vld [vmem:[%s2 + $0x4] sm:$0xf]
        %630 = vrot.lane.b32.xlu0 %v626, 96
        %v631 = vpop.permute.xlu0 %630
        %v634 = vunpack.c.l.b16 %v627
        %v635 = vunpack.c.l.b16 %v628
        %v636 = vpack.c.b16 %v635, %v634
        %v639 = vsel %vm237, %v631, 0
        %641 = vmatprep.subr.bf16.mxu0 0
        %642 = vmatpush1.bf16.msra.mxu0 %v636
        %643 = vmatprep.subr.bf16.mxu0 0
        %644 = vmatpush1.bf16.msra.mxu0 0
        %645 = vmatprep.subr.bf16.mxu0 0
        %646 = vmatpush1.bf16.msra.mxu0 0
        %647 = vmatprep.subr.bf16.mxu0 0
        %648 = vmatpush1.bf16.msra.mxu0 0
        %649 = vmatprep.subr.bf16.mxu0 0
        %650 = vmatpush1.bf16.msra.mxu0 0
        %651 = vmatprep.subr.bf16.mxu0 0
        %652 = vmatpush1.bf16.msra.mxu0 0
        %653 = vmatprep.subr.bf16.mxu0 0
        %654 = vmatpush1.bf16.msra.mxu0 0
        %655 = vmatprep.subr.bf16.mxu0 0
        %656 = vmatpush1.bf16.msra.mxu0 0
        %657 = vmatprep.subr.bf16.mxu0 0
        %658 = vmatpush1.bf16.msra.mxu0 0
        %659 = vmatprep.subr.bf16.mxu0 0
        %660 = vmatpush1.bf16.msra.mxu0 0
        %661 = vmatprep.subr.bf16.mxu0 0
        %662 = vmatpush1.bf16.msra.mxu0 0
        %663 = vmatprep.subr.bf16.mxu0 0
        %664 = vmatpush1.bf16.msra.mxu0 0
        %665 = vmatprep.subr.bf16.mxu0 0
        %666 = vmatpush1.bf16.msra.mxu0 0
        %667 = vmatprep.subr.bf16.mxu0 0
        %668 = vmatpush1.bf16.msra.mxu0 0
        %669 = vmatprep.subr.bf16.mxu0 0
        %670 = vmatpush1.bf16.msra.mxu0 0
        %671 = vmatprep.subr.bf16.mxu0 0
        %672 = vmatpush1.bf16.msra.mxu0 0
        %673 = vmatprep.mubr.bf16.mxu0 0
        %674 = vmatmul.mubr.bf16.gmra.mrb[0].mxu0 %v639
        %v675 = vpop.f32.mrb[0].mxu0
        %v676 = vadd.f32 0.0, %v675
        %v677 = vpop.f32.mrb[0].mxu0
        %v678 = vpop.f32.mrb[0].mxu0
        %v679 = vpop.f32.mrb[0].mxu0
        %680 = vdwg.mxu0
        %v681 = vpack.c.bf16 %v676, %v676
        %v682 = vld [vmem:[%s1] sm:$0x3]
        %v683 = vld [vmem:[%s283] sm:$0xf]
        %v684 = vld [vmem:[%s283 + $0x4] sm:$0xf]
        %v687 = vunpack.c.l.b16 %v683
        %v688 = vunpack.c.l.b16 %v684
        %v689 = vpack.c.b16 %v688, %v687
        %691 = vmatprep.subr.bf16.mxu0 0
        %692 = vmatpush1.bf16.msra.mxu0 %v689
        %693 = vmatprep.subr.bf16.mxu0 0
        %694 = vmatpush1.bf16.msra.mxu0 0
        %695 = vmatprep.subr.bf16.mxu0 0
        %696 = vmatpush1.bf16.msra.mxu0 0
        %697 = vmatprep.subr.bf16.mxu0 0
        %698 = vmatpush1.bf16.msra.mxu0 0
        %699 = vmatprep.subr.bf16.mxu0 0
        %700 = vmatpush1.bf16.msra.mxu0 0
        %701 = vmatprep.subr.bf16.mxu0 0
        %702 = vmatpush1.bf16.msra.mxu0 0
        %703 = vmatprep.subr.bf16.mxu0 0
        %704 = vmatpush1.bf16.msra.mxu0 0
        %705 = vmatprep.subr.bf16.mxu0 0
        %706 = vmatpush1.bf16.msra.mxu0 0
        %707 = vmatprep.subr.bf16.mxu0 0
        %708 = vmatpush1.bf16.msra.mxu0 0
        %709 = vmatprep.subr.bf16.mxu0 0
        %710 = vmatpush1.bf16.msra.mxu0 0
        %711 = vmatprep.subr.bf16.mxu0 0
        %712 = vmatpush1.bf16.msra.mxu0 0
        %713 = vmatprep.subr.bf16.mxu0 0
        %714 = vmatpush1.bf16.msra.mxu0 0
        %715 = vmatprep.subr.bf16.mxu0 0
        %716 = vmatpush1.bf16.msra.mxu0 0
        %717 = vmatprep.subr.bf16.mxu0 0
        %718 = vmatpush1.bf16.msra.mxu0 0
        %719 = vmatprep.subr.bf16.mxu0 0
        %720 = vmatpush1.bf16.msra.mxu0 0
        %721 = vmatprep.subr.bf16.mxu0 0
        %722 = vmatpush1.bf16.msra.mxu0 0
        %723 = vmatprep.mubr.bf16.mxu0 0
        %724 = vmatmul.mubr.bf16.gmra.mrb[0].mxu0 %v639
        %v725 = vpop.f32.mrb[0].mxu0
        %v726 = vadd.f32 0.0, %v725
        %v727 = vpop.f32.mrb[0].mxu0
        %v728 = vpop.f32.mrb[0].mxu0
        %v729 = vpop.f32.mrb[0].mxu0
        %730 = vdwg.mxu0
        %v731 = vpack.c.bf16 %v726, %v726
        %v732 = vld [vmem:[%s333] sm:$0x3]
        %v734 = vsel %vm335, %v732, 0
        %v737 = vsel %vm339, %v731, 0
        %739 = vmatprep.subr.bf16.mxu0 0
        %740 = vmatpush1.bf16.msra.mxu0 %v737
        %741 = vmatprep.subr.bf16.mxu0 0
        %742 = vmatpush1.bf16.msra.mxu0 0
        %743 = vmatprep.subr.bf16.mxu0 0
        %744 = vmatpush1.bf16.msra.mxu0 0
        %745 = vmatprep.subr.bf16.mxu0 0
        %746 = vmatpush1.bf16.msra.mxu0 0
        %747 = vmatprep.subr.bf16.mxu0 0
        %748 = vmatpush1.bf16.msra.mxu0 0
        %749 = vmatprep.subr.bf16.mxu0 0
        %750 = vmatpush1.bf16.msra.mxu0 0
        %751 = vmatprep.subr.bf16.mxu0 0
        %752 = vmatpush1.bf16.msra.mxu0 0
        %753 = vmatprep.subr.bf16.mxu0 0
        %754 = vmatpush1.bf16.msra.mxu0 0
        %755 = vmatprep.subr.bf16.mxu0 0
        %756 = vmatpush1.bf16.msra.mxu0 0
        %757 = vmatprep.subr.bf16.mxu0 0
        %758 = vmatpush1.bf16.msra.mxu0 0
        %759 = vmatprep.subr.bf16.mxu0 0
        %760 = vmatpush1.bf16.msra.mxu0 0
        %761 = vmatprep.subr.bf16.mxu0 0
        %762 = vmatpush1.bf16.msra.mxu0 0
        %763 = vmatprep.subr.bf16.mxu0 0
        %764 = vmatpush1.bf16.msra.mxu0 0
        %765 = vmatprep.subr.bf16.mxu0 0
        %766 = vmatpush1.bf16.msra.mxu0 0
        %767 = vmatprep.subr.bf16.mxu0 0
        %768 = vmatpush1.bf16.msra.mxu0 0
        %769 = vmatprep.subr.bf16.mxu0 0
        %770 = vmatpush1.bf16.msra.mxu0 0
        %771 = vmatprep.mubr.bf16.mxu0 0
        %772 = vmatmul.mubr.bf16.gmra.mrb[0].mxu0 %v734
        %v773 = vpop.f32.mrb[0].mxu0
        %v774 = vadd.f32 0.0, %v773
        %v775 = vpop.f32.mrb[0].mxu0
        %v776 = vpop.f32.mrb[0].mxu0
        %v777 = vpop.f32.mrb[0].mxu0
        %778 = vdwg.mxu0
        %v780 = vsel %vm335, %v682, 0
        %v783 = vsel %vm339, %v681, 0
        %785 = vmatprep.subr.bf16.mxu0 0
        %786 = vmatpush1.bf16.msra.mxu0 %v783
        %787 = vmatprep.subr.bf16.mxu0 0
        %788 = vmatpush1.bf16.msra.mxu0 0
        %789 = vmatprep.subr.bf16.mxu0 0
        %790 = vmatpush1.bf16.msra.mxu0 0
        %791 = vmatprep.subr.bf16.mxu0 0
        %792 = vmatpush1.bf16.msra.mxu0 0
        %793 = vmatprep.subr.bf16.mxu0 0
        %794 = vmatpush1.bf16.msra.mxu0 0
        %795 = vmatprep.subr.bf16.mxu0 0
        %796 = vmatpush1.bf16.msra.mxu0 0
        %797 = vmatprep.subr.bf16.mxu0 0
        %798 = vmatpush1.bf16.msra.mxu0 0
        %799 = vmatprep.subr.bf16.mxu0 0
        %800 = vmatpush1.bf16.msra.mxu0 0
        %801 = vmatprep.subr.bf16.mxu0 0
        %802 = vmatpush1.bf16.msra.mxu0 0
        %803 = vmatprep.subr.bf16.mxu0 0
        %804 = vmatpush1.bf16.msra.mxu0 0
        %805 = vmatprep.subr.bf16.mxu0 0
        %806 = vmatpush1.bf16.msra.mxu0 0
        %807 = vmatprep.subr.bf16.mxu0 0
        %808 = vmatpush1.bf16.msra.mxu0 0
        %809 = vmatprep.subr.bf16.mxu0 0
        %810 = vmatpush1.bf16.msra.mxu0 0
        %811 = vmatprep.subr.bf16.mxu0 0
        %812 = vmatpush1.bf16.msra.mxu0 0
        %813 = vmatprep.subr.bf16.mxu0 0
        %814 = vmatpush1.bf16.msra.mxu0 0
        %815 = vmatprep.subr.bf16.mxu0 0
        %816 = vmatpush1.bf16.msra.mxu0 0
        %817 = vmatprep.mubr.bf16.mxu0 0
        %818 = vmatmul.mubr.bf16.gmra.mrb[0].mxu0 %v780
        %v819 = vpop.f32.mrb[0].mxu0
        %v820 = vadd.f32 %v774, %v819
        %v821 = vpop.f32.mrb[0].mxu0
        %v822 = vpop.f32.mrb[0].mxu0
        %v823 = vpop.f32.mrb[0].mxu0
        %824 = vdwg.mxu0
        %825 = vrot.lane.b32.xlu0 %v626, 80
        %v826 = vpop.permute.xlu0 %825
        %v828 = vsel %vm237, %v826, 0
        %830 = vmatprep.subr.bf16.mxu0 0
        %831 = vmatpush1.bf16.msra.mxu0 %v636
        %832 = vmatprep.subr.bf16.mxu0 0
        %833 = vmatpush1.bf16.msra.mxu0 0
        %834 = vmatprep.subr.bf16.mxu0 0
        %835 = vmatpush1.bf16.msra.mxu0 0
        %836 = vmatprep.subr.bf16.mxu0 0
        %837 = vmatpush1.bf16.msra.mxu0 0
        %838 = vmatprep.subr.bf16.mxu0 0
        %839 = vmatpush1.bf16.msra.mxu0 0
        %840 = vmatprep.subr.bf16.mxu0 0
        %841 = vmatpush1.bf16.msra.mxu0 0
        %842 = vmatprep.subr.bf16.mxu0 0
        %843 = vmatpush1.bf16.msra.mxu0 0
        %844 = vmatprep.subr.bf16.mxu0 0
        %845 = vmatpush1.bf16.msra.mxu0 0
        %846 = vmatprep.subr.bf16.mxu0 0
        %847 = vmatpush1.bf16.msra.mxu0 0
        %848 = vmatprep.subr.bf16.mxu0 0
        %849 = vmatpush1.bf16.msra.mxu0 0
        %850 = vmatprep.subr.bf16.mxu0 0
        %851 = vmatpush1.bf16.msra.mxu0 0
        %852 = vmatprep.subr.bf16.mxu0 0
        %853 = vmatpush1.bf16.msra.mxu0 0
        %854 = vmatprep.subr.bf16.mxu0 0
        %855 = vmatpush1.bf16.msra.mxu0 0
        %856 = vmatprep.subr.bf16.mxu0 0
        %857 = vmatpush1.bf16.msra.mxu0 0
        %858 = vmatprep.subr.bf16.mxu0 0
        %859 = vmatpush1.bf16.msra.mxu0 0
        %860 = vmatprep.subr.bf16.mxu0 0
        %861 = vmatpush1.bf16.msra.mxu0 0
        %862 = vmatprep.mubr.bf16.mxu0 0
        %863 = vmatmul.mubr.bf16.gmra.mrb[0].mxu0 %v828
        %v864 = vpop.f32.mrb[0].mxu0
        %v865 = vadd.f32 0.0, %v864
        %v866 = vpop.f32.mrb[0].mxu0
        %v867 = vpop.f32.mrb[0].mxu0
        %v868 = vpop.f32.mrb[0].mxu0
        %869 = vdwg.mxu0
        %v870 = vpack.c.bf16 %v865, %v865
        %v871 = vld [vmem:[%s476] sm:$0x3]
        %v873 = vsel %vm335, %v871, 0
        %v876 = vsel %vm339, %v870, 0
        %878 = vmatprep.subr.bf16.mxu0 0
        %879 = vmatpush1.bf16.msra.mxu0 %v876
        %880 = vmatprep.subr.bf16.mxu0 0
        %881 = vmatpush1.bf16.msra.mxu0 0
        %882 = vmatprep.subr.bf16.mxu0 0
        %883 = vmatpush1.bf16.msra.mxu0 0
        %884 = vmatprep.subr.bf16.mxu0 0
        %885 = vmatpush1.bf16.msra.mxu0 0
        %886 = vmatprep.subr.bf16.mxu0 0
        %887 = vmatpush1.bf16.msra.mxu0 0
        %888 = vmatprep.subr.bf16.mxu0 0
        %889 = vmatpush1.bf16.msra.mxu0 0
        %890 = vmatprep.subr.bf16.mxu0 0
        %891 = vmatpush1.bf16.msra.mxu0 0
        %892 = vmatprep.subr.bf16.mxu0 0
        %893 = vmatpush1.bf16.msra.mxu0 0
        %894 = vmatprep.subr.bf16.mxu0 0
        %895 = vmatpush1.bf16.msra.mxu0 0
        %896 = vmatprep.subr.bf16.mxu0 0
        %897 = vmatpush1.bf16.msra.mxu0 0
        %898 = vmatprep.subr.bf16.mxu0 0
        %899 = vmatpush1.bf16.msra.mxu0 0
        %900 = vmatprep.subr.bf16.mxu0 0
        %901 = vmatpush1.bf16.msra.mxu0 0
        %902 = vmatprep.subr.bf16.mxu0 0
        %903 = vmatpush1.bf16.msra.mxu0 0
        %904 = vmatprep.subr.bf16.mxu0 0
        %905 = vmatpush1.bf16.msra.mxu0 0
        %906 = vmatprep.subr.bf16.mxu0 0
        %907 = vmatpush1.bf16.msra.mxu0 0
        %908 = vmatprep.subr.bf16.mxu0 0
        %909 = vmatpush1.bf16.msra.mxu0 0
        %910 = vmatprep.mubr.bf16.mxu0 0
        %911 = vmatmul.mubr.bf16.gmra.mrb[0].mxu0 %v873
        %v912 = vpop.f32.mrb[0].mxu0
        %v913 = vadd.f32 0.0, %v912
        %v914 = vpop.f32.mrb[0].mxu0
        %v915 = vpop.f32.mrb[0].mxu0
        %v916 = vpop.f32.mrb[0].mxu0
        %917 = vdwg.mxu0
        %v918 = vadd.f32 %v820, %v913
        %919 = vmatprep.subr.bf16.mxu0 0
        %920 = vmatpush1.bf16.msra.mxu0 %v689
        %921 = vmatprep.subr.bf16.mxu0 0
        %922 = vmatpush1.bf16.msra.mxu0 0
        %923 = vmatprep.subr.bf16.mxu0 0
        %924 = vmatpush1.bf16.msra.mxu0 0
        %925 = vmatprep.subr.bf16.mxu0 0
        %926 = vmatpush1.bf16.msra.mxu0 0
        %927 = vmatprep.subr.bf16.mxu0 0
        %928 = vmatpush1.bf16.msra.mxu0 0
        %929 = vmatprep.subr.bf16.mxu0 0
        %930 = vmatpush1.bf16.msra.mxu0 0
        %931 = vmatprep.subr.bf16.mxu0 0
        %932 = vmatpush1.bf16.msra.mxu0 0
        %933 = vmatprep.subr.bf16.mxu0 0
        %934 = vmatpush1.bf16.msra.mxu0 0
        %935 = vmatprep.subr.bf16.mxu0 0
        %936 = vmatpush1.bf16.msra.mxu0 0
        %937 = vmatprep.subr.bf16.mxu0 0
        %938 = vmatpush1.bf16.msra.mxu0 0
        %939 = vmatprep.subr.bf16.mxu0 0
        %940 = vmatpush1.bf16.msra.mxu0 0
        %941 = vmatprep.subr.bf16.mxu0 0
        %942 = vmatpush1.bf16.msra.mxu0 0
        %943 = vmatprep.subr.bf16.mxu0 0
        %944 = vmatpush1.bf16.msra.mxu0 0
        %945 = vmatprep.subr.bf16.mxu0 0
        %946 = vmatpush1.bf16.msra.mxu0 0
        %947 = vmatprep.subr.bf16.mxu0 0
        %948 = vmatpush1.bf16.msra.mxu0 0
        %949 = vmatprep.subr.bf16.mxu0 0
        %950 = vmatpush1.bf16.msra.mxu0 0
        %951 = vmatprep.mubr.bf16.mxu0 0
        %952 = vmatmul.mubr.bf16.gmra.mrb[0].mxu0 %v828
        %v953 = vpop.f32.mrb[0].mxu0
        %v954 = vadd.f32 0.0, %v953
        %v955 = vpop.f32.mrb[0].mxu0
        %v956 = vpop.f32.mrb[0].mxu0
        %v957 = vpop.f32.mrb[0].mxu0
        %958 = vdwg.mxu0
        %v959 = vpack.c.bf16 %v954, %v954
        %v960 = vld [vmem:[%s566] sm:$0x3]
        %v962 = vsel %vm335, %v960, 0
        %v965 = vsel %vm339, %v959, 0
        %967 = vmatprep.subr.bf16.mxu0 0
        %968 = vmatpush1.bf16.msra.mxu0 %v965
        %969 = vmatprep.subr.bf16.mxu0 0
        %970 = vmatpush1.bf16.msra.mxu0 0
        %971 = vmatprep.subr.bf16.mxu0 0
        %972 = vmatpush1.bf16.msra.mxu0 0
        %973 = vmatprep.subr.bf16.mxu0 0
        %974 = vmatpush1.bf16.msra.mxu0 0
        %975 = vmatprep.subr.bf16.mxu0 0
        %976 = vmatpush1.bf16.msra.mxu0 0
        %977 = vmatprep.subr.bf16.mxu0 0
        %978 = vmatpush1.bf16.msra.mxu0 0
        %979 = vmatprep.subr.bf16.mxu0 0
        %980 = vmatpush1.bf16.msra.mxu0 0
        %981 = vmatprep.subr.bf16.mxu0 0
        %982 = vmatpush1.bf16.msra.mxu0 0
        %983 = vmatprep.subr.bf16.mxu0 0
        %984 = vmatpush1.bf16.msra.mxu0 0
        %985 = vmatprep.subr.bf16.mxu0 0
        %986 = vmatpush1.bf16.msra.mxu0 0
        %987 = vmatprep.subr.bf16.mxu0 0
        %988 = vmatpush1.bf16.msra.mxu0 0
        %989 = vmatprep.subr.bf16.mxu0 0
        %990 = vmatpush1.bf16.msra.mxu0 0
        %991 = vmatprep.subr.bf16.mxu0 0
        %992 = vmatpush1.bf16.msra.mxu0 0
        %993 = vmatprep.subr.bf16.mxu0 0
        %994 = vmatpush1.bf16.msra.mxu0 0
        %995 = vmatprep.subr.bf16.mxu0 0
        %996 = vmatpush1.bf16.msra.mxu0 0
        %997 = vmatprep.subr.bf16.mxu0 0
        %998 = vmatpush1.bf16.msra.mxu0 0
        %999 = vmatprep.mubr.bf16.mxu0 0
        %1000 = vmatmul.mubr.bf16.gmra.mrb[0].mxu0 %v962
        %v1001 = vpop.f32.mrb[0].mxu0
        %v1002 = vadd.f32 0.0, %v1001
        %v1003 = vpop.f32.mrb[0].mxu0
        %v1004 = vpop.f32.mrb[0].mxu0
        %v1005 = vpop.f32.mrb[0].mxu0
        %1006 = vdwg.mxu0
        %v1007 = vadd.f32 %v918, %v1002
        %v1008 = vld [vmem:[%s3] sm:$0xf]
        %1010 = vset.pattern.permute.xlu0 0
        %1011 = vperm.xlu0 %1010, %v1008
        %v1012 = vpop.permute.xlu0 %1011
        %v1014 = vadd.f32 %v1007, %v1012
        %v1015 = vpack.c.bf16 %v1014, %v1014
        %v1018 = vunpack.c.l.s4 1983009808
        %v1019 = vunpack.c.0.s8 %v1018
        %v1020 = vlaneseq
        %v1021 = vshrl.u32 %v1020, 7
        %v1022 = vsub.s32 %v1019, %v1021
        %v1023 = vrot.slane %v1015, %v1022
        %1024 = vrot.lane.b32.xlu0 %v1023, 8
        %v1025 = vpop.permute.xlu0 %1024
        %vm1027 = vcmask 123968
        %1028 = vst.msk [vmem:[%s215] sm:$0x3] %vm1027, %v1025
        %v1029 = vld [vmem:[%s224] sm:$0xf]
        %v1030 = vpack.c.bf16 %v1029, %v1029
        %v1031 = vld [vmem:[%s2] sm:$0xf]
        %v1032 = vld [vmem:[%s2 + $0x4] sm:$0xf]
        %1034 = vrot.lane.b32.xlu0 %v1030, 64
        %v1035 = vpop.permute.xlu0 %1034
        %v1038 = vunpack.c.l.b16 %v1031
        %v1039 = vunpack.c.l.b16 %v1032
        %v1040 = vpack.c.b16 %v1039, %v1038
        %v1043 = vsel %vm237, %v1035, 0
        %1045 = vmatprep.subr.bf16.mxu0 0
        %1046 = vmatpush1.bf16.msra.mxu0 %v1040
        %1047 = vmatprep.subr.bf16.mxu0 0
        %1048 = vmatpush1.bf16.msra.mxu0 0
        %1049 = vmatprep.subr.bf16.mxu0 0
        %1050 = vmatpush1.bf16.msra.mxu0 0
        %1051 = vmatprep.subr.bf16.mxu0 0
        %1052 = vmatpush1.bf16.msra.mxu0 0
        %1053 = vmatprep.subr.bf16.mxu0 0
        %1054 = vmatpush1.bf16.msra.mxu0 0
        %1055 = vmatprep.subr.bf16.mxu0 0
        %1056 = vmatpush1.bf16.msra.mxu0 0
        %1057 = vmatprep.subr.bf16.mxu0 0
        %1058 = vmatpush1.bf16.msra.mxu0 0
        %1059 = vmatprep.subr.bf16.mxu0 0
        %1060 = vmatpush1.bf16.msra.mxu0 0
        %1061 = vmatprep.subr.bf16.mxu0 0
        %1062 = vmatpush1.bf16.msra.mxu0 0
        %1063 = vmatprep.subr.bf16.mxu0 0
        %1064 = vmatpush1.bf16.msra.mxu0 0
        %1065 = vmatprep.subr.bf16.mxu0 0
        %1066 = vmatpush1.bf16.msra.mxu0 0
        %1067 = vmatprep.subr.bf16.mxu0 0
        %1068 = vmatpush1.bf16.msra.mxu0 0
        %1069 = vmatprep.subr.bf16.mxu0 0
        %1070 = vmatpush1.bf16.msra.mxu0 0
        %1071 = vmatprep.subr.bf16.mxu0 0
        %1072 = vmatpush1.bf16.msra.mxu0 0
        %1073 = vmatprep.subr.bf16.mxu0 0
        %1074 = vmatpush1.bf16.msra.mxu0 0
        %1075 = vmatprep.subr.bf16.mxu0 0
        %1076 = vmatpush1.bf16.msra.mxu0 0
        %1077 = vmatprep.mubr.bf16.mxu0 0
        %1078 = vmatmul.mubr.bf16.gmra.mrb[0].mxu0 %v1043
        %v1079 = vpop.f32.mrb[0].mxu0
        %v1080 = vadd.f32 0.0, %v1079
        %v1081 = vpop.f32.mrb[0].mxu0
        %v1082 = vpop.f32.mrb[0].mxu0
        %v1083 = vpop.f32.mrb[0].mxu0
        %1084 = vdwg.mxu0
        %v1085 = vpack.c.bf16 %v1080, %v1080
        %v1086 = vld [vmem:[%s1] sm:$0x3]
        %v1087 = vld [vmem:[%s283] sm:$0xf]
        %v1088 = vld [vmem:[%s283 + $0x4] sm:$0xf]
        %v1091 = vunpack.c.l.b16 %v1087
        %v1092 = vunpack.c.l.b16 %v1088
        %v1093 = vpack.c.b16 %v1092, %v1091
        %1095 = vmatprep.subr.bf16.mxu0 0
        %1096 = vmatpush1.bf16.msra.mxu0 %v1093
        %1097 = vmatprep.subr.bf16.mxu0 0
        %1098 = vmatpush1.bf16.msra.mxu0 0
        %1099 = vmatprep.subr.bf16.mxu0 0
        %1100 = vmatpush1.bf16.msra.mxu0 0
        %1101 = vmatprep.subr.bf16.mxu0 0
        %1102 = vmatpush1.bf16.msra.mxu0 0
        %1103 = vmatprep.subr.bf16.mxu0 0
        %1104 = vmatpush1.bf16.msra.mxu0 0
        %1105 = vmatprep.subr.bf16.mxu0 0
        %1106 = vmatpush1.bf16.msra.mxu0 0
        %1107 = vmatprep.subr.bf16.mxu0 0
        %1108 = vmatpush1.bf16.msra.mxu0 0
        %1109 = vmatprep.subr.bf16.mxu0 0
        %1110 = vmatpush1.bf16.msra.mxu0 0
        %1111 = vmatprep.subr.bf16.mxu0 0
        %1112 = vmatpush1.bf16.msra.mxu0 0
        %1113 = vmatprep.subr.bf16.mxu0 0
        %1114 = vmatpush1.bf16.msra.mxu0 0
        %1115 = vmatprep.subr.bf16.mxu0 0
        %1116 = vmatpush1.bf16.msra.mxu0 0
        %1117 = vmatprep.subr.bf16.mxu0 0
        %1118 = vmatpush1.bf16.msra.mxu0 0
        %1119 = vmatprep.subr.bf16.mxu0 0
        %1120 = vmatpush1.bf16.msra.mxu0 0
        %1121 = vmatprep.subr.bf16.mxu0 0
        %1122 = vmatpush1.bf16.msra.mxu0 0
        %1123 = vmatprep.subr.bf16.mxu0 0
        %1124 = vmatpush1.bf16.msra.mxu0 0
        %1125 = vmatprep.subr.bf16.mxu0 0
        %1126 = vmatpush1.bf16.msra.mxu0 0
        %1127 = vmatprep.mubr.bf16.mxu0 0
        %1128 = vmatmul.mubr.bf16.gmra.mrb[0].mxu0 %v1043
        %v1129 = vpop.f32.mrb[0].mxu0
        %v1130 = vadd.f32 0.0, %v1129
        %v1131 = vpop.f32.mrb[0].mxu0
        %v1132 = vpop.f32.mrb[0].mxu0
        %v1133 = vpop.f32.mrb[0].mxu0
        %1134 = vdwg.mxu0
        %v1135 = vpack.c.bf16 %v1130, %v1130
        %v1136 = vld [vmem:[%s333] sm:$0x3]
        %v1138 = vsel %vm335, %v1136, 0
        %v1141 = vsel %vm339, %v1135, 0
        %1143 = vmatprep.subr.bf16.mxu0 0
        %1144 = vmatpush1.bf16.msra.mxu0 %v1141
        %1145 = vmatprep.subr.bf16.mxu0 0
        %1146 = vmatpush1.bf16.msra.mxu0 0
        %1147 = vmatprep.subr.bf16.mxu0 0
        %1148 = vmatpush1.bf16.msra.mxu0 0
        %1149 = vmatprep.subr.bf16.mxu0 0
        %1150 = vmatpush1.bf16.msra.mxu0 0
        %1151 = vmatprep.subr.bf16.mxu0 0
        %1152 = vmatpush1.bf16.msra.mxu0 0
        %1153 = vmatprep.subr.bf16.mxu0 0
        %1154 = vmatpush1.bf16.msra.mxu0 0
        %1155 = vmatprep.subr.bf16.mxu0 0
        %1156 = vmatpush1.bf16.msra.mxu0 0
        %1157 = vmatprep.subr.bf16.mxu0 0
        %1158 = vmatpush1.bf16.msra.mxu0 0
        %1159 = vmatprep.subr.bf16.mxu0 0
        %1160 = vmatpush1.bf16.msra.mxu0 0
        %1161 = vmatprep.subr.bf16.mxu0 0
        %1162 = vmatpush1.bf16.msra.mxu0 0
        %1163 = vmatprep.subr.bf16.mxu0 0
        %1164 = vmatpush1.bf16.msra.mxu0 0
        %1165 = vmatprep.subr.bf16.mxu0 0
        %1166 = vmatpush1.bf16.msra.mxu0 0
        %1167 = vmatprep.subr.bf16.mxu0 0
        %1168 = vmatpush1.bf16.msra.mxu0 0
        %1169 = vmatprep.subr.bf16.mxu0 0
        %1170 = vmatpush1.bf16.msra.mxu0 0
        %1171 = vmatprep.subr.bf16.mxu0 0
        %1172 = vmatpush1.bf16.msra.mxu0 0
        %1173 = vmatprep.subr.bf16.mxu0 0
        %1174 = vmatpush1.bf16.msra.mxu0 0
        %1175 = vmatprep.mubr.bf16.mxu0 0
        %1176 = vmatmul.mubr.bf16.gmra.mrb[0].mxu0 %v1138
        %v1177 = vpop.f32.mrb[0].mxu0
        %v1178 = vadd.f32 0.0, %v1177
        %v1179 = vpop.f32.mrb[0].mxu0
        %v1180 = vpop.f32.mrb[0].mxu0
        %v1181 = vpop.f32.mrb[0].mxu0
        %1182 = vdwg.mxu0
        %v1184 = vsel %vm335, %v1086, 0
        %v1187 = vsel %vm339, %v1085, 0
        %1189 = vmatprep.subr.bf16.mxu0 0
        %1190 = vmatpush1.bf16.msra.mxu0 %v1187
        %1191 = vmatprep.subr.bf16.mxu0 0
        %1192 = vmatpush1.bf16.msra.mxu0 0
        %1193 = vmatprep.subr.bf16.mxu0 0
        %1194 = vmatpush1.bf16.msra.mxu0 0
        %1195 = vmatprep.subr.bf16.mxu0 0
        %1196 = vmatpush1.bf16.msra.mxu0 0
        %1197 = vmatprep.subr.bf16.mxu0 0
        %1198 = vmatpush1.bf16.msra.mxu0 0
        %1199 = vmatprep.subr.bf16.mxu0 0
        %1200 = vmatpush1.bf16.msra.mxu0 0
        %1201 = vmatprep.subr.bf16.mxu0 0
        %1202 = vmatpush1.bf16.msra.mxu0 0
        %1203 = vmatprep.subr.bf16.mxu0 0
        %1204 = vmatpush1.bf16.msra.mxu0 0
        %1205 = vmatprep.subr.bf16.mxu0 0
        %1206 = vmatpush1.bf16.msra.mxu0 0
        %1207 = vmatprep.subr.bf16.mxu0 0
        %1208 = vmatpush1.bf16.msra.mxu0 0
        %1209 = vmatprep.subr.bf16.mxu0 0
        %1210 = vmatpush1.bf16.msra.mxu0 0
        %1211 = vmatprep.subr.bf16.mxu0 0
        %1212 = vmatpush1.bf16.msra.mxu0 0
        %1213 = vmatprep.subr.bf16.mxu0 0
        %1214 = vmatpush1.bf16.msra.mxu0 0
        %1215 = vmatprep.subr.bf16.mxu0 0
        %1216 = vmatpush1.bf16.msra.mxu0 0
        %1217 = vmatprep.subr.bf16.mxu0 0
        %1218 = vmatpush1.bf16.msra.mxu0 0
        %1219 = vmatprep.subr.bf16.mxu0 0
        %1220 = vmatpush1.bf16.msra.mxu0 0
        %1221 = vmatprep.mubr.bf16.mxu0 0
        %1222 = vmatmul.mubr.bf16.gmra.mrb[0].mxu0 %v1184
        %v1223 = vpop.f32.mrb[0].mxu0
        %v1224 = vadd.f32 %v1178, %v1223
        %v1225 = vpop.f32.mrb[0].mxu0
        %v1226 = vpop.f32.mrb[0].mxu0
        %v1227 = vpop.f32.mrb[0].mxu0
        %1228 = vdwg.mxu0
        %1229 = vrot.lane.b32.xlu0 %v1030, 48
        %v1230 = vpop.permute.xlu0 %1229
        %v1232 = vsel %vm237, %v1230, 0
        %1234 = vmatprep.subr.bf16.mxu0 0
        %1235 = vmatpush1.bf16.msra.mxu0 %v1040
        %1236 = vmatprep.subr.bf16.mxu0 0
        %1237 = vmatpush1.bf16.msra.mxu0 0
        %1238 = vmatprep.subr.bf16.mxu0 0
        %1239 = vmatpush1.bf16.msra.mxu0 0
        %1240 = vmatprep.subr.bf16.mxu0 0
        %1241 = vmatpush1.bf16.msra.mxu0 0
        %1242 = vmatprep.subr.bf16.mxu0 0
        %1243 = vmatpush1.bf16.msra.mxu0 0
        %1244 = vmatprep.subr.bf16.mxu0 0
        %1245 = vmatpush1.bf16.msra.mxu0 0
        %1246 = vmatprep.subr.bf16.mxu0 0
        %1247 = vmatpush1.bf16.msra.mxu0 0
        %1248 = vmatprep.subr.bf16.mxu0 0
        %1249 = vmatpush1.bf16.msra.mxu0 0
        %1250 = vmatprep.subr.bf16.mxu0 0
        %1251 = vmatpush1.bf16.msra.mxu0 0
        %1252 = vmatprep.subr.bf16.mxu0 0
        %1253 = vmatpush1.bf16.msra.mxu0 0
        %1254 = vmatprep.subr.bf16.mxu0 0
        %1255 = vmatpush1.bf16.msra.mxu0 0
        %1256 = vmatprep.subr.bf16.mxu0 0
        %1257 = vmatpush1.bf16.msra.mxu0 0
        %1258 = vmatprep.subr.bf16.mxu0 0
        %1259 = vmatpush1.bf16.msra.mxu0 0
        %1260 = vmatprep.subr.bf16.mxu0 0
        %1261 = vmatpush1.bf16.msra.mxu0 0
        %1262 = vmatprep.subr.bf16.mxu0 0
        %1263 = vmatpush1.bf16.msra.mxu0 0
        %1264 = vmatprep.subr.bf16.mxu0 0
        %1265 = vmatpush1.bf16.msra.mxu0 0
        %1266 = vmatprep.mubr.bf16.mxu0 0
        %1267 = vmatmul.mubr.bf16.gmra.mrb[0].mxu0 %v1232
        %v1268 = vpop.f32.mrb[0].mxu0
        %v1269 = vadd.f32 0.0, %v1268
        %v1270 = vpop.f32.mrb[0].mxu0
        %v1271 = vpop.f32.mrb[0].mxu0
        %v1272 = vpop.f32.mrb[0].mxu0
        %1273 = vdwg.mxu0
        %v1274 = vpack.c.bf16 %v1269, %v1269
        %v1275 = vld [vmem:[%s476] sm:$0x3]
        %v1277 = vsel %vm335, %v1275, 0
        %v1280 = vsel %vm339, %v1274, 0
        %1282 = vmatprep.subr.bf16.mxu0 0
        %1283 = vmatpush1.bf16.msra.mxu0 %v1280
        %1284 = vmatprep.subr.bf16.mxu0 0
        %1285 = vmatpush1.bf16.msra.mxu0 0
        %1286 = vmatprep.subr.bf16.mxu0 0
        %1287 = vmatpush1.bf16.msra.mxu0 0
        %1288 = vmatprep.subr.bf16.mxu0 0
        %1289 = vmatpush1.bf16.msra.mxu0 0
        %1290 = vmatprep.subr.bf16.mxu0 0
        %1291 = vmatpush1.bf16.msra.mxu0 0
        %1292 = vmatprep.subr.bf16.mxu0 0
        %1293 = vmatpush1.bf16.msra.mxu0 0
        %1294 = vmatprep.subr.bf16.mxu0 0
        %1295 = vmatpush1.bf16.msra.mxu0 0
        %1296 = vmatprep.subr.bf16.mxu0 0
        %1297 = vmatpush1.bf16.msra.mxu0 0
        %1298 = vmatprep.subr.bf16.mxu0 0
        %1299 = vmatpush1.bf16.msra.mxu0 0
        %1300 = vmatprep.subr.bf16.mxu0 0
        %1301 = vmatpush1.bf16.msra.mxu0 0
        %1302 = vmatprep.subr.bf16.mxu0 0
        %1303 = vmatpush1.bf16.msra.mxu0 0
        %1304 = vmatprep.subr.bf16.mxu0 0
        %1305 = vmatpush1.bf16.msra.mxu0 0
        %1306 = vmatprep.subr.bf16.mxu0 0
        %1307 = vmatpush1.bf16.msra.mxu0 0
        %1308 = vmatprep.subr.bf16.mxu0 0
        %1309 = vmatpush1.bf16.msra.mxu0 0
        %1310 = vmatprep.subr.bf16.mxu0 0
        %1311 = vmatpush1.bf16.msra.mxu0 0
        %1312 = vmatprep.subr.bf16.mxu0 0
        %1313 = vmatpush1.bf16.msra.mxu0 0
        %1314 = vmatprep.mubr.bf16.mxu0 0
        %1315 = vmatmul.mubr.bf16.gmra.mrb[0].mxu0 %v1277
        %v1316 = vpop.f32.mrb[0].mxu0
        %v1317 = vadd.f32 0.0, %v1316
        %v1318 = vpop.f32.mrb[0].mxu0
        %v1319 = vpop.f32.mrb[0].mxu0
        %v1320 = vpop.f32.mrb[0].mxu0
        %1321 = vdwg.mxu0
        %v1322 = vadd.f32 %v1224, %v1317
        %1323 = vmatprep.subr.bf16.mxu0 0
        %1324 = vmatpush1.bf16.msra.mxu0 %v1093
        %1325 = vmatprep.subr.bf16.mxu0 0
        %1326 = vmatpush1.bf16.msra.mxu0 0
        %1327 = vmatprep.subr.bf16.mxu0 0
        %1328 = vmatpush1.bf16.msra.mxu0 0
        %1329 = vmatprep.subr.bf16.mxu0 0
        %1330 = vmatpush1.bf16.msra.mxu0 0
        %1331 = vmatprep.subr.bf16.mxu0 0
        %1332 = vmatpush1.bf16.msra.mxu0 0
        %1333 = vmatprep.subr.bf16.mxu0 0
        %1334 = vmatpush1.bf16.msra.mxu0 0
        %1335 = vmatprep.subr.bf16.mxu0 0
        %1336 = vmatpush1.bf16.msra.mxu0 0
        %1337 = vmatprep.subr.bf16.mxu0 0
        %1338 = vmatpush1.bf16.msra.mxu0 0
        %1339 = vmatprep.subr.bf16.mxu0 0
        %1340 = vmatpush1.bf16.msra.mxu0 0
        %1341 = vmatprep.subr.bf16.mxu0 0
        %1342 = vmatpush1.bf16.msra.mxu0 0
        %1343 = vmatprep.subr.bf16.mxu0 0
        %1344 = vmatpush1.bf16.msra.mxu0 0
        %1345 = vmatprep.subr.bf16.mxu0 0
        %1346 = vmatpush1.bf16.msra.mxu0 0
        %1347 = vmatprep.subr.bf16.mxu0 0
        %1348 = vmatpush1.bf16.msra.mxu0 0
        %1349 = vmatprep.subr.bf16.mxu0 0
        %1350 = vmatpush1.bf16.msra.mxu0 0
        %1351 = vmatprep.subr.bf16.mxu0 0
        %1352 = vmatpush1.bf16.msra.mxu0 0
        %1353 = vmatprep.subr.bf16.mxu0 0
        %1354 = vmatpush1.bf16.msra.mxu0 0
        %1355 = vmatprep.mubr.bf16.mxu0 0
        %1356 = vmatmul.mubr.bf16.gmra.mrb[0].mxu0 %v1232
        %v1357 = vpop.f32.mrb[0].mxu0
        %v1358 = vadd.f32 0.0, %v1357
        %v1359 = vpop.f32.mrb[0].mxu0
        %v1360 = vpop.f32.mrb[0].mxu0
        %v1361 = vpop.f32.mrb[0].mxu0
        %1362 = vdwg.mxu0
        %v1363 = vpack.c.bf16 %v1358, %v1358
        %v1364 = vld [vmem:[%s566] sm:$0x3]
        %v1366 = vsel %vm335, %v1364, 0
        %v1369 = vsel %vm339, %v1363, 0
        %1371 = vmatprep.subr.bf16.mxu0 0
        %1372 = vmatpush1.bf16.msra.mxu0 %v1369
        %1373 = vmatprep.subr.bf16.mxu0 0
        %1374 = vmatpush1.bf16.msra.mxu0 0
        %1375 = vmatprep.subr.bf16.mxu0 0
        %1376 = vmatpush1.bf16.msra.mxu0 0
        %1377 = vmatprep.subr.bf16.mxu0 0
        %1378 = vmatpush1.bf16.msra.mxu0 0
        %1379 = vmatprep.subr.bf16.mxu0 0
        %1380 = vmatpush1.bf16.msra.mxu0 0
        %1381 = vmatprep.subr.bf16.mxu0 0
        %1382 = vmatpush1.bf16.msra.mxu0 0
        %1383 = vmatprep.subr.bf16.mxu0 0
        %1384 = vmatpush1.bf16.msra.mxu0 0
        %1385 = vmatprep.subr.bf16.mxu0 0
        %1386 = vmatpush1.bf16.msra.mxu0 0
        %1387 = vmatprep.subr.bf16.mxu0 0
        %1388 = vmatpush1.bf16.msra.mxu0 0
        %1389 = vmatprep.subr.bf16.mxu0 0
        %1390 = vmatpush1.bf16.msra.mxu0 0
        %1391 = vmatprep.subr.bf16.mxu0 0
        %1392 = vmatpush1.bf16.msra.mxu0 0
        %1393 = vmatprep.subr.bf16.mxu0 0
        %1394 = vmatpush1.bf16.msra.mxu0 0
        %1395 = vmatprep.subr.bf16.mxu0 0
        %1396 = vmatpush1.bf16.msra.mxu0 0
        %1397 = vmatprep.subr.bf16.mxu0 0
        %1398 = vmatpush1.bf16.msra.mxu0 0
        %1399 = vmatprep.subr.bf16.mxu0 0
        %1400 = vmatpush1.bf16.msra.mxu0 0
        %1401 = vmatprep.subr.bf16.mxu0 0
        %1402 = vmatpush1.bf16.msra.mxu0 0
        %1403 = vmatprep.mubr.bf16.mxu0 0
        %1404 = vmatmul.mubr.bf16.gmra.mrb[0].mxu0 %v1366
        %v1405 = vpop.f32.mrb[0].mxu0
        %v1406 = vadd.f32 0.0, %v1405
        %v1407 = vpop.f32.mrb[0].mxu0
        %v1408 = vpop.f32.mrb[0].mxu0
        %v1409 = vpop.f32.mrb[0].mxu0
        %1410 = vdwg.mxu0
        %v1411 = vadd.f32 %v1322, %v1406
        %v1412 = vld [vmem:[%s3] sm:$0xf]
        %1414 = vset.pattern.permute.xlu0 0
        %1415 = vperm.xlu0 %1414, %v1412
        %v1416 = vpop.permute.xlu0 %1415
        %v1418 = vadd.f32 %v1411, %v1416
        %v1419 = vpack.c.bf16 %v1418, %v1418
        %v1422 = vunpack.c.l.s4 1983009808
        %v1423 = vunpack.c.0.s8 %v1422
        %v1424 = vlaneseq
        %v1425 = vshrl.u32 %v1424, 7
        %v1426 = vsub.s32 %v1423, %v1425
        %v1427 = vrot.slane %v1419, %v1426
        %1428 = vrot.lane.b32.xlu0 %v1427, 16
        %v1429 = vpop.permute.xlu0 %1428
        %vm1431 = vcmask 189568
        %1432 = vst.msk [vmem:[%s215] sm:$0x3] %vm1431, %v1429
        %v1433 = vld [vmem:[%s224] sm:$0xf]
        %v1434 = vpack.c.bf16 %v1433, %v1433
        %v1435 = vld [vmem:[%s2] sm:$0xf]
        %v1436 = vld [vmem:[%s2 + $0x4] sm:$0xf]
        %1438 = vrot.lane.b32.xlu0 %v1434, 32
        %v1439 = vpop.permute.xlu0 %1438
        %v1442 = vunpack.c.l.b16 %v1435
        %v1443 = vunpack.c.l.b16 %v1436
        %v1444 = vpack.c.b16 %v1443, %v1442
        %v1447 = vsel %vm237, %v1439, 0
        %1449 = vmatprep.subr.bf16.mxu0 0
        %1450 = vmatpush1.bf16.msra.mxu0 %v1444
        %1451 = vmatprep.subr.bf16.mxu0 0
        %1452 = vmatpush1.bf16.msra.mxu0 0
        %1453 = vmatprep.subr.bf16.mxu0 0
        %1454 = vmatpush1.bf16.msra.mxu0 0
        %1455 = vmatprep.subr.bf16.mxu0 0
        %1456 = vmatpush1.bf16.msra.mxu0 0
        %1457 = vmatprep.subr.bf16.mxu0 0
        %1458 = vmatpush1.bf16.msra.mxu0 0
        %1459 = vmatprep.subr.bf16.mxu0 0
        %1460 = vmatpush1.bf16.msra.mxu0 0
        %1461 = vmatprep.subr.bf16.mxu0 0
        %1462 = vmatpush1.bf16.msra.mxu0 0
        %1463 = vmatprep.subr.bf16.mxu0 0
        %1464 = vmatpush1.bf16.msra.mxu0 0
        %1465 = vmatprep.subr.bf16.mxu0 0
        %1466 = vmatpush1.bf16.msra.mxu0 0
        %1467 = vmatprep.subr.bf16.mxu0 0
        %1468 = vmatpush1.bf16.msra.mxu0 0
        %1469 = vmatprep.subr.bf16.mxu0 0
        %1470 = vmatpush1.bf16.msra.mxu0 0
        %1471 = vmatprep.subr.bf16.mxu0 0
        %1472 = vmatpush1.bf16.msra.mxu0 0
        %1473 = vmatprep.subr.bf16.mxu0 0
        %1474 = vmatpush1.bf16.msra.mxu0 0
        %1475 = vmatprep.subr.bf16.mxu0 0
        %1476 = vmatpush1.bf16.msra.mxu0 0
        %1477 = vmatprep.subr.bf16.mxu0 0
        %1478 = vmatpush1.bf16.msra.mxu0 0
        %1479 = vmatprep.subr.bf16.mxu0 0
        %1480 = vmatpush1.bf16.msra.mxu0 0
        %1481 = vmatprep.mubr.bf16.mxu0 0
        %1482 = vmatmul.mubr.bf16.gmra.mrb[0].mxu0 %v1447
        %v1483 = vpop.f32.mrb[0].mxu0
        %v1484 = vadd.f32 0.0, %v1483
        %v1485 = vpop.f32.mrb[0].mxu0
        %v1486 = vpop.f32.mrb[0].mxu0
        %v1487 = vpop.f32.mrb[0].mxu0
        %1488 = vdwg.mxu0
        %v1489 = vpack.c.bf16 %v1484, %v1484
        %v1490 = vld [vmem:[%s1] sm:$0x3]
        %v1491 = vld [vmem:[%s283] sm:$0xf]
        %v1492 = vld [vmem:[%s283 + $0x4] sm:$0xf]
        %v1495 = vunpack.c.l.b16 %v1491
        %v1496 = vunpack.c.l.b16 %v1492
        %v1497 = vpack.c.b16 %v1496, %v1495
        %1499 = vmatprep.subr.bf16.mxu0 0
        %1500 = vmatpush1.bf16.msra.mxu0 %v1497
        %1501 = vmatprep.subr.bf16.mxu0 0
        %1502 = vmatpush1.bf16.msra.mxu0 0
        %1503 = vmatprep.subr.bf16.mxu0 0
        %1504 = vmatpush1.bf16.msra.mxu0 0
        %1505 = vmatprep.subr.bf16.mxu0 0
        %1506 = vmatpush1.bf16.msra.mxu0 0
        %1507 = vmatprep.subr.bf16.mxu0 0
        %1508 = vmatpush1.bf16.msra.mxu0 0
        %1509 = vmatprep.subr.bf16.mxu0 0
        %1510 = vmatpush1.bf16.msra.mxu0 0
        %1511 = vmatprep.subr.bf16.mxu0 0
        %1512 = vmatpush1.bf16.msra.mxu0 0
        %1513 = vmatprep.subr.bf16.mxu0 0
        %1514 = vmatpush1.bf16.msra.mxu0 0
        %1515 = vmatprep.subr.bf16.mxu0 0
        %1516 = vmatpush1.bf16.msra.mxu0 0
        %1517 = vmatprep.subr.bf16.mxu0 0
        %1518 = vmatpush1.bf16.msra.mxu0 0
        %1519 = vmatprep.subr.bf16.mxu0 0
        %1520 = vmatpush1.bf16.msra.mxu0 0
        %1521 = vmatprep.subr.bf16.mxu0 0
        %1522 = vmatpush1.bf16.msra.mxu0 0
        %1523 = vmatprep.subr.bf16.mxu0 0
        %1524 = vmatpush1.bf16.msra.mxu0 0
        %1525 = vmatprep.subr.bf16.mxu0 0
        %1526 = vmatpush1.bf16.msra.mxu0 0
        %1527 = vmatprep.subr.bf16.mxu0 0
        %1528 = vmatpush1.bf16.msra.mxu0 0
        %1529 = vmatprep.subr.bf16.mxu0 0
        %1530 = vmatpush1.bf16.msra.mxu0 0
        %1531 = vmatprep.mubr.bf16.mxu0 0
        %1532 = vmatmul.mubr.bf16.gmra.mrb[0].mxu0 %v1447
        %v1533 = vpop.f32.mrb[0].mxu0
        %v1534 = vadd.f32 0.0, %v1533
        %v1535 = vpop.f32.mrb[0].mxu0
        %v1536 = vpop.f32.mrb[0].mxu0
        %v1537 = vpop.f32.mrb[0].mxu0
        %1538 = vdwg.mxu0
        %v1539 = vpack.c.bf16 %v1534, %v1534
        %v1540 = vld [vmem:[%s333] sm:$0x3]
        %v1542 = vsel %vm335, %v1540, 0
        %v1545 = vsel %vm339, %v1539, 0
        %1547 = vmatprep.subr.bf16.mxu0 0
        %1548 = vmatpush1.bf16.msra.mxu0 %v1545
        %1549 = vmatprep.subr.bf16.mxu0 0
        %1550 = vmatpush1.bf16.msra.mxu0 0
        %1551 = vmatprep.subr.bf16.mxu0 0
        %1552 = vmatpush1.bf16.msra.mxu0 0
        %1553 = vmatprep.subr.bf16.mxu0 0
        %1554 = vmatpush1.bf16.msra.mxu0 0
        %1555 = vmatprep.subr.bf16.mxu0 0
        %1556 = vmatpush1.bf16.msra.mxu0 0
        %1557 = vmatprep.subr.bf16.mxu0 0
        %1558 = vmatpush1.bf16.msra.mxu0 0
        %1559 = vmatprep.subr.bf16.mxu0 0
        %1560 = vmatpush1.bf16.msra.mxu0 0
        %1561 = vmatprep.subr.bf16.mxu0 0
        %1562 = vmatpush1.bf16.msra.mxu0 0
        %1563 = vmatprep.subr.bf16.mxu0 0
        %1564 = vmatpush1.bf16.msra.mxu0 0
        %1565 = vmatprep.subr.bf16.mxu0 0
        %1566 = vmatpush1.bf16.msra.mxu0 0
        %1567 = vmatprep.subr.bf16.mxu0 0
        %1568 = vmatpush1.bf16.msra.mxu0 0
        %1569 = vmatprep.subr.bf16.mxu0 0
        %1570 = vmatpush1.bf16.msra.mxu0 0
        %1571 = vmatprep.subr.bf16.mxu0 0
        %1572 = vmatpush1.bf16.msra.mxu0 0
        %1573 = vmatprep.subr.bf16.mxu0 0
        %1574 = vmatpush1.bf16.msra.mxu0 0
        %1575 = vmatprep.subr.bf16.mxu0 0
        %1576 = vmatpush1.bf16.msra.mxu0 0
        %1577 = vmatprep.subr.bf16.mxu0 0
        %1578 = vmatpush1.bf16.msra.mxu0 0
        %1579 = vmatprep.mubr.bf16.mxu0 0
        %1580 = vmatmul.mubr.bf16.gmra.mrb[0].mxu0 %v1542
        %v1581 = vpop.f32.mrb[0].mxu0
        %v1582 = vadd.f32 0.0, %v1581
        %v1583 = vpop.f32.mrb[0].mxu0
        %v1584 = vpop.f32.mrb[0].mxu0
        %v1585 = vpop.f32.mrb[0].mxu0
        %1586 = vdwg.mxu0
        %v1588 = vsel %vm335, %v1490, 0
        %v1591 = vsel %vm339, %v1489, 0
        %1593 = vmatprep.subr.bf16.mxu0 0
        %1594 = vmatpush1.bf16.msra.mxu0 %v1591
        %1595 = vmatprep.subr.bf16.mxu0 0
        %1596 = vmatpush1.bf16.msra.mxu0 0
        %1597 = vmatprep.subr.bf16.mxu0 0
        %1598 = vmatpush1.bf16.msra.mxu0 0
        %1599 = vmatprep.subr.bf16.mxu0 0
        %1600 = vmatpush1.bf16.msra.mxu0 0
        %1601 = vmatprep.subr.bf16.mxu0 0
        %1602 = vmatpush1.bf16.msra.mxu0 0
        %1603 = vmatprep.subr.bf16.mxu0 0
        %1604 = vmatpush1.bf16.msra.mxu0 0
        %1605 = vmatprep.subr.bf16.mxu0 0
        %1606 = vmatpush1.bf16.msra.mxu0 0
        %1607 = vmatprep.subr.bf16.mxu0 0
        %1608 = vmatpush1.bf16.msra.mxu0 0
        %1609 = vmatprep.subr.bf16.mxu0 0
        %1610 = vmatpush1.bf16.msra.mxu0 0
        %1611 = vmatprep.subr.bf16.mxu0 0
        %1612 = vmatpush1.bf16.msra.mxu0 0
        %1613 = vmatprep.subr.bf16.mxu0 0
        %1614 = vmatpush1.bf16.msra.mxu0 0
        %1615 = vmatprep.subr.bf16.mxu0 0
        %1616 = vmatpush1.bf16.msra.mxu0 0
        %1617 = vmatprep.subr.bf16.mxu0 0
        %1618 = vmatpush1.bf16.msra.mxu0 0
        %1619 = vmatprep.subr.bf16.mxu0 0
        %1620 = vmatpush1.bf16.msra.mxu0 0
        %1621 = vmatprep.subr.bf16.mxu0 0
        %1622 = vmatpush1.bf16.msra.mxu0 0
        %1623 = vmatprep.subr.bf16.mxu0 0
        %1624 = vmatpush1.bf16.msra.mxu0 0
        %1625 = vmatprep.mubr.bf16.mxu0 0
        %1626 = vmatmul.mubr.bf16.gmra.mrb[0].mxu0 %v1588
        %v1627 = vpop.f32.mrb[0].mxu0
        %v1628 = vadd.f32 %v1582, %v1627
        %v1629 = vpop.f32.mrb[0].mxu0
        %v1630 = vpop.f32.mrb[0].mxu0
        %v1631 = vpop.f32.mrb[0].mxu0
        %1632 = vdwg.mxu0
        %1633 = vrot.lane.b32.xlu0 %v1434, 16
        %v1634 = vpop.permute.xlu0 %1633
        %v1636 = vsel %vm237, %v1634, 0
        %1638 = vmatprep.subr.bf16.mxu0 0
        %1639 = vmatpush1.bf16.msra.mxu0 %v1444
        %1640 = vmatprep.subr.bf16.mxu0 0
        %1641 = vmatpush1.bf16.msra.mxu0 0
        %1642 = vmatprep.subr.bf16.mxu0 0
        %1643 = vmatpush1.bf16.msra.mxu0 0
        %1644 = vmatprep.subr.bf16.mxu0 0
        %1645 = vmatpush1.bf16.msra.mxu0 0
        %1646 = vmatprep.subr.bf16.mxu0 0
        %1647 = vmatpush1.bf16.msra.mxu0 0
        %1648 = vmatprep.subr.bf16.mxu0 0
        %1649 = vmatpush1.bf16.msra.mxu0 0
        %1650 = vmatprep.subr.bf16.mxu0 0
        %1651 = vmatpush1.bf16.msra.mxu0 0
        %1652 = vmatprep.subr.bf16.mxu0 0
        %1653 = vmatpush1.bf16.msra.mxu0 0
        %1654 = vmatprep.subr.bf16.mxu0 0
        %1655 = vmatpush1.bf16.msra.mxu0 0
        %1656 = vmatprep.subr.bf16.mxu0 0
        %1657 = vmatpush1.bf16.msra.mxu0 0
        %1658 = vmatprep.subr.bf16.mxu0 0
        %1659 = vmatpush1.bf16.msra.mxu0 0
        %1660 = vmatprep.subr.bf16.mxu0 0
        %1661 = vmatpush1.bf16.msra.mxu0 0
        %1662 = vmatprep.subr.bf16.mxu0 0
        %1663 = vmatpush1.bf16.msra.mxu0 0
        %1664 = vmatprep.subr.bf16.mxu0 0
        %1665 = vmatpush1.bf16.msra.mxu0 0
        %1666 = vmatprep.subr.bf16.mxu0 0
        %1667 = vmatpush1.bf16.msra.mxu0 0
        %1668 = vmatprep.subr.bf16.mxu0 0
        %1669 = vmatpush1.bf16.msra.mxu0 0
        %1670 = vmatprep.mubr.bf16.mxu0 0
        %1671 = vmatmul.mubr.bf16.gmra.mrb[0].mxu0 %v1636
        %v1672 = vpop.f32.mrb[0].mxu0
        %v1673 = vadd.f32 0.0, %v1672
        %v1674 = vpop.f32.mrb[0].mxu0
        %v1675 = vpop.f32.mrb[0].mxu0
        %v1676 = vpop.f32.mrb[0].mxu0
        %1677 = vdwg.mxu0
        %v1678 = vpack.c.bf16 %v1673, %v1673
        %v1679 = vld [vmem:[%s476] sm:$0x3]
        %v1681 = vsel %vm335, %v1679, 0
        %v1684 = vsel %vm339, %v1678, 0
        %1686 = vmatprep.subr.bf16.mxu0 0
        %1687 = vmatpush1.bf16.msra.mxu0 %v1684
        %1688 = vmatprep.subr.bf16.mxu0 0
        %1689 = vmatpush1.bf16.msra.mxu0 0
        %1690 = vmatprep.subr.bf16.mxu0 0
        %1691 = vmatpush1.bf16.msra.mxu0 0
        %1692 = vmatprep.subr.bf16.mxu0 0
        %1693 = vmatpush1.bf16.msra.mxu0 0
        %1694 = vmatprep.subr.bf16.mxu0 0
        %1695 = vmatpush1.bf16.msra.mxu0 0
        %1696 = vmatprep.subr.bf16.mxu0 0
        %1697 = vmatpush1.bf16.msra.mxu0 0
        %1698 = vmatprep.subr.bf16.mxu0 0
        %1699 = vmatpush1.bf16.msra.mxu0 0
        %1700 = vmatprep.subr.bf16.mxu0 0
        %1701 = vmatpush1.bf16.msra.mxu0 0
        %1702 = vmatprep.subr.bf16.mxu0 0
        %1703 = vmatpush1.bf16.msra.mxu0 0
        %1704 = vmatprep.subr.bf16.mxu0 0
        %1705 = vmatpush1.bf16.msra.mxu0 0
        %1706 = vmatprep.subr.bf16.mxu0 0
        %1707 = vmatpush1.bf16.msra.mxu0 0
        %1708 = vmatprep.subr.bf16.mxu0 0
        %1709 = vmatpush1.bf16.msra.mxu0 0
        %1710 = vmatprep.subr.bf16.mxu0 0
        %1711 = vmatpush1.bf16.msra.mxu0 0
        %1712 = vmatprep.subr.bf16.mxu0 0
        %1713 = vmatpush1.bf16.msra.mxu0 0
        %1714 = vmatprep.subr.bf16.mxu0 0
        %1715 = vmatpush1.bf16.msra.mxu0 0
        %1716 = vmatprep.subr.bf16.mxu0 0
        %1717 = vmatpush1.bf16.msra.mxu0 0
        %1718 = vmatprep.mubr.bf16.mxu0 0
        %1719 = vmatmul.mubr.bf16.gmra.mrb[0].mxu0 %v1681
        %v1720 = vpop.f32.mrb[0].mxu0
        %v1721 = vadd.f32 0.0, %v1720
        %v1722 = vpop.f32.mrb[0].mxu0
        %v1723 = vpop.f32.mrb[0].mxu0
        %v1724 = vpop.f32.mrb[0].mxu0
        %1725 = vdwg.mxu0
        %v1726 = vadd.f32 %v1628, %v1721
        %1727 = vmatprep.subr.bf16.mxu0 0
        %1728 = vmatpush1.bf16.msra.mxu0 %v1497
        %1729 = vmatprep.subr.bf16.mxu0 0
        %1730 = vmatpush1.bf16.msra.mxu0 0
        %1731 = vmatprep.subr.bf16.mxu0 0
        %1732 = vmatpush1.bf16.msra.mxu0 0
        %1733 = vmatprep.subr.bf16.mxu0 0
        %1734 = vmatpush1.bf16.msra.mxu0 0
        %1735 = vmatprep.subr.bf16.mxu0 0
        %1736 = vmatpush1.bf16.msra.mxu0 0
        %1737 = vmatprep.subr.bf16.mxu0 0
        %1738 = vmatpush1.bf16.msra.mxu0 0
        %1739 = vmatprep.subr.bf16.mxu0 0
        %1740 = vmatpush1.bf16.msra.mxu0 0
        %1741 = vmatprep.subr.bf16.mxu0 0
        %1742 = vmatpush1.bf16.msra.mxu0 0
        %1743 = vmatprep.subr.bf16.mxu0 0
        %1744 = vmatpush1.bf16.msra.mxu0 0
        %1745 = vmatprep.subr.bf16.mxu0 0
        %1746 = vmatpush1.bf16.msra.mxu0 0
        %1747 = vmatprep.subr.bf16.mxu0 0
        %1748 = vmatpush1.bf16.msra.mxu0 0
        %1749 = vmatprep.subr.bf16.mxu0 0
        %1750 = vmatpush1.bf16.msra.mxu0 0
        %1751 = vmatprep.subr.bf16.mxu0 0
        %1752 = vmatpush1.bf16.msra.mxu0 0
        %1753 = vmatprep.subr.bf16.mxu0 0
        %1754 = vmatpush1.bf16.msra.mxu0 0
        %1755 = vmatprep.subr.bf16.mxu0 0
        %1756 = vmatpush1.bf16.msra.mxu0 0
        %1757 = vmatprep.subr.bf16.mxu0 0
        %1758 = vmatpush1.bf16.msra.mxu0 0
        %1759 = vmatprep.mubr.bf16.mxu0 0
        %1760 = vmatmul.mubr.bf16.gmra.mrb[0].mxu0 %v1636
        %v1761 = vpop.f32.mrb[0].mxu0
        %v1762 = vadd.f32 0.0, %v1761
        %v1763 = vpop.f32.mrb[0].mxu0
        %v1764 = vpop.f32.mrb[0].mxu0
        %v1765 = vpop.f32.mrb[0].mxu0
        %1766 = vdwg.mxu0
        %v1767 = vpack.c.bf16 %v1762, %v1762
        %v1768 = vld [vmem:[%s566] sm:$0x3]
        %v1770 = vsel %vm335, %v1768, 0
        %v1773 = vsel %vm339, %v1767, 0
        %1775 = vmatprep.subr.bf16.mxu0 0
        %1776 = vmatpush1.bf16.msra.mxu0 %v1773
        %1777 = vmatprep.subr.bf16.mxu0 0
        %1778 = vmatpush1.bf16.msra.mxu0 0
        %1779 = vmatprep.subr.bf16.mxu0 0
        %1780 = vmatpush1.bf16.msra.mxu0 0
        %1781 = vmatprep.subr.bf16.mxu0 0
        %1782 = vmatpush1.bf16.msra.mxu0 0
        %1783 = vmatprep.subr.bf16.mxu0 0
        %1784 = vmatpush1.bf16.msra.mxu0 0
        %1785 = vmatprep.subr.bf16.mxu0 0
        %1786 = vmatpush1.bf16.msra.mxu0 0
        %1787 = vmatprep.subr.bf16.mxu0 0
        %1788 = vmatpush1.bf16.msra.mxu0 0
        %1789 = vmatprep.subr.bf16.mxu0 0
        %1790 = vmatpush1.bf16.msra.mxu0 0
        %1791 = vmatprep.subr.bf16.mxu0 0
        %1792 = vmatpush1.bf16.msra.mxu0 0
        %1793 = vmatprep.subr.bf16.mxu0 0
        %1794 = vmatpush1.bf16.msra.mxu0 0
        %1795 = vmatprep.subr.bf16.mxu0 0
        %1796 = vmatpush1.bf16.msra.mxu0 0
        %1797 = vmatprep.subr.bf16.mxu0 0
        %1798 = vmatpush1.bf16.msra.mxu0 0
        %1799 = vmatprep.subr.bf16.mxu0 0
        %1800 = vmatpush1.bf16.msra.mxu0 0
        %1801 = vmatprep.subr.bf16.mxu0 0
        %1802 = vmatpush1.bf16.msra.mxu0 0
        %1803 = vmatprep.subr.bf16.mxu0 0
        %1804 = vmatpush1.bf16.msra.mxu0 0
        %1805 = vmatprep.subr.bf16.mxu0 0
        %1806 = vmatpush1.bf16.msra.mxu0 0
        %1807 = vmatprep.mubr.bf16.mxu0 0
        %1808 = vmatmul.mubr.bf16.gmra.mrb[0].mxu0 %v1770
        %v1809 = vpop.f32.mrb[0].mxu0
        %v1810 = vadd.f32 0.0, %v1809
        %v1811 = vpop.f32.mrb[0].mxu0
        %v1812 = vpop.f32.mrb[0].mxu0
        %v1813 = vpop.f32.mrb[0].mxu0
        %1814 = vdwg.mxu0
        %v1815 = vadd.f32 %v1726, %v1810
        %v1816 = vld [vmem:[%s3] sm:$0xf]
        %1818 = vset.pattern.permute.xlu0 0
        %1819 = vperm.xlu0 %1818, %v1816
        %v1820 = vpop.permute.xlu0 %1819
        %v1822 = vadd.f32 %v1815, %v1820
        %v1823 = vpack.c.bf16 %v1822, %v1822
        %v1826 = vunpack.c.l.s4 1983009808
        %v1827 = vunpack.c.0.s8 %v1826
        %v1828 = vlaneseq
        %v1829 = vshrl.u32 %v1828, 7
        %v1830 = vsub.s32 %v1827, %v1829
        %v1831 = vrot.slane %v1823, %v1830
        %1832 = vrot.lane.b32.xlu0 %v1831, 24
        %v1833 = vpop.permute.xlu0 %1832
        %vm1835 = vcmask 255168
        %1836 = vst.msk [vmem:[%s215] sm:$0x3] %vm1835, %v1833
        %v1837 = vld [vmem:[%s224 + $0x4] sm:$0xf]
        %v1838 = vpack.c.bf16 %v1837, %v1837
        %v1839 = vld [vmem:[%s2] sm:$0xf]
        %v1840 = vld [vmem:[%s2 + $0x4] sm:$0xf]
        %v1843 = vunpack.c.l.b16 %v1839
        %v1844 = vunpack.c.l.b16 %v1840
        %v1845 = vpack.c.b16 %v1844, %v1843
        %v1848 = vsel %vm237, %v1838, 0
        %1850 = vmatprep.subr.bf16.mxu0 0
        %1851 = vmatpush1.bf16.msra.mxu0 %v1845
        %1852 = vmatprep.subr.bf16.mxu0 0
        %1853 = vmatpush1.bf16.msra.mxu0 0
        %1854 = vmatprep.subr.bf16.mxu0 0
        %1855 = vmatpush1.bf16.msra.mxu0 0
        %1856 = vmatprep.subr.bf16.mxu0 0
        %1857 = vmatpush1.bf16.msra.mxu0 0
        %1858 = vmatprep.subr.bf16.mxu0 0
        %1859 = vmatpush1.bf16.msra.mxu0 0
        %1860 = vmatprep.subr.bf16.mxu0 0
        %1861 = vmatpush1.bf16.msra.mxu0 0
        %1862 = vmatprep.subr.bf16.mxu0 0
        %1863 = vmatpush1.bf16.msra.mxu0 0
        %1864 = vmatprep.subr.bf16.mxu0 0
        %1865 = vmatpush1.bf16.msra.mxu0 0
        %1866 = vmatprep.subr.bf16.mxu0 0
        %1867 = vmatpush1.bf16.msra.mxu0 0
        %1868 = vmatprep.subr.bf16.mxu0 0
        %1869 = vmatpush1.bf16.msra.mxu0 0
        %1870 = vmatprep.subr.bf16.mxu0 0
        %1871 = vmatpush1.bf16.msra.mxu0 0
        %1872 = vmatprep.subr.bf16.mxu0 0
        %1873 = vmatpush1.bf16.msra.mxu0 0
        %1874 = vmatprep.subr.bf16.mxu0 0
        %1875 = vmatpush1.bf16.msra.mxu0 0
        %1876 = vmatprep.subr.bf16.mxu0 0
        %1877 = vmatpush1.bf16.msra.mxu0 0
        %1878 = vmatprep.subr.bf16.mxu0 0
        %1879 = vmatpush1.bf16.msra.mxu0 0
        %1880 = vmatprep.subr.bf16.mxu0 0
        %1881 = vmatpush1.bf16.msra.mxu0 0
        %1882 = vmatprep.mubr.bf16.mxu0 0
        %1883 = vmatmul.mubr.bf16.gmra.mrb[0].mxu0 %v1848
        %v1884 = vpop.f32.mrb[0].mxu0
        %v1885 = vadd.f32 0.0, %v1884
        %v1886 = vpop.f32.mrb[0].mxu0
        %v1887 = vpop.f32.mrb[0].mxu0
        %v1888 = vpop.f32.mrb[0].mxu0
        %1889 = vdwg.mxu0
        %v1890 = vpack.c.bf16 %v1885, %v1885
        %v1891 = vld [vmem:[%s1] sm:$0x3]
        %v1892 = vld [vmem:[%s283] sm:$0xf]
        %v1893 = vld [vmem:[%s283 + $0x4] sm:$0xf]
        %v1896 = vunpack.c.l.b16 %v1892
        %v1897 = vunpack.c.l.b16 %v1893
        %v1898 = vpack.c.b16 %v1897, %v1896
        %1900 = vmatprep.subr.bf16.mxu0 0
        %1901 = vmatpush1.bf16.msra.mxu0 %v1898
        %1902 = vmatprep.subr.bf16.mxu0 0
        %1903 = vmatpush1.bf16.msra.mxu0 0
        %1904 = vmatprep.subr.bf16.mxu0 0
        %1905 = vmatpush1.bf16.msra.mxu0 0
        %1906 = vmatprep.subr.bf16.mxu0 0
        %1907 = vmatpush1.bf16.msra.mxu0 0
        %1908 = vmatprep.subr.bf16.mxu0 0
        %1909 = vmatpush1.bf16.msra.mxu0 0
        %1910 = vmatprep.subr.bf16.mxu0 0
        %1911 = vmatpush1.bf16.msra.mxu0 0
        %1912 = vmatprep.subr.bf16.mxu0 0
        %1913 = vmatpush1.bf16.msra.mxu0 0
        %1914 = vmatprep.subr.bf16.mxu0 0
        %1915 = vmatpush1.bf16.msra.mxu0 0
        %1916 = vmatprep.subr.bf16.mxu0 0
        %1917 = vmatpush1.bf16.msra.mxu0 0
        %1918 = vmatprep.subr.bf16.mxu0 0
        %1919 = vmatpush1.bf16.msra.mxu0 0
        %1920 = vmatprep.subr.bf16.mxu0 0
        %1921 = vmatpush1.bf16.msra.mxu0 0
        %1922 = vmatprep.subr.bf16.mxu0 0
        %1923 = vmatpush1.bf16.msra.mxu0 0
        %1924 = vmatprep.subr.bf16.mxu0 0
        %1925 = vmatpush1.bf16.msra.mxu0 0
        %1926 = vmatprep.subr.bf16.mxu0 0
        %1927 = vmatpush1.bf16.msra.mxu0 0
        %1928 = vmatprep.subr.bf16.mxu0 0
        %1929 = vmatpush1.bf16.msra.mxu0 0
        %1930 = vmatprep.subr.bf16.mxu0 0
        %1931 = vmatpush1.bf16.msra.mxu0 0
        %1932 = vmatprep.mubr.bf16.mxu0 0
        %1933 = vmatmul.mubr.bf16.gmra.mrb[0].mxu0 %v1848
        %v1934 = vpop.f32.mrb[0].mxu0
        %v1935 = vadd.f32 0.0, %v1934
        %v1936 = vpop.f32.mrb[0].mxu0
        %v1937 = vpop.f32.mrb[0].mxu0
        %v1938 = vpop.f32.mrb[0].mxu0
        %1939 = vdwg.mxu0
        %v1940 = vpack.c.bf16 %v1935, %v1935
        %v1941 = vld [vmem:[%s333] sm:$0x3]
        %v1943 = vsel %vm335, %v1941, 0
        %v1946 = vsel %vm339, %v1940, 0
        %1948 = vmatprep.subr.bf16.mxu0 0
        %1949 = vmatpush1.bf16.msra.mxu0 %v1946
        %1950 = vmatprep.subr.bf16.mxu0 0
        %1951 = vmatpush1.bf16.msra.mxu0 0
        %1952 = vmatprep.subr.bf16.mxu0 0
        %1953 = vmatpush1.bf16.msra.mxu0 0
        %1954 = vmatprep.subr.bf16.mxu0 0
        %1955 = vmatpush1.bf16.msra.mxu0 0
        %1956 = vmatprep.subr.bf16.mxu0 0
        %1957 = vmatpush1.bf16.msra.mxu0 0
        %1958 = vmatprep.subr.bf16.mxu0 0
        %1959 = vmatpush1.bf16.msra.mxu0 0
        %1960 = vmatprep.subr.bf16.mxu0 0
        %1961 = vmatpush1.bf16.msra.mxu0 0
        %1962 = vmatprep.subr.bf16.mxu0 0
        %1963 = vmatpush1.bf16.msra.mxu0 0
        %1964 = vmatprep.subr.bf16.mxu0 0
        %1965 = vmatpush1.bf16.msra.mxu0 0
        %1966 = vmatprep.subr.bf16.mxu0 0
        %1967 = vmatpush1.bf16.msra.mxu0 0
        %1968 = vmatprep.subr.bf16.mxu0 0
        %1969 = vmatpush1.bf16.msra.mxu0 0
        %1970 = vmatprep.subr.bf16.mxu0 0
        %1971 = vmatpush1.bf16.msra.mxu0 0
        %1972 = vmatprep.subr.bf16.mxu0 0
        %1973 = vmatpush1.bf16.msra.mxu0 0
        %1974 = vmatprep.subr.bf16.mxu0 0
        %1975 = vmatpush1.bf16.msra.mxu0 0
        %1976 = vmatprep.subr.bf16.mxu0 0
        %1977 = vmatpush1.bf16.msra.mxu0 0
        %1978 = vmatprep.subr.bf16.mxu0 0
        %1979 = vmatpush1.bf16.msra.mxu0 0
        %1980 = vmatprep.mubr.bf16.mxu0 0
        %1981 = vmatmul.mubr.bf16.gmra.mrb[0].mxu0 %v1943
        %v1982 = vpop.f32.mrb[0].mxu0
        %v1983 = vadd.f32 0.0, %v1982
        %v1984 = vpop.f32.mrb[0].mxu0
        %v1985 = vpop.f32.mrb[0].mxu0
        %v1986 = vpop.f32.mrb[0].mxu0
        %1987 = vdwg.mxu0
        %v1989 = vsel %vm335, %v1891, 0
        %v1992 = vsel %vm339, %v1890, 0
        %1994 = vmatprep.subr.bf16.mxu0 0
        %1995 = vmatpush1.bf16.msra.mxu0 %v1992
        %1996 = vmatprep.subr.bf16.mxu0 0
        %1997 = vmatpush1.bf16.msra.mxu0 0
        %1998 = vmatprep.subr.bf16.mxu0 0
        %1999 = vmatpush1.bf16.msra.mxu0 0
        %2000 = vmatprep.subr.bf16.mxu0 0
        %2001 = vmatpush1.bf16.msra.mxu0 0
        %2002 = vmatprep.subr.bf16.mxu0 0
        %2003 = vmatpush1.bf16.msra.mxu0 0
        %2004 = vmatprep.subr.bf16.mxu0 0
        %2005 = vmatpush1.bf16.msra.mxu0 0
        %2006 = vmatprep.subr.bf16.mxu0 0
        %2007 = vmatpush1.bf16.msra.mxu0 0
        %2008 = vmatprep.subr.bf16.mxu0 0
        %2009 = vmatpush1.bf16.msra.mxu0 0
        %2010 = vmatprep.subr.bf16.mxu0 0
        %2011 = vmatpush1.bf16.msra.mxu0 0
        %2012 = vmatprep.subr.bf16.mxu0 0
        %2013 = vmatpush1.bf16.msra.mxu0 0
        %2014 = vmatprep.subr.bf16.mxu0 0
        %2015 = vmatpush1.bf16.msra.mxu0 0
        %2016 = vmatprep.subr.bf16.mxu0 0
        %2017 = vmatpush1.bf16.msra.mxu0 0
        %2018 = vmatprep.subr.bf16.mxu0 0
        %2019 = vmatpush1.bf16.msra.mxu0 0
        %2020 = vmatprep.subr.bf16.mxu0 0
        %2021 = vmatpush1.bf16.msra.mxu0 0
        %2022 = vmatprep.subr.bf16.mxu0 0
        %2023 = vmatpush1.bf16.msra.mxu0 0
        %2024 = vmatprep.subr.bf16.mxu0 0
        %2025 = vmatpush1.bf16.msra.mxu0 0
        %2026 = vmatprep.mubr.bf16.mxu0 0
        %2027 = vmatmul.mubr.bf16.gmra.mrb[0].mxu0 %v1989
        %v2028 = vpop.f32.mrb[0].mxu0
        %v2029 = vadd.f32 %v1983, %v2028
        %v2030 = vpop.f32.mrb[0].mxu0
        %v2031 = vpop.f32.mrb[0].mxu0
        %v2032 = vpop.f32.mrb[0].mxu0
        %2033 = vdwg.mxu0
        %2035 = vrot.lane.b32.xlu0 %v1838, 112
        %v2036 = vpop.permute.xlu0 %2035
        %v2038 = vsel %vm237, %v2036, 0
        %2040 = vmatprep.subr.bf16.mxu0 0
        %2041 = vmatpush1.bf16.msra.mxu0 %v1845
        %2042 = vmatprep.subr.bf16.mxu0 0
        %2043 = vmatpush1.bf16.msra.mxu0 0
        %2044 = vmatprep.subr.bf16.mxu0 0
        %2045 = vmatpush1.bf16.msra.mxu0 0
        %2046 = vmatprep.subr.bf16.mxu0 0
        %2047 = vmatpush1.bf16.msra.mxu0 0
        %2048 = vmatprep.subr.bf16.mxu0 0
        %2049 = vmatpush1.bf16.msra.mxu0 0
        %2050 = vmatprep.subr.bf16.mxu0 0
        %2051 = vmatpush1.bf16.msra.mxu0 0
        %2052 = vmatprep.subr.bf16.mxu0 0
        %2053 = vmatpush1.bf16.msra.mxu0 0
        %2054 = vmatprep.subr.bf16.mxu0 0
        %2055 = vmatpush1.bf16.msra.mxu0 0
        %2056 = vmatprep.subr.bf16.mxu0 0
        %2057 = vmatpush1.bf16.msra.mxu0 0
        %2058 = vmatprep.subr.bf16.mxu0 0
        %2059 = vmatpush1.bf16.msra.mxu0 0
        %2060 = vmatprep.subr.bf16.mxu0 0
        %2061 = vmatpush1.bf16.msra.mxu0 0
        %2062 = vmatprep.subr.bf16.mxu0 0
        %2063 = vmatpush1.bf16.msra.mxu0 0
        %2064 = vmatprep.subr.bf16.mxu0 0
        %2065 = vmatpush1.bf16.msra.mxu0 0
        %2066 = vmatprep.subr.bf16.mxu0 0
        %2067 = vmatpush1.bf16.msra.mxu0 0
        %2068 = vmatprep.subr.bf16.mxu0 0
        %2069 = vmatpush1.bf16.msra.mxu0 0
        %2070 = vmatprep.subr.bf16.mxu0 0
        %2071 = vmatpush1.bf16.msra.mxu0 0
        %2072 = vmatprep.mubr.bf16.mxu0 0
        %2073 = vmatmul.mubr.bf16.gmra.mrb[0].mxu0 %v2038
        %v2074 = vpop.f32.mrb[0].mxu0
        %v2075 = vadd.f32 0.0, %v2074
        %v2076 = vpop.f32.mrb[0].mxu0
        %v2077 = vpop.f32.mrb[0].mxu0
        %v2078 = vpop.f32.mrb[0].mxu0
        %2079 = vdwg.mxu0
        %v2080 = vpack.c.bf16 %v2075, %v2075
        %v2081 = vld [vmem:[%s476] sm:$0x3]
        %v2083 = vsel %vm335, %v2081, 0
        %v2086 = vsel %vm339, %v2080, 0
        %2088 = vmatprep.subr.bf16.mxu0 0
        %2089 = vmatpush1.bf16.msra.mxu0 %v2086
        %2090 = vmatprep.subr.bf16.mxu0 0
        %2091 = vmatpush1.bf16.msra.mxu0 0
        %2092 = vmatprep.subr.bf16.mxu0 0
        %2093 = vmatpush1.bf16.msra.mxu0 0
        %2094 = vmatprep.subr.bf16.mxu0 0
        %2095 = vmatpush1.bf16.msra.mxu0 0
        %2096 = vmatprep.subr.bf16.mxu0 0
        %2097 = vmatpush1.bf16.msra.mxu0 0
        %2098 = vmatprep.subr.bf16.mxu0 0
        %2099 = vmatpush1.bf16.msra.mxu0 0
        %2100 = vmatprep.subr.bf16.mxu0 0
        %2101 = vmatpush1.bf16.msra.mxu0 0
        %2102 = vmatprep.subr.bf16.mxu0 0
        %2103 = vmatpush1.bf16.msra.mxu0 0
        %2104 = vmatprep.subr.bf16.mxu0 0
        %2105 = vmatpush1.bf16.msra.mxu0 0
        %2106 = vmatprep.subr.bf16.mxu0 0
        %2107 = vmatpush1.bf16.msra.mxu0 0
        %2108 = vmatprep.subr.bf16.mxu0 0
        %2109 = vmatpush1.bf16.msra.mxu0 0
        %2110 = vmatprep.subr.bf16.mxu0 0
        %2111 = vmatpush1.bf16.msra.mxu0 0
        %2112 = vmatprep.subr.bf16.mxu0 0
        %2113 = vmatpush1.bf16.msra.mxu0 0
        %2114 = vmatprep.subr.bf16.mxu0 0
        %2115 = vmatpush1.bf16.msra.mxu0 0
        %2116 = vmatprep.subr.bf16.mxu0 0
        %2117 = vmatpush1.bf16.msra.mxu0 0
        %2118 = vmatprep.subr.bf16.mxu0 0
        %2119 = vmatpush1.bf16.msra.mxu0 0
        %2120 = vmatprep.mubr.bf16.mxu0 0
        %2121 = vmatmul.mubr.bf16.gmra.mrb[0].mxu0 %v2083
        %v2122 = vpop.f32.mrb[0].mxu0
        %v2123 = vadd.f32 0.0, %v2122
        %v2124 = vpop.f32.mrb[0].mxu0
        %v2125 = vpop.f32.mrb[0].mxu0
        %v2126 = vpop.f32.mrb[0].mxu0
        %2127 = vdwg.mxu0
        %v2128 = vadd.f32 %v2029, %v2123
        %2129 = vmatprep.subr.bf16.mxu0 0
        %2130 = vmatpush1.bf16.msra.mxu0 %v1898
        %2131 = vmatprep.subr.bf16.mxu0 0
        %2132 = vmatpush1.bf16.msra.mxu0 0
        %2133 = vmatprep.subr.bf16.mxu0 0
        %2134 = vmatpush1.bf16.msra.mxu0 0
        %2135 = vmatprep.subr.bf16.mxu0 0
        %2136 = vmatpush1.bf16.msra.mxu0 0
        %2137 = vmatprep.subr.bf16.mxu0 0
        %2138 = vmatpush1.bf16.msra.mxu0 0
        %2139 = vmatprep.subr.bf16.mxu0 0
        %2140 = vmatpush1.bf16.msra.mxu0 0
        %2141 = vmatprep.subr.bf16.mxu0 0
        %2142 = vmatpush1.bf16.msra.mxu0 0
        %2143 = vmatprep.subr.bf16.mxu0 0
        %2144 = vmatpush1.bf16.msra.mxu0 0
        %2145 = vmatprep.subr.bf16.mxu0 0
        %2146 = vmatpush1.bf16.msra.mxu0 0
        %2147 = vmatprep.subr.bf16.mxu0 0
        %2148 = vmatpush1.bf16.msra.mxu0 0
        %2149 = vmatprep.subr.bf16.mxu0 0
        %2150 = vmatpush1.bf16.msra.mxu0 0
        %2151 = vmatprep.subr.bf16.mxu0 0
        %2152 = vmatpush1.bf16.msra.mxu0 0
        %2153 = vmatprep.subr.bf16.mxu0 0
        %2154 = vmatpush1.bf16.msra.mxu0 0
        %2155 = vmatprep.subr.bf16.mxu0 0
        %2156 = vmatpush1.bf16.msra.mxu0 0
        %2157 = vmatprep.subr.bf16.mxu0 0
        %2158 = vmatpush1.bf16.msra.mxu0 0
        %2159 = vmatprep.subr.bf16.mxu0 0
        %2160 = vmatpush1.bf16.msra.mxu0 0
        %2161 = vmatprep.mubr.bf16.mxu0 0
        %2162 = vmatmul.mubr.bf16.gmra.mrb[0].mxu0 %v2038
        %v2163 = vpop.f32.mrb[0].mxu0
        %v2164 = vadd.f32 0.0, %v2163
        %v2165 = vpop.f32.mrb[0].mxu0
        %v2166 = vpop.f32.mrb[0].mxu0
        %v2167 = vpop.f32.mrb[0].mxu0
        %2168 = vdwg.mxu0
        %v2169 = vpack.c.bf16 %v2164, %v2164
        %v2170 = vld [vmem:[%s566] sm:$0x3]
        %v2172 = vsel %vm335, %v2170, 0
        %v2175 = vsel %vm339, %v2169, 0
        %2177 = vmatprep.subr.bf16.mxu0 0
        %2178 = vmatpush1.bf16.msra.mxu0 %v2175
        %2179 = vmatprep.subr.bf16.mxu0 0
        %2180 = vmatpush1.bf16.msra.mxu0 0
        %2181 = vmatprep.subr.bf16.mxu0 0
        %2182 = vmatpush1.bf16.msra.mxu0 0
        %2183 = vmatprep.subr.bf16.mxu0 0
        %2184 = vmatpush1.bf16.msra.mxu0 0
        %2185 = vmatprep.subr.bf16.mxu0 0
        %2186 = vmatpush1.bf16.msra.mxu0 0
        %2187 = vmatprep.subr.bf16.mxu0 0
        %2188 = vmatpush1.bf16.msra.mxu0 0
        %2189 = vmatprep.subr.bf16.mxu0 0
        %2190 = vmatpush1.bf16.msra.mxu0 0
        %2191 = vmatprep.subr.bf16.mxu0 0
        %2192 = vmatpush1.bf16.msra.mxu0 0
        %2193 = vmatprep.subr.bf16.mxu0 0
        %2194 = vmatpush1.bf16.msra.mxu0 0
        %2195 = vmatprep.subr.bf16.mxu0 0
        %2196 = vmatpush1.bf16.msra.mxu0 0
        %2197 = vmatprep.subr.bf16.mxu0 0
        %2198 = vmatpush1.bf16.msra.mxu0 0
        %2199 = vmatprep.subr.bf16.mxu0 0
        %2200 = vmatpush1.bf16.msra.mxu0 0
        %2201 = vmatprep.subr.bf16.mxu0 0
        %2202 = vmatpush1.bf16.msra.mxu0 0
        %2203 = vmatprep.subr.bf16.mxu0 0
        %2204 = vmatpush1.bf16.msra.mxu0 0
        %2205 = vmatprep.subr.bf16.mxu0 0
        %2206 = vmatpush1.bf16.msra.mxu0 0
        %2207 = vmatprep.subr.bf16.mxu0 0
        %2208 = vmatpush1.bf16.msra.mxu0 0
        %2209 = vmatprep.mubr.bf16.mxu0 0
        %2210 = vmatmul.mubr.bf16.gmra.mrb[0].mxu0 %v2172
        %v2211 = vpop.f32.mrb[0].mxu0
        %v2212 = vadd.f32 0.0, %v2211
        %v2213 = vpop.f32.mrb[0].mxu0
        %v2214 = vpop.f32.mrb[0].mxu0
        %v2215 = vpop.f32.mrb[0].mxu0
        %2216 = vdwg.mxu0
        %v2217 = vadd.f32 %v2128, %v2212
        %v2218 = vld [vmem:[%s3] sm:$0xf]
        %2220 = vset.pattern.permute.xlu0 0
        %2221 = vperm.xlu0 %2220, %v2218
        %v2222 = vpop.permute.xlu0 %2221
        %v2224 = vadd.f32 %v2217, %v2222
        %v2225 = vpack.c.bf16 %v2224, %v2224
        %v2228 = vunpack.c.l.s4 1983009808
        %v2229 = vunpack.c.0.s8 %v2228
        %v2230 = vlaneseq
        %v2231 = vshrl.u32 %v2230, 7
        %v2232 = vsub.s32 %v2229, %v2231
        %v2233 = vrot.slane %v2225, %v2232
        %2234 = vrot.lane.b32.xlu0 %v2233, 32
        %v2235 = vpop.permute.xlu0 %2234
        %vm2237 = vcmask 320768
        %2238 = vst.msk [vmem:[%s215] sm:$0x3] %vm2237, %v2235
        %v2239 = vld [vmem:[%s224 + $0x4] sm:$0xf]
        %v2240 = vpack.c.bf16 %v2239, %v2239
        %v2241 = vld [vmem:[%s2] sm:$0xf]
        %v2242 = vld [vmem:[%s2 + $0x4] sm:$0xf]
        %2244 = vrot.lane.b32.xlu0 %v2240, 96
        %v2245 = vpop.permute.xlu0 %2244
        %v2248 = vunpack.c.l.b16 %v2241
        %v2249 = vunpack.c.l.b16 %v2242
        %v2250 = vpack.c.b16 %v2249, %v2248
        %v2253 = vsel %vm237, %v2245, 0
        %2255 = vmatprep.subr.bf16.mxu0 0
        %2256 = vmatpush1.bf16.msra.mxu0 %v2250
        %2257 = vmatprep.subr.bf16.mxu0 0
        %2258 = vmatpush1.bf16.msra.mxu0 0
        %2259 = vmatprep.subr.bf16.mxu0 0
        %2260 = vmatpush1.bf16.msra.mxu0 0
        %2261 = vmatprep.subr.bf16.mxu0 0
        %2262 = vmatpush1.bf16.msra.mxu0 0
        %2263 = vmatprep.subr.bf16.mxu0 0
        %2264 = vmatpush1.bf16.msra.mxu0 0
        %2265 = vmatprep.subr.bf16.mxu0 0
        %2266 = vmatpush1.bf16.msra.mxu0 0
        %2267 = vmatprep.subr.bf16.mxu0 0
        %2268 = vmatpush1.bf16.msra.mxu0 0
        %2269 = vmatprep.subr.bf16.mxu0 0
        %2270 = vmatpush1.bf16.msra.mxu0 0
        %2271 = vmatprep.subr.bf16.mxu0 0
        %2272 = vmatpush1.bf16.msra.mxu0 0
        %2273 = vmatprep.subr.bf16.mxu0 0
        %2274 = vmatpush1.bf16.msra.mxu0 0
        %2275 = vmatprep.subr.bf16.mxu0 0
        %2276 = vmatpush1.bf16.msra.mxu0 0
        %2277 = vmatprep.subr.bf16.mxu0 0
        %2278 = vmatpush1.bf16.msra.mxu0 0
        %2279 = vmatprep.subr.bf16.mxu0 0
        %2280 = vmatpush1.bf16.msra.mxu0 0
        %2281 = vmatprep.subr.bf16.mxu0 0
        %2282 = vmatpush1.bf16.msra.mxu0 0
        %2283 = vmatprep.subr.bf16.mxu0 0
        %2284 = vmatpush1.bf16.msra.mxu0 0
        %2285 = vmatprep.subr.bf16.mxu0 0
        %2286 = vmatpush1.bf16.msra.mxu0 0
        %2287 = vmatprep.mubr.bf16.mxu0 0
        %2288 = vmatmul.mubr.bf16.gmra.mrb[0].mxu0 %v2253
        %v2289 = vpop.f32.mrb[0].mxu0
        %v2290 = vadd.f32 0.0, %v2289
        %v2291 = vpop.f32.mrb[0].mxu0
        %v2292 = vpop.f32.mrb[0].mxu0
        %v2293 = vpop.f32.mrb[0].mxu0
        %2294 = vdwg.mxu0
        %v2295 = vpack.c.bf16 %v2290, %v2290
        %v2296 = vld [vmem:[%s1] sm:$0x3]
        %v2297 = vld [vmem:[%s283] sm:$0xf]
        %v2298 = vld [vmem:[%s283 + $0x4] sm:$0xf]
        %v2301 = vunpack.c.l.b16 %v2297
        %v2302 = vunpack.c.l.b16 %v2298
        %v2303 = vpack.c.b16 %v2302, %v2301
        %2305 = vmatprep.subr.bf16.mxu0 0
        %2306 = vmatpush1.bf16.msra.mxu0 %v2303
        %2307 = vmatprep.subr.bf16.mxu0 0
        %2308 = vmatpush1.bf16.msra.mxu0 0
        %2309 = vmatprep.subr.bf16.mxu0 0
        %2310 = vmatpush1.bf16.msra.mxu0 0
        %2311 = vmatprep.subr.bf16.mxu0 0
        %2312 = vmatpush1.bf16.msra.mxu0 0
        %2313 = vmatprep.subr.bf16.mxu0 0
        %2314 = vmatpush1.bf16.msra.mxu0 0
        %2315 = vmatprep.subr.bf16.mxu0 0
        %2316 = vmatpush1.bf16.msra.mxu0 0
        %2317 = vmatprep.subr.bf16.mxu0 0
        %2318 = vmatpush1.bf16.msra.mxu0 0
        %2319 = vmatprep.subr.bf16.mxu0 0
        %2320 = vmatpush1.bf16.msra.mxu0 0
        %2321 = vmatprep.subr.bf16.mxu0 0
        %2322 = vmatpush1.bf16.msra.mxu0 0
        %2323 = vmatprep.subr.bf16.mxu0 0
        %2324 = vmatpush1.bf16.msra.mxu0 0
        %2325 = vmatprep.subr.bf16.mxu0 0
        %2326 = vmatpush1.bf16.msra.mxu0 0
        %2327 = vmatprep.subr.bf16.mxu0 0
        %2328 = vmatpush1.bf16.msra.mxu0 0
        %2329 = vmatprep.subr.bf16.mxu0 0
        %2330 = vmatpush1.bf16.msra.mxu0 0
        %2331 = vmatprep.subr.bf16.mxu0 0
        %2332 = vmatpush1.bf16.msra.mxu0 0
        %2333 = vmatprep.subr.bf16.mxu0 0
        %2334 = vmatpush1.bf16.msra.mxu0 0
        %2335 = vmatprep.subr.bf16.mxu0 0
        %2336 = vmatpush1.bf16.msra.mxu0 0
        %2337 = vmatprep.mubr.bf16.mxu0 0
        %2338 = vmatmul.mubr.bf16.gmra.mrb[0].mxu0 %v2253
        %v2339 = vpop.f32.mrb[0].mxu0
        %v2340 = vadd.f32 0.0, %v2339
        %v2341 = vpop.f32.mrb[0].mxu0
        %v2342 = vpop.f32.mrb[0].mxu0
        %v2343 = vpop.f32.mrb[0].mxu0
        %2344 = vdwg.mxu0
        %v2345 = vpack.c.bf16 %v2340, %v2340
        %v2346 = vld [vmem:[%s333] sm:$0x3]
        %v2348 = vsel %vm335, %v2346, 0
        %v2351 = vsel %vm339, %v2345, 0
        %2353 = vmatprep.subr.bf16.mxu0 0
        %2354 = vmatpush1.bf16.msra.mxu0 %v2351
        %2355 = vmatprep.subr.bf16.mxu0 0
        %2356 = vmatpush1.bf16.msra.mxu0 0
        %2357 = vmatprep.subr.bf16.mxu0 0
        %2358 = vmatpush1.bf16.msra.mxu0 0
        %2359 = vmatprep.subr.bf16.mxu0 0
        %2360 = vmatpush1.bf16.msra.mxu0 0
        %2361 = vmatprep.subr.bf16.mxu0 0
        %2362 = vmatpush1.bf16.msra.mxu0 0
        %2363 = vmatprep.subr.bf16.mxu0 0
        %2364 = vmatpush1.bf16.msra.mxu0 0
        %2365 = vmatprep.subr.bf16.mxu0 0
        %2366 = vmatpush1.bf16.msra.mxu0 0
        %2367 = vmatprep.subr.bf16.mxu0 0
        %2368 = vmatpush1.bf16.msra.mxu0 0
        %2369 = vmatprep.subr.bf16.mxu0 0
        %2370 = vmatpush1.bf16.msra.mxu0 0
        %2371 = vmatprep.subr.bf16.mxu0 0
        %2372 = vmatpush1.bf16.msra.mxu0 0
        %2373 = vmatprep.subr.bf16.mxu0 0
        %2374 = vmatpush1.bf16.msra.mxu0 0
        %2375 = vmatprep.subr.bf16.mxu0 0
        %2376 = vmatpush1.bf16.msra.mxu0 0
        %2377 = vmatprep.subr.bf16.mxu0 0
        %2378 = vmatpush1.bf16.msra.mxu0 0
        %2379 = vmatprep.subr.bf16.mxu0 0
        %2380 = vmatpush1.bf16.msra.mxu0 0
        %2381 = vmatprep.subr.bf16.mxu0 0
        %2382 = vmatpush1.bf16.msra.mxu0 0
        %2383 = vmatprep.subr.bf16.mxu0 0
        %2384 = vmatpush1.bf16.msra.mxu0 0
        %2385 = vmatprep.mubr.bf16.mxu0 0
        %2386 = vmatmul.mubr.bf16.gmra.mrb[0].mxu0 %v2348
        %v2387 = vpop.f32.mrb[0].mxu0
        %v2388 = vadd.f32 0.0, %v2387
        %v2389 = vpop.f32.mrb[0].mxu0
        %v2390 = vpop.f32.mrb[0].mxu0
        %v2391 = vpop.f32.mrb[0].mxu0
        %2392 = vdwg.mxu0
        %v2394 = vsel %vm335, %v2296, 0
        %v2397 = vsel %vm339, %v2295, 0
        %2399 = vmatprep.subr.bf16.mxu0 0
        %2400 = vmatpush1.bf16.msra.mxu0 %v2397
        %2401 = vmatprep.subr.bf16.mxu0 0
        %2402 = vmatpush1.bf16.msra.mxu0 0
        %2403 = vmatprep.subr.bf16.mxu0 0
        %2404 = vmatpush1.bf16.msra.mxu0 0
        %2405 = vmatprep.subr.bf16.mxu0 0
        %2406 = vmatpush1.bf16.msra.mxu0 0
        %2407 = vmatprep.subr.bf16.mxu0 0
        %2408 = vmatpush1.bf16.msra.mxu0 0
        %2409 = vmatprep.subr.bf16.mxu0 0
        %2410 = vmatpush1.bf16.msra.mxu0 0
        %2411 = vmatprep.subr.bf16.mxu0 0
        %2412 = vmatpush1.bf16.msra.mxu0 0
        %2413 = vmatprep.subr.bf16.mxu0 0
        %2414 = vmatpush1.bf16.msra.mxu0 0
        %2415 = vmatprep.subr.bf16.mxu0 0
        %2416 = vmatpush1.bf16.msra.mxu0 0
        %2417 = vmatprep.subr.bf16.mxu0 0
        %2418 = vmatpush1.bf16.msra.mxu0 0
        %2419 = vmatprep.subr.bf16.mxu0 0
        %2420 = vmatpush1.bf16.msra.mxu0 0
        %2421 = vmatprep.subr.bf16.mxu0 0
        %2422 = vmatpush1.bf16.msra.mxu0 0
        %2423 = vmatprep.subr.bf16.mxu0 0
        %2424 = vmatpush1.bf16.msra.mxu0 0
        %2425 = vmatprep.subr.bf16.mxu0 0
        %2426 = vmatpush1.bf16.msra.mxu0 0
        %2427 = vmatprep.subr.bf16.mxu0 0
        %2428 = vmatpush1.bf16.msra.mxu0 0
        %2429 = vmatprep.subr.bf16.mxu0 0
        %2430 = vmatpush1.bf16.msra.mxu0 0
        %2431 = vmatprep.mubr.bf16.mxu0 0
        %2432 = vmatmul.mubr.bf16.gmra.mrb[0].mxu0 %v2394
        %v2433 = vpop.f32.mrb[0].mxu0
        %v2434 = vadd.f32 %v2388, %v2433
        %v2435 = vpop.f32.mrb[0].mxu0
        %v2436 = vpop.f32.mrb[0].mxu0
        %v2437 = vpop.f32.mrb[0].mxu0
        %2438 = vdwg.mxu0
        %2439 = vrot.lane.b32.xlu0 %v2240, 80
        %v2440 = vpop.permute.xlu0 %2439
        %v2442 = vsel %vm237, %v2440, 0
        %2444 = vmatprep.subr.bf16.mxu0 0
        %2445 = vmatpush1.bf16.msra.mxu0 %v2250
        %2446 = vmatprep.subr.bf16.mxu0 0
        %2447 = vmatpush1.bf16.msra.mxu0 0
        %2448 = vmatprep.subr.bf16.mxu0 0
        %2449 = vmatpush1.bf16.msra.mxu0 0
        %2450 = vmatprep.subr.bf16.mxu0 0
        %2451 = vmatpush1.bf16.msra.mxu0 0
        %2452 = vmatprep.subr.bf16.mxu0 0
        %2453 = vmatpush1.bf16.msra.mxu0 0
        %2454 = vmatprep.subr.bf16.mxu0 0
        %2455 = vmatpush1.bf16.msra.mxu0 0
        %2456 = vmatprep.subr.bf16.mxu0 0
        %2457 = vmatpush1.bf16.msra.mxu0 0
        %2458 = vmatprep.subr.bf16.mxu0 0
        %2459 = vmatpush1.bf16.msra.mxu0 0
        %2460 = vmatprep.subr.bf16.mxu0 0
        %2461 = vmatpush1.bf16.msra.mxu0 0
        %2462 = vmatprep.subr.bf16.mxu0 0
        %2463 = vmatpush1.bf16.msra.mxu0 0
        %2464 = vmatprep.subr.bf16.mxu0 0
        %2465 = vmatpush1.bf16.msra.mxu0 0
        %2466 = vmatprep.subr.bf16.mxu0 0
        %2467 = vmatpush1.bf16.msra.mxu0 0
        %2468 = vmatprep.subr.bf16.mxu0 0
        %2469 = vmatpush1.bf16.msra.mxu0 0
        %2470 = vmatprep.subr.bf16.mxu0 0
        %2471 = vmatpush1.bf16.msra.mxu0 0
        %2472 = vmatprep.subr.bf16.mxu0 0
        %2473 = vmatpush1.bf16.msra.mxu0 0
        %2474 = vmatprep.subr.bf16.mxu0 0
        %2475 = vmatpush1.bf16.msra.mxu0 0
        %2476 = vmatprep.mubr.bf16.mxu0 0
        %2477 = vmatmul.mubr.bf16.gmra.mrb[0].mxu0 %v2442
        %v2478 = vpop.f32.mrb[0].mxu0
        %v2479 = vadd.f32 0.0, %v2478
        %v2480 = vpop.f32.mrb[0].mxu0
        %v2481 = vpop.f32.mrb[0].mxu0
        %v2482 = vpop.f32.mrb[0].mxu0
        %2483 = vdwg.mxu0
        %v2484 = vpack.c.bf16 %v2479, %v2479
        %v2485 = vld [vmem:[%s476] sm:$0x3]
        %v2487 = vsel %vm335, %v2485, 0
        %v2490 = vsel %vm339, %v2484, 0
        %2492 = vmatprep.subr.bf16.mxu0 0
        %2493 = vmatpush1.bf16.msra.mxu0 %v2490
        %2494 = vmatprep.subr.bf16.mxu0 0
        %2495 = vmatpush1.bf16.msra.mxu0 0
        %2496 = vmatprep.subr.bf16.mxu0 0
        %2497 = vmatpush1.bf16.msra.mxu0 0
        %2498 = vmatprep.subr.bf16.mxu0 0
        %2499 = vmatpush1.bf16.msra.mxu0 0
        %2500 = vmatprep.subr.bf16.mxu0 0
        %2501 = vmatpush1.bf16.msra.mxu0 0
        %2502 = vmatprep.subr.bf16.mxu0 0
        %2503 = vmatpush1.bf16.msra.mxu0 0
        %2504 = vmatprep.subr.bf16.mxu0 0
        %2505 = vmatpush1.bf16.msra.mxu0 0
        %2506 = vmatprep.subr.bf16.mxu0 0
        %2507 = vmatpush1.bf16.msra.mxu0 0
        %2508 = vmatprep.subr.bf16.mxu0 0
        %2509 = vmatpush1.bf16.msra.mxu0 0
        %2510 = vmatprep.subr.bf16.mxu0 0
        %2511 = vmatpush1.bf16.msra.mxu0 0
        %2512 = vmatprep.subr.bf16.mxu0 0
        %2513 = vmatpush1.bf16.msra.mxu0 0
        %2514 = vmatprep.subr.bf16.mxu0 0
        %2515 = vmatpush1.bf16.msra.mxu0 0
        %2516 = vmatprep.subr.bf16.mxu0 0
        %2517 = vmatpush1.bf16.msra.mxu0 0
        %2518 = vmatprep.subr.bf16.mxu0 0
        %2519 = vmatpush1.bf16.msra.mxu0 0
        %2520 = vmatprep.subr.bf16.mxu0 0
        %2521 = vmatpush1.bf16.msra.mxu0 0
        %2522 = vmatprep.subr.bf16.mxu0 0
        %2523 = vmatpush1.bf16.msra.mxu0 0
        %2524 = vmatprep.mubr.bf16.mxu0 0
        %2525 = vmatmul.mubr.bf16.gmra.mrb[0].mxu0 %v2487
        %v2526 = vpop.f32.mrb[0].mxu0
        %v2527 = vadd.f32 0.0, %v2526
        %v2528 = vpop.f32.mrb[0].mxu0
        %v2529 = vpop.f32.mrb[0].mxu0
        %v2530 = vpop.f32.mrb[0].mxu0
        %2531 = vdwg.mxu0
        %v2532 = vadd.f32 %v2434, %v2527
        %2533 = vmatprep.subr.bf16.mxu0 0
        %2534 = vmatpush1.bf16.msra.mxu0 %v2303
        %2535 = vmatprep.subr.bf16.mxu0 0
        %2536 = vmatpush1.bf16.msra.mxu0 0
        %2537 = vmatprep.subr.bf16.mxu0 0
        %2538 = vmatpush1.bf16.msra.mxu0 0
        %2539 = vmatprep.subr.bf16.mxu0 0
        %2540 = vmatpush1.bf16.msra.mxu0 0
        %2541 = vmatprep.subr.bf16.mxu0 0
        %2542 = vmatpush1.bf16.msra.mxu0 0
        %2543 = vmatprep.subr.bf16.mxu0 0
        %2544 = vmatpush1.bf16.msra.mxu0 0
        %2545 = vmatprep.subr.bf16.mxu0 0
        %2546 = vmatpush1.bf16.msra.mxu0 0
        %2547 = vmatprep.subr.bf16.mxu0 0
        %2548 = vmatpush1.bf16.msra.mxu0 0
        %2549 = vmatprep.subr.bf16.mxu0 0
        %2550 = vmatpush1.bf16.msra.mxu0 0
        %2551 = vmatprep.subr.bf16.mxu0 0
        %2552 = vmatpush1.bf16.msra.mxu0 0
        %2553 = vmatprep.subr.bf16.mxu0 0
        %2554 = vmatpush1.bf16.msra.mxu0 0
        %2555 = vmatprep.subr.bf16.mxu0 0
        %2556 = vmatpush1.bf16.msra.mxu0 0
        %2557 = vmatprep.subr.bf16.mxu0 0
        %2558 = vmatpush1.bf16.msra.mxu0 0
        %2559 = vmatprep.subr.bf16.mxu0 0
        %2560 = vmatpush1.bf16.msra.mxu0 0
        %2561 = vmatprep.subr.bf16.mxu0 0
        %2562 = vmatpush1.bf16.msra.mxu0 0
        %2563 = vmatprep.subr.bf16.mxu0 0
        %2564 = vmatpush1.bf16.msra.mxu0 0
        %2565 = vmatprep.mubr.bf16.mxu0 0
        %2566 = vmatmul.mubr.bf16.gmra.mrb[0].mxu0 %v2442
        %v2567 = vpop.f32.mrb[0].mxu0
        %v2568 = vadd.f32 0.0, %v2567
        %v2569 = vpop.f32.mrb[0].mxu0
        %v2570 = vpop.f32.mrb[0].mxu0
        %v2571 = vpop.f32.mrb[0].mxu0
        %2572 = vdwg.mxu0
        %v2573 = vpack.c.bf16 %v2568, %v2568
        %v2574 = vld [vmem:[%s566] sm:$0x3]
        %v2576 = vsel %vm335, %v2574, 0
        %v2579 = vsel %vm339, %v2573, 0
        %2581 = vmatprep.subr.bf16.mxu0 0
        %2582 = vmatpush1.bf16.msra.mxu0 %v2579
        %2583 = vmatprep.subr.bf16.mxu0 0
        %2584 = vmatpush1.bf16.msra.mxu0 0
        %2585 = vmatprep.subr.bf16.mxu0 0
        %2586 = vmatpush1.bf16.msra.mxu0 0
        %2587 = vmatprep.subr.bf16.mxu0 0
        %2588 = vmatpush1.bf16.msra.mxu0 0
        %2589 = vmatprep.subr.bf16.mxu0 0
        %2590 = vmatpush1.bf16.msra.mxu0 0
        %2591 = vmatprep.subr.bf16.mxu0 0
        %2592 = vmatpush1.bf16.msra.mxu0 0
        %2593 = vmatprep.subr.bf16.mxu0 0
        %2594 = vmatpush1.bf16.msra.mxu0 0
        %2595 = vmatprep.subr.bf16.mxu0 0
        %2596 = vmatpush1.bf16.msra.mxu0 0
        %2597 = vmatprep.subr.bf16.mxu0 0
        %2598 = vmatpush1.bf16.msra.mxu0 0
        %2599 = vmatprep.subr.bf16.mxu0 0
        %2600 = vmatpush1.bf16.msra.mxu0 0
        %2601 = vmatprep.subr.bf16.mxu0 0
        %2602 = vmatpush1.bf16.msra.mxu0 0
        %2603 = vmatprep.subr.bf16.mxu0 0
        %2604 = vmatpush1.bf16.msra.mxu0 0
        %2605 = vmatprep.subr.bf16.mxu0 0
        %2606 = vmatpush1.bf16.msra.mxu0 0
        %2607 = vmatprep.subr.bf16.mxu0 0
        %2608 = vmatpush1.bf16.msra.mxu0 0
        %2609 = vmatprep.subr.bf16.mxu0 0
        %2610 = vmatpush1.bf16.msra.mxu0 0
        %2611 = vmatprep.subr.bf16.mxu0 0
        %2612 = vmatpush1.bf16.msra.mxu0 0
        %2613 = vmatprep.mubr.bf16.mxu0 0
        %2614 = vmatmul.mubr.bf16.gmra.mrb[0].mxu0 %v2576
        %v2615 = vpop.f32.mrb[0].mxu0
        %v2616 = vadd.f32 0.0, %v2615
        %v2617 = vpop.f32.mrb[0].mxu0
        %v2618 = vpop.f32.mrb[0].mxu0
        %v2619 = vpop.f32.mrb[0].mxu0
        %2620 = vdwg.mxu0
        %v2621 = vadd.f32 %v2532, %v2616
        %v2622 = vld [vmem:[%s3] sm:$0xf]
        %2624 = vset.pattern.permute.xlu0 0
        %2625 = vperm.xlu0 %2624, %v2622
        %v2626 = vpop.permute.xlu0 %2625
        %v2628 = vadd.f32 %v2621, %v2626
        %v2629 = vpack.c.bf16 %v2628, %v2628
        %v2632 = vunpack.c.l.s4 1983009808
        %v2633 = vunpack.c.0.s8 %v2632
        %v2634 = vlaneseq
        %v2635 = vshrl.u32 %v2634, 7
        %v2636 = vsub.s32 %v2633, %v2635
        %v2637 = vrot.slane %v2629, %v2636
        %2638 = vrot.lane.b32.xlu0 %v2637, 40
        %v2639 = vpop.permute.xlu0 %2638
        %vm2641 = vcmask 386368
        %2642 = vst.msk [vmem:[%s215] sm:$0x3] %vm2641, %v2639
        %v2643 = vld [vmem:[%s224 + $0x4] sm:$0xf]
        %v2644 = vpack.c.bf16 %v2643, %v2643
        %v2645 = vld [vmem:[%s2] sm:$0xf]
        %v2646 = vld [vmem:[%s2 + $0x4] sm:$0xf]
        %2648 = vrot.lane.b32.xlu0 %v2644, 64
        %v2649 = vpop.permute.xlu0 %2648
        %v2652 = vunpack.c.l.b16 %v2645
        %v2653 = vunpack.c.l.b16 %v2646
        %v2654 = vpack.c.b16 %v2653, %v2652
        %v2657 = vsel %vm237, %v2649, 0
        %2659 = vmatprep.subr.bf16.mxu0 0
        %2660 = vmatpush1.bf16.msra.mxu0 %v2654
        %2661 = vmatprep.subr.bf16.mxu0 0
        %2662 = vmatpush1.bf16.msra.mxu0 0
        %2663 = vmatprep.subr.bf16.mxu0 0
        %2664 = vmatpush1.bf16.msra.mxu0 0
        %2665 = vmatprep.subr.bf16.mxu0 0
        %2666 = vmatpush1.bf16.msra.mxu0 0
        %2667 = vmatprep.subr.bf16.mxu0 0
        %2668 = vmatpush1.bf16.msra.mxu0 0
        %2669 = vmatprep.subr.bf16.mxu0 0
        %2670 = vmatpush1.bf16.msra.mxu0 0
        %2671 = vmatprep.subr.bf16.mxu0 0
        %2672 = vmatpush1.bf16.msra.mxu0 0
        %2673 = vmatprep.subr.bf16.mxu0 0
        %2674 = vmatpush1.bf16.msra.mxu0 0
        %2675 = vmatprep.subr.bf16.mxu0 0
        %2676 = vmatpush1.bf16.msra.mxu0 0
        %2677 = vmatprep.subr.bf16.mxu0 0
        %2678 = vmatpush1.bf16.msra.mxu0 0
        %2679 = vmatprep.subr.bf16.mxu0 0
        %2680 = vmatpush1.bf16.msra.mxu0 0
        %2681 = vmatprep.subr.bf16.mxu0 0
        %2682 = vmatpush1.bf16.msra.mxu0 0
        %2683 = vmatprep.subr.bf16.mxu0 0
        %2684 = vmatpush1.bf16.msra.mxu0 0
        %2685 = vmatprep.subr.bf16.mxu0 0
        %2686 = vmatpush1.bf16.msra.mxu0 0
        %2687 = vmatprep.subr.bf16.mxu0 0
        %2688 = vmatpush1.bf16.msra.mxu0 0
        %2689 = vmatprep.subr.bf16.mxu0 0
        %2690 = vmatpush1.bf16.msra.mxu0 0
        %2691 = vmatprep.mubr.bf16.mxu0 0
        %2692 = vmatmul.mubr.bf16.gmra.mrb[0].mxu0 %v2657
        %v2693 = vpop.f32.mrb[0].mxu0
        %v2694 = vadd.f32 0.0, %v2693
        %v2695 = vpop.f32.mrb[0].mxu0
        %v2696 = vpop.f32.mrb[0].mxu0
        %v2697 = vpop.f32.mrb[0].mxu0
        %2698 = vdwg.mxu0
        %v2699 = vpack.c.bf16 %v2694, %v2694
        %v2700 = vld [vmem:[%s1] sm:$0x3]
        %v2701 = vld [vmem:[%s283] sm:$0xf]
        %v2702 = vld [vmem:[%s283 + $0x4] sm:$0xf]
        %v2705 = vunpack.c.l.b16 %v2701
        %v2706 = vunpack.c.l.b16 %v2702
        %v2707 = vpack.c.b16 %v2706, %v2705
        %2709 = vmatprep.subr.bf16.mxu0 0
        %2710 = vmatpush1.bf16.msra.mxu0 %v2707
        %2711 = vmatprep.subr.bf16.mxu0 0
        %2712 = vmatpush1.bf16.msra.mxu0 0
        %2713 = vmatprep.subr.bf16.mxu0 0
        %2714 = vmatpush1.bf16.msra.mxu0 0
        %2715 = vmatprep.subr.bf16.mxu0 0
        %2716 = vmatpush1.bf16.msra.mxu0 0
        %2717 = vmatprep.subr.bf16.mxu0 0
        %2718 = vmatpush1.bf16.msra.mxu0 0
        %2719 = vmatprep.subr.bf16.mxu0 0
        %2720 = vmatpush1.bf16.msra.mxu0 0
        %2721 = vmatprep.subr.bf16.mxu0 0
        %2722 = vmatpush1.bf16.msra.mxu0 0
        %2723 = vmatprep.subr.bf16.mxu0 0
        %2724 = vmatpush1.bf16.msra.mxu0 0
        %2725 = vmatprep.subr.bf16.mxu0 0
        %2726 = vmatpush1.bf16.msra.mxu0 0
        %2727 = vmatprep.subr.bf16.mxu0 0
        %2728 = vmatpush1.bf16.msra.mxu0 0
        %2729 = vmatprep.subr.bf16.mxu0 0
        %2730 = vmatpush1.bf16.msra.mxu0 0
        %2731 = vmatprep.subr.bf16.mxu0 0
        %2732 = vmatpush1.bf16.msra.mxu0 0
        %2733 = vmatprep.subr.bf16.mxu0 0
        %2734 = vmatpush1.bf16.msra.mxu0 0
        %2735 = vmatprep.subr.bf16.mxu0 0
        %2736 = vmatpush1.bf16.msra.mxu0 0
        %2737 = vmatprep.subr.bf16.mxu0 0
        %2738 = vmatpush1.bf16.msra.mxu0 0
        %2739 = vmatprep.subr.bf16.mxu0 0
        %2740 = vmatpush1.bf16.msra.mxu0 0
        %2741 = vmatprep.mubr.bf16.mxu0 0
        %2742 = vmatmul.mubr.bf16.gmra.mrb[0].mxu0 %v2657
        %v2743 = vpop.f32.mrb[0].mxu0
        %v2744 = vadd.f32 0.0, %v2743
        %v2745 = vpop.f32.mrb[0].mxu0
        %v2746 = vpop.f32.mrb[0].mxu0
        %v2747 = vpop.f32.mrb[0].mxu0
        %2748 = vdwg.mxu0
        %v2749 = vpack.c.bf16 %v2744, %v2744
        %v2750 = vld [vmem:[%s333] sm:$0x3]
        %v2752 = vsel %vm335, %v2750, 0
        %v2755 = vsel %vm339, %v2749, 0
        %2757 = vmatprep.subr.bf16.mxu0 0
        %2758 = vmatpush1.bf16.msra.mxu0 %v2755
        %2759 = vmatprep.subr.bf16.mxu0 0
        %2760 = vmatpush1.bf16.msra.mxu0 0
        %2761 = vmatprep.subr.bf16.mxu0 0
        %2762 = vmatpush1.bf16.msra.mxu0 0
        %2763 = vmatprep.subr.bf16.mxu0 0
        %2764 = vmatpush1.bf16.msra.mxu0 0
        %2765 = vmatprep.subr.bf16.mxu0 0
        %2766 = vmatpush1.bf16.msra.mxu0 0
        %2767 = vmatprep.subr.bf16.mxu0 0
        %2768 = vmatpush1.bf16.msra.mxu0 0
        %2769 = vmatprep.subr.bf16.mxu0 0
        %2770 = vmatpush1.bf16.msra.mxu0 0
        %2771 = vmatprep.subr.bf16.mxu0 0
        %2772 = vmatpush1.bf16.msra.mxu0 0
        %2773 = vmatprep.subr.bf16.mxu0 0
        %2774 = vmatpush1.bf16.msra.mxu0 0
        %2775 = vmatprep.subr.bf16.mxu0 0
        %2776 = vmatpush1.bf16.msra.mxu0 0
        %2777 = vmatprep.subr.bf16.mxu0 0
        %2778 = vmatpush1.bf16.msra.mxu0 0
        %2779 = vmatprep.subr.bf16.mxu0 0
        %2780 = vmatpush1.bf16.msra.mxu0 0
        %2781 = vmatprep.subr.bf16.mxu0 0
        %2782 = vmatpush1.bf16.msra.mxu0 0
        %2783 = vmatprep.subr.bf16.mxu0 0
        %2784 = vmatpush1.bf16.msra.mxu0 0
        %2785 = vmatprep.subr.bf16.mxu0 0
        %2786 = vmatpush1.bf16.msra.mxu0 0
        %2787 = vmatprep.subr.bf16.mxu0 0
        %2788 = vmatpush1.bf16.msra.mxu0 0
        %2789 = vmatprep.mubr.bf16.mxu0 0
        %2790 = vmatmul.mubr.bf16.gmra.mrb[0].mxu0 %v2752
        %v2791 = vpop.f32.mrb[0].mxu0
        %v2792 = vadd.f32 0.0, %v2791
        %v2793 = vpop.f32.mrb[0].mxu0
        %v2794 = vpop.f32.mrb[0].mxu0
        %v2795 = vpop.f32.mrb[0].mxu0
        %2796 = vdwg.mxu0
        %v2798 = vsel %vm335, %v2700, 0
        %v2801 = vsel %vm339, %v2699, 0
        %2803 = vmatprep.subr.bf16.mxu0 0
        %2804 = vmatpush1.bf16.msra.mxu0 %v2801
        %2805 = vmatprep.subr.bf16.mxu0 0
        %2806 = vmatpush1.bf16.msra.mxu0 0
        %2807 = vmatprep.subr.bf16.mxu0 0
        %2808 = vmatpush1.bf16.msra.mxu0 0
        %2809 = vmatprep.subr.bf16.mxu0 0
        %2810 = vmatpush1.bf16.msra.mxu0 0
        %2811 = vmatprep.subr.bf16.mxu0 0
        %2812 = vmatpush1.bf16.msra.mxu0 0
        %2813 = vmatprep.subr.bf16.mxu0 0
        %2814 = vmatpush1.bf16.msra.mxu0 0
        %2815 = vmatprep.subr.bf16.mxu0 0
        %2816 = vmatpush1.bf16.msra.mxu0 0
        %2817 = vmatprep.subr.bf16.mxu0 0
        %2818 = vmatpush1.bf16.msra.mxu0 0
        %2819 = vmatprep.subr.bf16.mxu0 0
        %2820 = vmatpush1.bf16.msra.mxu0 0
        %2821 = vmatprep.subr.bf16.mxu0 0
        %2822 = vmatpush1.bf16.msra.mxu0 0
        %2823 = vmatprep.subr.bf16.mxu0 0
        %2824 = vmatpush1.bf16.msra.mxu0 0
        %2825 = vmatprep.subr.bf16.mxu0 0
        %2826 = vmatpush1.bf16.msra.mxu0 0
        %2827 = vmatprep.subr.bf16.mxu0 0
        %2828 = vmatpush1.bf16.msra.mxu0 0
        %2829 = vmatprep.subr.bf16.mxu0 0
        %2830 = vmatpush1.bf16.msra.mxu0 0
        %2831 = vmatprep.subr.bf16.mxu0 0
        %2832 = vmatpush1.bf16.msra.mxu0 0
        %2833 = vmatprep.subr.bf16.mxu0 0
        %2834 = vmatpush1.bf16.msra.mxu0 0
        %2835 = vmatprep.mubr.bf16.mxu0 0
        %2836 = vmatmul.mubr.bf16.gmra.mrb[0].mxu0 %v2798
        %v2837 = vpop.f32.mrb[0].mxu0
        %v2838 = vadd.f32 %v2792, %v2837
        %v2839 = vpop.f32.mrb[0].mxu0
        %v2840 = vpop.f32.mrb[0].mxu0
        %v2841 = vpop.f32.mrb[0].mxu0
        %2842 = vdwg.mxu0
        %2843 = vrot.lane.b32.xlu0 %v2644, 48
        %v2844 = vpop.permute.xlu0 %2843
        %v2846 = vsel %vm237, %v2844, 0
        %2848 = vmatprep.subr.bf16.mxu0 0
        %2849 = vmatpush1.bf16.msra.mxu0 %v2654
        %2850 = vmatprep.subr.bf16.mxu0 0
        %2851 = vmatpush1.bf16.msra.mxu0 0
        %2852 = vmatprep.subr.bf16.mxu0 0
        %2853 = vmatpush1.bf16.msra.mxu0 0
        %2854 = vmatprep.subr.bf16.mxu0 0
        %2855 = vmatpush1.bf16.msra.mxu0 0
        %2856 = vmatprep.subr.bf16.mxu0 0
        %2857 = vmatpush1.bf16.msra.mxu0 0
        %2858 = vmatprep.subr.bf16.mxu0 0
        %2859 = vmatpush1.bf16.msra.mxu0 0
        %2860 = vmatprep.subr.bf16.mxu0 0
        %2861 = vmatpush1.bf16.msra.mxu0 0
        %2862 = vmatprep.subr.bf16.mxu0 0
        %2863 = vmatpush1.bf16.msra.mxu0 0
        %2864 = vmatprep.subr.bf16.mxu0 0
        %2865 = vmatpush1.bf16.msra.mxu0 0
        %2866 = vmatprep.subr.bf16.mxu0 0
        %2867 = vmatpush1.bf16.msra.mxu0 0
        %2868 = vmatprep.subr.bf16.mxu0 0
        %2869 = vmatpush1.bf16.msra.mxu0 0
        %2870 = vmatprep.subr.bf16.mxu0 0
        %2871 = vmatpush1.bf16.msra.mxu0 0
        %2872 = vmatprep.subr.bf16.mxu0 0
        %2873 = vmatpush1.bf16.msra.mxu0 0
        %2874 = vmatprep.subr.bf16.mxu0 0
        %2875 = vmatpush1.bf16.msra.mxu0 0
        %2876 = vmatprep.subr.bf16.mxu0 0
        %2877 = vmatpush1.bf16.msra.mxu0 0
        %2878 = vmatprep.subr.bf16.mxu0 0
        %2879 = vmatpush1.bf16.msra.mxu0 0
        %2880 = vmatprep.mubr.bf16.mxu0 0
        %2881 = vmatmul.mubr.bf16.gmra.mrb[0].mxu0 %v2846
        %v2882 = vpop.f32.mrb[0].mxu0
        %v2883 = vadd.f32 0.0, %v2882
        %v2884 = vpop.f32.mrb[0].mxu0
        %v2885 = vpop.f32.mrb[0].mxu0
        %v2886 = vpop.f32.mrb[0].mxu0
        %2887 = vdwg.mxu0
        %v2888 = vpack.c.bf16 %v2883, %v2883
        %v2889 = vld [vmem:[%s476] sm:$0x3]
        %v2891 = vsel %vm335, %v2889, 0
        %v2894 = vsel %vm339, %v2888, 0
        %2896 = vmatprep.subr.bf16.mxu0 0
        %2897 = vmatpush1.bf16.msra.mxu0 %v2894
        %2898 = vmatprep.subr.bf16.mxu0 0
        %2899 = vmatpush1.bf16.msra.mxu0 0
        %2900 = vmatprep.subr.bf16.mxu0 0
        %2901 = vmatpush1.bf16.msra.mxu0 0
        %2902 = vmatprep.subr.bf16.mxu0 0
        %2903 = vmatpush1.bf16.msra.mxu0 0
        %2904 = vmatprep.subr.bf16.mxu0 0
        %2905 = vmatpush1.bf16.msra.mxu0 0
        %2906 = vmatprep.subr.bf16.mxu0 0
        %2907 = vmatpush1.bf16.msra.mxu0 0
        %2908 = vmatprep.subr.bf16.mxu0 0
        %2909 = vmatpush1.bf16.msra.mxu0 0
        %2910 = vmatprep.subr.bf16.mxu0 0
        %2911 = vmatpush1.bf16.msra.mxu0 0
        %2912 = vmatprep.subr.bf16.mxu0 0
        %2913 = vmatpush1.bf16.msra.mxu0 0
        %2914 = vmatprep.subr.bf16.mxu0 0
        %2915 = vmatpush1.bf16.msra.mxu0 0
        %2916 = vmatprep.subr.bf16.mxu0 0
        %2917 = vmatpush1.bf16.msra.mxu0 0
        %2918 = vmatprep.subr.bf16.mxu0 0
        %2919 = vmatpush1.bf16.msra.mxu0 0
        %2920 = vmatprep.subr.bf16.mxu0 0
        %2921 = vmatpush1.bf16.msra.mxu0 0
        %2922 = vmatprep.subr.bf16.mxu0 0
        %2923 = vmatpush1.bf16.msra.mxu0 0
        %2924 = vmatprep.subr.bf16.mxu0 0
        %2925 = vmatpush1.bf16.msra.mxu0 0
        %2926 = vmatprep.subr.bf16.mxu0 0
        %2927 = vmatpush1.bf16.msra.mxu0 0
        %2928 = vmatprep.mubr.bf16.mxu0 0
        %2929 = vmatmul.mubr.bf16.gmra.mrb[0].mxu0 %v2891
        %v2930 = vpop.f32.mrb[0].mxu0
        %v2931 = vadd.f32 0.0, %v2930
        %v2932 = vpop.f32.mrb[0].mxu0
        %v2933 = vpop.f32.mrb[0].mxu0
        %v2934 = vpop.f32.mrb[0].mxu0
        %2935 = vdwg.mxu0
        %v2936 = vadd.f32 %v2838, %v2931
        %2937 = vmatprep.subr.bf16.mxu0 0
        %2938 = vmatpush1.bf16.msra.mxu0 %v2707
        %2939 = vmatprep.subr.bf16.mxu0 0
        %2940 = vmatpush1.bf16.msra.mxu0 0
        %2941 = vmatprep.subr.bf16.mxu0 0
        %2942 = vmatpush1.bf16.msra.mxu0 0
        %2943 = vmatprep.subr.bf16.mxu0 0
        %2944 = vmatpush1.bf16.msra.mxu0 0
        %2945 = vmatprep.subr.bf16.mxu0 0
        %2946 = vmatpush1.bf16.msra.mxu0 0
        %2947 = vmatprep.subr.bf16.mxu0 0
        %2948 = vmatpush1.bf16.msra.mxu0 0
        %2949 = vmatprep.subr.bf16.mxu0 0
        %2950 = vmatpush1.bf16.msra.mxu0 0
        %2951 = vmatprep.subr.bf16.mxu0 0
        %2952 = vmatpush1.bf16.msra.mxu0 0
        %2953 = vmatprep.subr.bf16.mxu0 0
        %2954 = vmatpush1.bf16.msra.mxu0 0
        %2955 = vmatprep.subr.bf16.mxu0 0
        %2956 = vmatpush1.bf16.msra.mxu0 0
        %2957 = vmatprep.subr.bf16.mxu0 0
        %2958 = vmatpush1.bf16.msra.mxu0 0
        %2959 = vmatprep.subr.bf16.mxu0 0
        %2960 = vmatpush1.bf16.msra.mxu0 0
        %2961 = vmatprep.subr.bf16.mxu0 0
        %2962 = vmatpush1.bf16.msra.mxu0 0
        %2963 = vmatprep.subr.bf16.mxu0 0
        %2964 = vmatpush1.bf16.msra.mxu0 0
        %2965 = vmatprep.subr.bf16.mxu0 0
        %2966 = vmatpush1.bf16.msra.mxu0 0
        %2967 = vmatprep.subr.bf16.mxu0 0
        %2968 = vmatpush1.bf16.msra.mxu0 0
        %2969 = vmatprep.mubr.bf16.mxu0 0
        %2970 = vmatmul.mubr.bf16.gmra.mrb[0].mxu0 %v2846
        %v2971 = vpop.f32.mrb[0].mxu0
        %v2972 = vadd.f32 0.0, %v2971
        %v2973 = vpop.f32.mrb[0].mxu0
        %v2974 = vpop.f32.mrb[0].mxu0
        %v2975 = vpop.f32.mrb[0].mxu0
        %2976 = vdwg.mxu0
        %v2977 = vpack.c.bf16 %v2972, %v2972
        %v2978 = vld [vmem:[%s566] sm:$0x3]
        %v2980 = vsel %vm335, %v2978, 0
        %v2983 = vsel %vm339, %v2977, 0
        %2985 = vmatprep.subr.bf16.mxu0 0
        %2986 = vmatpush1.bf16.msra.mxu0 %v2983
        %2987 = vmatprep.subr.bf16.mxu0 0
        %2988 = vmatpush1.bf16.msra.mxu0 0
        %2989 = vmatprep.subr.bf16.mxu0 0
        %2990 = vmatpush1.bf16.msra.mxu0 0
        %2991 = vmatprep.subr.bf16.mxu0 0
        %2992 = vmatpush1.bf16.msra.mxu0 0
        %2993 = vmatprep.subr.bf16.mxu0 0
        %2994 = vmatpush1.bf16.msra.mxu0 0
        %2995 = vmatprep.subr.bf16.mxu0 0
        %2996 = vmatpush1.bf16.msra.mxu0 0
        %2997 = vmatprep.subr.bf16.mxu0 0
        %2998 = vmatpush1.bf16.msra.mxu0 0
        %2999 = vmatprep.subr.bf16.mxu0 0
        %3000 = vmatpush1.bf16.msra.mxu0 0
        %3001 = vmatprep.subr.bf16.mxu0 0
        %3002 = vmatpush1.bf16.msra.mxu0 0
        %3003 = vmatprep.subr.bf16.mxu0 0
        %3004 = vmatpush1.bf16.msra.mxu0 0
        %3005 = vmatprep.subr.bf16.mxu0 0
        %3006 = vmatpush1.bf16.msra.mxu0 0
        %3007 = vmatprep.subr.bf16.mxu0 0
        %3008 = vmatpush1.bf16.msra.mxu0 0
        %3009 = vmatprep.subr.bf16.mxu0 0
        %3010 = vmatpush1.bf16.msra.mxu0 0
        %3011 = vmatprep.subr.bf16.mxu0 0
        %3012 = vmatpush1.bf16.msra.mxu0 0
        %3013 = vmatprep.subr.bf16.mxu0 0
        %3014 = vmatpush1.bf16.msra.mxu0 0
        %3015 = vmatprep.subr.bf16.mxu0 0
        %3016 = vmatpush1.bf16.msra.mxu0 0
        %3017 = vmatprep.mubr.bf16.mxu0 0
        %3018 = vmatmul.mubr.bf16.gmra.mrb[0].mxu0 %v2980
        %v3019 = vpop.f32.mrb[0].mxu0
        %v3020 = vadd.f32 0.0, %v3019
        %v3021 = vpop.f32.mrb[0].mxu0
        %v3022 = vpop.f32.mrb[0].mxu0
        %v3023 = vpop.f32.mrb[0].mxu0
        %3024 = vdwg.mxu0
        %v3025 = vadd.f32 %v2936, %v3020
        %v3026 = vld [vmem:[%s3] sm:$0xf]
        %3028 = vset.pattern.permute.xlu0 0
        %3029 = vperm.xlu0 %3028, %v3026
        %v3030 = vpop.permute.xlu0 %3029
        %v3032 = vadd.f32 %v3025, %v3030
        %v3033 = vpack.c.bf16 %v3032, %v3032
        %v3036 = vunpack.c.l.s4 1983009808
        %v3037 = vunpack.c.0.s8 %v3036
        %v3038 = vlaneseq
        %v3039 = vshrl.u32 %v3038, 7
        %v3040 = vsub.s32 %v3037, %v3039
        %v3041 = vrot.slane %v3033, %v3040
        %3042 = vrot.lane.b32.xlu0 %v3041, 48
        %v3043 = vpop.permute.xlu0 %3042
        %vm3045 = vcmask 451968
        %3046 = vst.msk [vmem:[%s215] sm:$0x3] %vm3045, %v3043
        %v3047 = vld [vmem:[%s224 + $0x4] sm:$0xf]
        %v3048 = vpack.c.bf16 %v3047, %v3047
        %v3049 = vld [vmem:[%s2] sm:$0xf]
        %v3050 = vld [vmem:[%s2 + $0x4] sm:$0xf]
        %3052 = vrot.lane.b32.xlu0 %v3048, 32
        %v3053 = vpop.permute.xlu0 %3052
        %v3056 = vunpack.c.l.b16 %v3049
        %v3057 = vunpack.c.l.b16 %v3050
        %v3058 = vpack.c.b16 %v3057, %v3056
        %v3061 = vsel %vm237, %v3053, 0
        %3063 = vmatprep.subr.bf16.mxu0 0
        %3064 = vmatpush1.bf16.msra.mxu0 %v3058
        %3065 = vmatprep.subr.bf16.mxu0 0
        %3066 = vmatpush1.bf16.msra.mxu0 0
        %3067 = vmatprep.subr.bf16.mxu0 0
        %3068 = vmatpush1.bf16.msra.mxu0 0
        %3069 = vmatprep.subr.bf16.mxu0 0
        %3070 = vmatpush1.bf16.msra.mxu0 0
        %3071 = vmatprep.subr.bf16.mxu0 0
        %3072 = vmatpush1.bf16.msra.mxu0 0
        %3073 = vmatprep.subr.bf16.mxu0 0
        %3074 = vmatpush1.bf16.msra.mxu0 0
        %3075 = vmatprep.subr.bf16.mxu0 0
        %3076 = vmatpush1.bf16.msra.mxu0 0
        %3077 = vmatprep.subr.bf16.mxu0 0
        %3078 = vmatpush1.bf16.msra.mxu0 0
        %3079 = vmatprep.subr.bf16.mxu0 0
        %3080 = vmatpush1.bf16.msra.mxu0 0
        %3081 = vmatprep.subr.bf16.mxu0 0
        %3082 = vmatpush1.bf16.msra.mxu0 0
        %3083 = vmatprep.subr.bf16.mxu0 0
        %3084 = vmatpush1.bf16.msra.mxu0 0
        %3085 = vmatprep.subr.bf16.mxu0 0
        %3086 = vmatpush1.bf16.msra.mxu0 0
        %3087 = vmatprep.subr.bf16.mxu0 0
        %3088 = vmatpush1.bf16.msra.mxu0 0
        %3089 = vmatprep.subr.bf16.mxu0 0
        %3090 = vmatpush1.bf16.msra.mxu0 0
        %3091 = vmatprep.subr.bf16.mxu0 0
        %3092 = vmatpush1.bf16.msra.mxu0 0
        %3093 = vmatprep.subr.bf16.mxu0 0
        %3094 = vmatpush1.bf16.msra.mxu0 0
        %3095 = vmatprep.mubr.bf16.mxu0 0
        %3096 = vmatmul.mubr.bf16.gmra.mrb[0].mxu0 %v3061
        %v3097 = vpop.f32.mrb[0].mxu0
        %v3098 = vadd.f32 0.0, %v3097
        %v3099 = vpop.f32.mrb[0].mxu0
        %v3100 = vpop.f32.mrb[0].mxu0
        %v3101 = vpop.f32.mrb[0].mxu0
        %3102 = vdwg.mxu0
        %v3103 = vpack.c.bf16 %v3098, %v3098
        %v3104 = vld [vmem:[%s1] sm:$0x3]
        %v3105 = vld [vmem:[%s283] sm:$0xf]
        %v3106 = vld [vmem:[%s283 + $0x4] sm:$0xf]
        %v3109 = vunpack.c.l.b16 %v3105
        %v3110 = vunpack.c.l.b16 %v3106
        %v3111 = vpack.c.b16 %v3110, %v3109
        %3113 = vmatprep.subr.bf16.mxu0 0
        %3114 = vmatpush1.bf16.msra.mxu0 %v3111
        %3115 = vmatprep.subr.bf16.mxu0 0
        %3116 = vmatpush1.bf16.msra.mxu0 0
        %3117 = vmatprep.subr.bf16.mxu0 0
        %3118 = vmatpush1.bf16.msra.mxu0 0
        %3119 = vmatprep.subr.bf16.mxu0 0
        %3120 = vmatpush1.bf16.msra.mxu0 0
        %3121 = vmatprep.subr.bf16.mxu0 0
        %3122 = vmatpush1.bf16.msra.mxu0 0
        %3123 = vmatprep.subr.bf16.mxu0 0
        %3124 = vmatpush1.bf16.msra.mxu0 0
        %3125 = vmatprep.subr.bf16.mxu0 0
        %3126 = vmatpush1.bf16.msra.mxu0 0
        %3127 = vmatprep.subr.bf16.mxu0 0
        %3128 = vmatpush1.bf16.msra.mxu0 0
        %3129 = vmatprep.subr.bf16.mxu0 0
        %3130 = vmatpush1.bf16.msra.mxu0 0
        %3131 = vmatprep.subr.bf16.mxu0 0
        %3132 = vmatpush1.bf16.msra.mxu0 0
        %3133 = vmatprep.subr.bf16.mxu0 0
        %3134 = vmatpush1.bf16.msra.mxu0 0
        %3135 = vmatprep.subr.bf16.mxu0 0
        %3136 = vmatpush1.bf16.msra.mxu0 0
        %3137 = vmatprep.subr.bf16.mxu0 0
        %3138 = vmatpush1.bf16.msra.mxu0 0
        %3139 = vmatprep.subr.bf16.mxu0 0
        %3140 = vmatpush1.bf16.msra.mxu0 0
        %3141 = vmatprep.subr.bf16.mxu0 0
        %3142 = vmatpush1.bf16.msra.mxu0 0
        %3143 = vmatprep.subr.bf16.mxu0 0
        %3144 = vmatpush1.bf16.msra.mxu0 0
        %3145 = vmatprep.mubr.bf16.mxu0 0
        %3146 = vmatmul.mubr.bf16.gmra.mrb[0].mxu0 %v3061
        %v3147 = vpop.f32.mrb[0].mxu0
        %v3148 = vadd.f32 0.0, %v3147
        %v3149 = vpop.f32.mrb[0].mxu0
        %v3150 = vpop.f32.mrb[0].mxu0
        %v3151 = vpop.f32.mrb[0].mxu0
        %3152 = vdwg.mxu0
        %v3153 = vpack.c.bf16 %v3148, %v3148
        %v3154 = vld [vmem:[%s333] sm:$0x3]
        %v3156 = vsel %vm335, %v3154, 0
        %v3159 = vsel %vm339, %v3153, 0
        %3161 = vmatprep.subr.bf16.mxu0 0
        %3162 = vmatpush1.bf16.msra.mxu0 %v3159
        %3163 = vmatprep.subr.bf16.mxu0 0
        %3164 = vmatpush1.bf16.msra.mxu0 0
        %3165 = vmatprep.subr.bf16.mxu0 0
        %3166 = vmatpush1.bf16.msra.mxu0 0
        %3167 = vmatprep.subr.bf16.mxu0 0
        %3168 = vmatpush1.bf16.msra.mxu0 0
        %3169 = vmatprep.subr.bf16.mxu0 0
        %3170 = vmatpush1.bf16.msra.mxu0 0
        %3171 = vmatprep.subr.bf16.mxu0 0
        %3172 = vmatpush1.bf16.msra.mxu0 0
        %3173 = vmatprep.subr.bf16.mxu0 0
        %3174 = vmatpush1.bf16.msra.mxu0 0
        %3175 = vmatprep.subr.bf16.mxu0 0
        %3176 = vmatpush1.bf16.msra.mxu0 0
        %3177 = vmatprep.subr.bf16.mxu0 0
        %3178 = vmatpush1.bf16.msra.mxu0 0
        %3179 = vmatprep.subr.bf16.mxu0 0
        %3180 = vmatpush1.bf16.msra.mxu0 0
        %3181 = vmatprep.subr.bf16.mxu0 0
        %3182 = vmatpush1.bf16.msra.mxu0 0
        %3183 = vmatprep.subr.bf16.mxu0 0
        %3184 = vmatpush1.bf16.msra.mxu0 0
        %3185 = vmatprep.subr.bf16.mxu0 0
        %3186 = vmatpush1.bf16.msra.mxu0 0
        %3187 = vmatprep.subr.bf16.mxu0 0
        %3188 = vmatpush1.bf16.msra.mxu0 0
        %3189 = vmatprep.subr.bf16.mxu0 0
        %3190 = vmatpush1.bf16.msra.mxu0 0
        %3191 = vmatprep.subr.bf16.mxu0 0
        %3192 = vmatpush1.bf16.msra.mxu0 0
        %3193 = vmatprep.mubr.bf16.mxu0 0
        %3194 = vmatmul.mubr.bf16.gmra.mrb[0].mxu0 %v3156
        %v3195 = vpop.f32.mrb[0].mxu0
        %v3196 = vadd.f32 0.0, %v3195
        %v3197 = vpop.f32.mrb[0].mxu0
        %v3198 = vpop.f32.mrb[0].mxu0
        %v3199 = vpop.f32.mrb[0].mxu0
        %3200 = vdwg.mxu0
        %v3202 = vsel %vm335, %v3104, 0
        %v3205 = vsel %vm339, %v3103, 0
        %3207 = vmatprep.subr.bf16.mxu0 0
        %3208 = vmatpush1.bf16.msra.mxu0 %v3205
        %3209 = vmatprep.subr.bf16.mxu0 0
        %3210 = vmatpush1.bf16.msra.mxu0 0
        %3211 = vmatprep.subr.bf16.mxu0 0
        %3212 = vmatpush1.bf16.msra.mxu0 0
        %3213 = vmatprep.subr.bf16.mxu0 0
        %3214 = vmatpush1.bf16.msra.mxu0 0
        %3215 = vmatprep.subr.bf16.mxu0 0
        %3216 = vmatpush1.bf16.msra.mxu0 0
        %3217 = vmatprep.subr.bf16.mxu0 0
        %3218 = vmatpush1.bf16.msra.mxu0 0
        %3219 = vmatprep.subr.bf16.mxu0 0
        %3220 = vmatpush1.bf16.msra.mxu0 0
        %3221 = vmatprep.subr.bf16.mxu0 0
        %3222 = vmatpush1.bf16.msra.mxu0 0
        %3223 = vmatprep.subr.bf16.mxu0 0
        %3224 = vmatpush1.bf16.msra.mxu0 0
        %3225 = vmatprep.subr.bf16.mxu0 0
        %3226 = vmatpush1.bf16.msra.mxu0 0
        %3227 = vmatprep.subr.bf16.mxu0 0
        %3228 = vmatpush1.bf16.msra.mxu0 0
        %3229 = vmatprep.subr.bf16.mxu0 0
        %3230 = vmatpush1.bf16.msra.mxu0 0
        %3231 = vmatprep.subr.bf16.mxu0 0
        %3232 = vmatpush1.bf16.msra.mxu0 0
        %3233 = vmatprep.subr.bf16.mxu0 0
        %3234 = vmatpush1.bf16.msra.mxu0 0
        %3235 = vmatprep.subr.bf16.mxu0 0
        %3236 = vmatpush1.bf16.msra.mxu0 0
        %3237 = vmatprep.subr.bf16.mxu0 0
        %3238 = vmatpush1.bf16.msra.mxu0 0
        %3239 = vmatprep.mubr.bf16.mxu0 0
        %3240 = vmatmul.mubr.bf16.gmra.mrb[0].mxu0 %v3202
        %v3241 = vpop.f32.mrb[0].mxu0
        %v3242 = vadd.f32 %v3196, %v3241
        %v3243 = vpop.f32.mrb[0].mxu0
        %v3244 = vpop.f32.mrb[0].mxu0
        %v3245 = vpop.f32.mrb[0].mxu0
        %3246 = vdwg.mxu0
        %3247 = vrot.lane.b32.xlu0 %v3048, 16
        %v3248 = vpop.permute.xlu0 %3247
        %v3250 = vsel %vm237, %v3248, 0
        %3252 = vmatprep.subr.bf16.mxu0 0
        %3253 = vmatpush1.bf16.msra.mxu0 %v3058
        %3254 = vmatprep.subr.bf16.mxu0 0
        %3255 = vmatpush1.bf16.msra.mxu0 0
        %3256 = vmatprep.subr.bf16.mxu0 0
        %3257 = vmatpush1.bf16.msra.mxu0 0
        %3258 = vmatprep.subr.bf16.mxu0 0
        %3259 = vmatpush1.bf16.msra.mxu0 0
        %3260 = vmatprep.subr.bf16.mxu0 0
        %3261 = vmatpush1.bf16.msra.mxu0 0
        %3262 = vmatprep.subr.bf16.mxu0 0
        %3263 = vmatpush1.bf16.msra.mxu0 0
        %3264 = vmatprep.subr.bf16.mxu0 0
        %3265 = vmatpush1.bf16.msra.mxu0 0
        %3266 = vmatprep.subr.bf16.mxu0 0
        %3267 = vmatpush1.bf16.msra.mxu0 0
        %3268 = vmatprep.subr.bf16.mxu0 0
        %3269 = vmatpush1.bf16.msra.mxu0 0
        %3270 = vmatprep.subr.bf16.mxu0 0
        %3271 = vmatpush1.bf16.msra.mxu0 0
        %3272 = vmatprep.subr.bf16.mxu0 0
        %3273 = vmatpush1.bf16.msra.mxu0 0
        %3274 = vmatprep.subr.bf16.mxu0 0
        %3275 = vmatpush1.bf16.msra.mxu0 0
        %3276 = vmatprep.subr.bf16.mxu0 0
        %3277 = vmatpush1.bf16.msra.mxu0 0
        %3278 = vmatprep.subr.bf16.mxu0 0
        %3279 = vmatpush1.bf16.msra.mxu0 0
        %3280 = vmatprep.subr.bf16.mxu0 0
        %3281 = vmatpush1.bf16.msra.mxu0 0
        %3282 = vmatprep.subr.bf16.mxu0 0
        %3283 = vmatpush1.bf16.msra.mxu0 0
        %3284 = vmatprep.mubr.bf16.mxu0 0
        %3285 = vmatmul.mubr.bf16.gmra.mrb[0].mxu0 %v3250
        %v3286 = vpop.f32.mrb[0].mxu0
        %v3287 = vadd.f32 0.0, %v3286
        %v3288 = vpop.f32.mrb[0].mxu0
        %v3289 = vpop.f32.mrb[0].mxu0
        %v3290 = vpop.f32.mrb[0].mxu0
        %3291 = vdwg.mxu0
        %v3292 = vpack.c.bf16 %v3287, %v3287
        %v3293 = vld [vmem:[%s476] sm:$0x3]
        %v3295 = vsel %vm335, %v3293, 0
        %v3298 = vsel %vm339, %v3292, 0
        %3300 = vmatprep.subr.bf16.mxu0 0
        %3301 = vmatpush1.bf16.msra.mxu0 %v3298
        %3302 = vmatprep.subr.bf16.mxu0 0
        %3303 = vmatpush1.bf16.msra.mxu0 0
        %3304 = vmatprep.subr.bf16.mxu0 0
        %3305 = vmatpush1.bf16.msra.mxu0 0
        %3306 = vmatprep.subr.bf16.mxu0 0
        %3307 = vmatpush1.bf16.msra.mxu0 0
        %3308 = vmatprep.subr.bf16.mxu0 0
        %3309 = vmatpush1.bf16.msra.mxu0 0
        %3310 = vmatprep.subr.bf16.mxu0 0
        %3311 = vmatpush1.bf16.msra.mxu0 0
        %3312 = vmatprep.subr.bf16.mxu0 0
        %3313 = vmatpush1.bf16.msra.mxu0 0
        %3314 = vmatprep.subr.bf16.mxu0 0
        %3315 = vmatpush1.bf16.msra.mxu0 0
        %3316 = vmatprep.subr.bf16.mxu0 0
        %3317 = vmatpush1.bf16.msra.mxu0 0
        %3318 = vmatprep.subr.bf16.mxu0 0
        %3319 = vmatpush1.bf16.msra.mxu0 0
        %3320 = vmatprep.subr.bf16.mxu0 0
        %3321 = vmatpush1.bf16.msra.mxu0 0
        %3322 = vmatprep.subr.bf16.mxu0 0
        %3323 = vmatpush1.bf16.msra.mxu0 0
        %3324 = vmatprep.subr.bf16.mxu0 0
        %3325 = vmatpush1.bf16.msra.mxu0 0
        %3326 = vmatprep.subr.bf16.mxu0 0
        %3327 = vmatpush1.bf16.msra.mxu0 0
        %3328 = vmatprep.subr.bf16.mxu0 0
        %3329 = vmatpush1.bf16.msra.mxu0 0
        %3330 = vmatprep.subr.bf16.mxu0 0
        %3331 = vmatpush1.bf16.msra.mxu0 0
        %3332 = vmatprep.mubr.bf16.mxu0 0
        %3333 = vmatmul.mubr.bf16.gmra.mrb[0].mxu0 %v3295
        %v3334 = vpop.f32.mrb[0].mxu0
        %v3335 = vadd.f32 0.0, %v3334
        %v3336 = vpop.f32.mrb[0].mxu0
        %v3337 = vpop.f32.mrb[0].mxu0
        %v3338 = vpop.f32.mrb[0].mxu0
        %3339 = vdwg.mxu0
        %v3340 = vadd.f32 %v3242, %v3335
        %3341 = vmatprep.subr.bf16.mxu0 0
        %3342 = vmatpush1.bf16.msra.mxu0 %v3111
        %3343 = vmatprep.subr.bf16.mxu0 0
        %3344 = vmatpush1.bf16.msra.mxu0 0
        %3345 = vmatprep.subr.bf16.mxu0 0
        %3346 = vmatpush1.bf16.msra.mxu0 0
        %3347 = vmatprep.subr.bf16.mxu0 0
        %3348 = vmatpush1.bf16.msra.mxu0 0
        %3349 = vmatprep.subr.bf16.mxu0 0
        %3350 = vmatpush1.bf16.msra.mxu0 0
        %3351 = vmatprep.subr.bf16.mxu0 0
        %3352 = vmatpush1.bf16.msra.mxu0 0
        %3353 = vmatprep.subr.bf16.mxu0 0
        %3354 = vmatpush1.bf16.msra.mxu0 0
        %3355 = vmatprep.subr.bf16.mxu0 0
        %3356 = vmatpush1.bf16.msra.mxu0 0
        %3357 = vmatprep.subr.bf16.mxu0 0
        %3358 = vmatpush1.bf16.msra.mxu0 0
        %3359 = vmatprep.subr.bf16.mxu0 0
        %3360 = vmatpush1.bf16.msra.mxu0 0
        %3361 = vmatprep.subr.bf16.mxu0 0
        %3362 = vmatpush1.bf16.msra.mxu0 0
        %3363 = vmatprep.subr.bf16.mxu0 0
        %3364 = vmatpush1.bf16.msra.mxu0 0
        %3365 = vmatprep.subr.bf16.mxu0 0
        %3366 = vmatpush1.bf16.msra.mxu0 0
        %3367 = vmatprep.subr.bf16.mxu0 0
        %3368 = vmatpush1.bf16.msra.mxu0 0
        %3369 = vmatprep.subr.bf16.mxu0 0
        %3370 = vmatpush1.bf16.msra.mxu0 0
        %3371 = vmatprep.subr.bf16.mxu0 0
        %3372 = vmatpush1.bf16.msra.mxu0 0
        %3373 = vmatprep.mubr.bf16.mxu0 0
        %3374 = vmatmul.mubr.bf16.gmra.mrb[0].mxu0 %v3250
        %v3375 = vpop.f32.mrb[0].mxu0
        %v3376 = vadd.f32 0.0, %v3375
        %v3377 = vpop.f32.mrb[0].mxu0
        %v3378 = vpop.f32.mrb[0].mxu0
        %v3379 = vpop.f32.mrb[0].mxu0
        %3380 = vdwg.mxu0
        %v3381 = vpack.c.bf16 %v3376, %v3376
        %v3382 = vld [vmem:[%s566] sm:$0x3]
        %v3384 = vsel %vm335, %v3382, 0
        %v3387 = vsel %vm339, %v3381, 0
        %3389 = vmatprep.subr.bf16.mxu0 0
        %3390 = vmatpush1.bf16.msra.mxu0 %v3387
        %3391 = vmatprep.subr.bf16.mxu0 0
        %3392 = vmatpush1.bf16.msra.mxu0 0
        %3393 = vmatprep.subr.bf16.mxu0 0
        %3394 = vmatpush1.bf16.msra.mxu0 0
        %3395 = vmatprep.subr.bf16.mxu0 0
        %3396 = vmatpush1.bf16.msra.mxu0 0
        %3397 = vmatprep.subr.bf16.mxu0 0
        %3398 = vmatpush1.bf16.msra.mxu0 0
        %3399 = vmatprep.subr.bf16.mxu0 0
        %3400 = vmatpush1.bf16.msra.mxu0 0
        %3401 = vmatprep.subr.bf16.mxu0 0
        %3402 = vmatpush1.bf16.msra.mxu0 0
        %3403 = vmatprep.subr.bf16.mxu0 0
        %3404 = vmatpush1.bf16.msra.mxu0 0
        %3405 = vmatprep.subr.bf16.mxu0 0
        %3406 = vmatpush1.bf16.msra.mxu0 0
        %3407 = vmatprep.subr.bf16.mxu0 0
        %3408 = vmatpush1.bf16.msra.mxu0 0
        %3409 = vmatprep.subr.bf16.mxu0 0
        %3410 = vmatpush1.bf16.msra.mxu0 0
        %3411 = vmatprep.subr.bf16.mxu0 0
        %3412 = vmatpush1.bf16.msra.mxu0 0
        %3413 = vmatprep.subr.bf16.mxu0 0
        %3414 = vmatpush1.bf16.msra.mxu0 0
        %3415 = vmatprep.subr.bf16.mxu0 0
        %3416 = vmatpush1.bf16.msra.mxu0 0
        %3417 = vmatprep.subr.bf16.mxu0 0
        %3418 = vmatpush1.bf16.msra.mxu0 0
        %3419 = vmatprep.subr.bf16.mxu0 0
        %3420 = vmatpush1.bf16.msra.mxu0 0
        %3421 = vmatprep.mubr.bf16.mxu0 0
        %3422 = vmatmul.mubr.bf16.gmra.mrb[0].mxu0 %v3384
        %v3423 = vpop.f32.mrb[0].mxu0
        %v3424 = vadd.f32 0.0, %v3423
        %v3425 = vpop.f32.mrb[0].mxu0
        %v3426 = vpop.f32.mrb[0].mxu0
        %v3427 = vpop.f32.mrb[0].mxu0
        %3428 = vdwg.mxu0
        %v3429 = vadd.f32 %v3340, %v3424
        %v3430 = vld [vmem:[%s3] sm:$0xf]
        %3432 = vset.pattern.permute.xlu0 0
        %3433 = vperm.xlu0 %3432, %v3430
        %v3434 = vpop.permute.xlu0 %3433
        %v3436 = vadd.f32 %v3429, %v3434
        %v3437 = vpack.c.bf16 %v3436, %v3436
        %v3440 = vunpack.c.l.s4 1983009808
        %v3441 = vunpack.c.0.s8 %v3440
        %v3442 = vlaneseq
        %v3443 = vshrl.u32 %v3442, 7
        %v3444 = vsub.s32 %v3441, %v3443
        %v3445 = vrot.slane %v3437, %v3444
        %3446 = vrot.lane.b32.xlu0 %v3445, 56
        %v3447 = vpop.permute.xlu0 %3446
        %vm3449 = vcmask 517568
        %3450 = vst.msk [vmem:[%s215] sm:$0x3] %vm3449, %v3447
        %s3451 = sand.u32 %s131, 1
        %s3452 = scalar_lea.sflag [#allocation3], %s3451
        %s3453 = sand.u32 %s131, 1
        %s3454 = smul.addr %s3453, 2
        %s3455 = scalar_lea.vmem [#allocation2], %s3454
        // Predicated region
        $region37: #{tpu_custom_call.1} parent=35 // pred_check
          %p3456 = pneg %p141
        $region38: #{tpu_custom_call.1} parent=35 // pred_check_branch
          %3458 = sbr.rel (%p3456) target = $region40
        $region39: #{tpu_custom_call.1} parent=35 // pred_region
          %s3460 = ssub.s32 32, 32
          %3461 = vsyncadd %s3452, %s3460
          %s3462 = sadd.s32 %s23, %s22
          %s3463 = smul.addr %s3462, 32
          %s3464 = scalar_lea.hbm %s4, %s3463
          %s3466 = sshll.u32 %s3455, 4
          %s3467 = int_to_ptr.vmem [resolvable:$true] %s3466
          %3469 = dma.vmem_to_hbm [thread:$0]  %s3467, 32, %s3464, %s3452
        $region40: #{tpu_custom_call.1} parent=35 // pred_fallthru
          _
      $region36: #{tpu_custom_call.1} parent=5 // pred_fallthru
        _
      %p3470 = scmp.le.s32.totalorder 2, %s13
      // Predicated region
      $region41: #{tpu_custom_call.1} parent=5 // pred_check
        %p3471 = pneg %p3470
      $region42: #{tpu_custom_call.1} parent=5 // pred_check_branch
        %3473 = sbr.rel (%p3471) target = $region44
      $region43: #{tpu_custom_call.1} parent=5 // pred_region
        %s3474 = ssub.s32 %s13, 2
        // Predicated region
        $region45: #{tpu_custom_call.1} parent=43 // pred_check
          %p3475 = pneg %p147
        $region46: #{tpu_custom_call.1} parent=43 // pred_check_branch
          %3477 = sbr.rel (%p3475) target = $region48
        $region47: #{tpu_custom_call.1} parent=43 // pred_region
          %s3478 = sand.u32 %s132, 1
          %s3479 = scalar_lea.sflag [#allocation3], %s3478
          %s3480 = sand.u32 %s132, 1
          %s3481 = smul.addr %s3480, 2
          %s3482 = scalar_lea.vmem [#allocation2], %s3481
          %3483 = dma.done %s3479, 32
        $region48: #{tpu_custom_call.1} parent=43 // pred_fallthru
          _
      $region44: #{tpu_custom_call.1} parent=5 // pred_fallthru
        _
    $region6: #{tpu_custom_call.1} parent=1 // loop_footer
      %s17 = sadd.s32 1, %s13
    $region7: #{tpu_custom_call.1} parent=1 // loop_footer_branch
      %12 = sbr.rel target = $region3
    $region8: #{tpu_custom_call.1} parent=1 // loop_exit
      _
    %3484 = vsyncpa [#allocation3], 1
    %s3485 = scalar_lea.sflag [#allocation3], 1
    %3486 = vsyncpa %s3485, 1

</llo_original>
